<compile_context>
chip_gen: v5e
topology: v5e:2x2
jax: 0.10.0
libtpu: 0.0.40
codegen_flags: <defaults>
</compile_context>

<pallas_src>
import jax
import jax.numpy as jnp
from jax import lax
from jax.experimental import pallas as pl
from jax.experimental.pallas import tpu as pltpu


def lstm_fc_kernel(tok_ref, emb_ref, wih_ref, whh_ref, b_ref, wfc_ref, bfc_ref,
                   out_ref, xgat_ref, xproj_ref):
    """One batch-block: in-kernel embedding gather + LSTM recurrence + fc head.

    tok_ref:   (Bp, T)         int32 SMEM (scalar prefetch) token ids (padded rows = 0)
    emb_ref:   (Vp, Ep)        f32   embedding table (zero-padded rows/lanes)
    wih_ref:   (Ep, 4*Hp)      bf16  input->gates weights, gate order [i,f,o,g], lane-padded
    whh_ref:   (Hp, 4*Hp)      bf16  hidden->gates weights (rows >= H are zero)
    b_ref:     (1, 4*Hp)       f32   fused b_ih + b_hh (per-gate lane-padded)
    wfc_ref:   (Hp, Cp)        bf16  fc weights (rows >= H, cols >= C are zero)
    bfc_ref:   (1, Cp)         f32   fc bias
    out_ref:   (Bblk, Cp)      f32   logits for this batch block
    xgat_ref:  (T*Bblk, Ep)    bf16  VMEM scratch: gathered time-major embeddings
    xproj_ref: (T*Bblk, 4*Hp)  f32   VMEM scratch: hoisted input projection (+bias)
    """
    Bblk = out_ref.shape[0]
    T = tok_ref.shape[1]
    Hp = whh_ref.shape[0]
    base = pl.program_id(0) * Bblk

    # ---- Fused embedding gather (time-major) into a bf16 VMEM scratch. ----------------
    # Token ids are scalars in SMEM; each row is a dynamic-sublane (1, Ep) f32 load from
    # the VMEM-resident table, cast to bf16 and written at a static offset.
    # TODO(synk): for large T*Bblk this unrolled gather should move to a fori_loop.
    for t in range(T):
        for b in range(Bblk):
            tok = tok_ref[base + b, t]
            xgat_ref[pl.ds(t * Bblk + b, 1), :] = (
                emb_ref[pl.ds(tok, 1), :].astype(jnp.bfloat16))

    # ---- Hoisted, time-parallel input projection: one MXU matmul (+ fused bias). ------
    xproj_ref[...] = (
        jnp.dot(xgat_ref[...], wih_ref[...], preferred_element_type=jnp.float32)
        + b_ref[...]
    )

    h = jnp.zeros((Bblk, Hp), jnp.float32)
    c = jnp.zeros((Bblk, Hp), jnp.float32)

    # ---- Fully unrolled recurrence: only h @ W_hh + gate math on the serial chain. ----
    # Gate layout is [i, f, o, g]: one sigmoid over a contiguous 3*Hp slice, one tanh over g.
    # TODO(synk): packed-gate variant (single 128-lane gate vreg + pltpu.roll alignment)
    #             would cut EUP element count ~4x; needs measurement on the serial chain.
    for t in range(T):
        gates = xproj_ref[pl.ds(t * Bblk, Bblk), :] + jnp.dot(
            h.astype(jnp.bfloat16), whh_ref[...], preferred_element_type=jnp.float32)
        sig = jax.nn.sigmoid(gates[:, 0:3 * Hp])
        g_g = jnp.tanh(gates[:, 3 * Hp:4 * Hp])
        i_g = sig[:, 0 * Hp:1 * Hp]
        f_g = sig[:, 1 * Hp:2 * Hp]
        o_g = sig[:, 2 * Hp:3 * Hp]
        c = f_g * c + i_g * g_g
        h = o_g * jnp.tanh(c)

    # TODO(synk): dropout(p=0.5) is identity here (eval mode); training-mode dropout would
    #             need pltpu.prng_seed / pltpu.prng_random_bits masking of h.
    logits = jnp.dot(h.astype(jnp.bfloat16), wfc_ref[...],
                     preferred_element_type=jnp.float32) + bfc_ref[...]
    out_ref[...] = logits.astype(out_ref.dtype)


def _pad_reorder_gate_cols(w, h, hp):
    """(rows, 4h) PyTorch gate order [i,f,g,o] -> (rows, 4*hp) kernel order [i,f,o,g],
    each gate's column block zero-padded from h to hp lanes."""
    order = (0, 1, 3, 2)   # i, f, o, g
    parts = [jnp.pad(w[:, k * h:(k + 1) * h], ((0, 0), (0, hp - h))) for k in order]
    return jnp.concatenate(parts, axis=1)


def _replicated_spec(shape):
    # NOTE: weights never change across grid steps; pipeline_mode=pl.Buffered(1) would
    # drop their second buffer (small VMEM win on v7x) — left at default for portability.
    return pl.BlockSpec(shape, lambda i, tok: (0,) * len(shape))


def lstm_classifier_forward(tokens, params, *, lane=128, sublane=8):
    """tokens: (B, T) int32 token ids -> (B, num_classes) f32 logits."""
    emb = params["embedding"]                       # (V, E)
    B, T = tokens.shape
    V, E = emb.shape
    H = params["w_hh"].shape[1]
    C = params["w_fc"].shape[0]

    Ep = ((E + lane - 1) // lane) * lane            # 100 -> 128
    Hp = ((H + lane - 1) // lane) * lane            # 32  -> 128 (per-gate lane padding)
    Cp = ((C + lane - 1) // lane) * lane            # 4   -> 128
    Vp = ((V + sublane - 1) // sublane) * sublane   # 50  -> 56

    # Batch block: fill the MXU M-dim (up to 128 rows) while keeping >=2 blocks for large
    # batches (v7x megacore sharding via the "parallel" axis); tiny batches stay at 8.
    Bp0 = ((B + sublane - 1) // sublane) * sublane
    Bblk = min(128, Bp0)
    Bp = ((B + Bblk - 1) // Bblk) * Bblk

    # Tokens padded with id 0 for the padded batch rows (their logits are sliced off).
    tokens_p = jnp.pad(tokens, ((0, Bp - B), (0, 0))).astype(jnp.int32)

    # Zero-padded embedding table kept f32 in VMEM (dynamic row loads stay 32-bit).
    emb_p = jnp.pad(emb, ((0, Vp - V), (0, Ep - E))).astype(jnp.float32)

    # Pre-transposed, gate-reordered ([i,f,o,g]) and lane-padded weights; MXU operands bf16.
    wih = _pad_reorder_gate_cols(params["w_ih"].T, H, Hp)                 # (E, 4*Hp)
    wih = jnp.pad(wih, ((0, Ep - E), (0, 0))).astype(jnp.bfloat16)        # (Ep, 4*Hp)
    whh = _pad_reorder_gate_cols(params["w_hh"].T, H, Hp)                 # (H, 4*Hp)
    whh = jnp.pad(whh, ((0, Hp - H), (0, 0))).astype(jnp.bfloat16)        # (Hp, 4*Hp)
    b = _pad_reorder_gate_cols((params["b_ih"] + params["b_hh"])[None, :], H, Hp
                               ).astype(jnp.float32)                      # (1, 4*Hp)
    wfc = jnp.pad(params["w_fc"].T, ((0, Hp - H), (0, Cp - C))).astype(jnp.bfloat16)
    bfc = jnp.pad(params["b_fc"][None, :], ((0, 0), (0, Cp - C))).astype(jnp.float32)

    grid = (Bp // Bblk,)
    out = pl.pallas_call(
        lstm_fc_kernel,
        out_shape=jax.ShapeDtypeStruct((Bp, Cp), jnp.float32),
        grid_spec=pltpu.PrefetchScalarGridSpec(
            num_scalar_prefetch=1,                      # tokens -> SMEM
            grid=grid,
            in_specs=[
                _replicated_spec((Vp, Ep)),             # embedding table
                _replicated_spec((Ep, 4 * Hp)),         # W_ih
                _replicated_spec((Hp, 4 * Hp)),         # W_hh
                _replicated_spec((1, 4 * Hp)),          # fused bias
                _replicated_spec((Hp, Cp)),             # W_fc
                _replicated_spec((1, Cp)),              # b_fc
            ],
            out_specs=pl.BlockSpec((Bblk, Cp), lambda i, tok: (i, 0)),
            scratch_shapes=[
                pltpu.VMEM((T * Bblk, Ep), jnp.bfloat16),      # gathered embeddings
                pltpu.VMEM((T * Bblk, 4 * Hp), jnp.float32),   # hoisted input projection
            ],
        ),
        compiler_params=pltpu.CompilerParams(
            dimension_semantics=("parallel",),
            vmem_limit_bytes=32 * 1024 * 1024,
        ),
    )(tokens_p, emb_p, wih, whh, b, wfc, bfc)
    return out[:B, :C]


def reference_forward(tokens, params):
    """Pure-JAX f32 reference matching PyTorch nn.LSTM semantics (eval mode)."""
    x = jnp.take(params["embedding"], tokens, axis=0).astype(jnp.float32)  # (B, T, E)
    B, T, _ = x.shape
    H = params["w_hh"].shape[1]
    wih, whh = params["w_ih"], params["w_hh"]
    b = params["b_ih"] + params["b_hh"]

    def step(carry, xt):
        h, c = carry
        gates = xt @ wih.T + h @ whh.T + b
        i = jax.nn.sigmoid(gates[:, 0 * H:1 * H])
        f = jax.nn.sigmoid(gates[:, 1 * H:2 * H])
        g = jnp.tanh(gates[:, 2 * H:3 * H])
        o = jax.nn.sigmoid(gates[:, 3 * H:4 * H])
        c_new = f * c + i * g
        h_new = o * jnp.tanh(c_new)
        return (h_new, c_new), None

    h0 = jnp.zeros((B, H), jnp.float32)
    c0 = jnp.zeros((B, H), jnp.float32)
    (h_final, _), _ = lax.scan(step, (h0, c0), jnp.transpose(x, (1, 0, 2)))
    return h_final @ params["w_fc"].T + params["b_fc"]


if __name__ == "__main__":
    # Small shapes consistent with the module: vocab=50, emb=100, hidden=32, classes=4,
    # batch=2, seq=8.
    VOCAB, EMB, HIDDEN, CLASSES = 50, 100, 32, 4
    B, T = 2, 8

    key = jax.random.PRNGKey(0)
    keys = jax.random.split(key, 8)
    params = {
        "embedding": 0.1 * jax.random.normal(keys[0], (VOCAB, EMB), jnp.float32),
        "w_ih":      0.1 * jax.random.normal(keys[1], (4 * HIDDEN, EMB), jnp.float32),
        "w_hh":      0.1 * jax.random.normal(keys[2], (4 * HIDDEN, HIDDEN), jnp.float32),
        "b_ih":      0.1 * jax.random.normal(keys[3], (4 * HIDDEN,), jnp.float32),
        "b_hh":      0.1 * jax.random.normal(keys[4], (4 * HIDDEN,), jnp.float32),
        "w_fc":      0.1 * jax.random.normal(keys[5], (CLASSES, HIDDEN), jnp.float32),
        "b_fc":      0.1 * jax.random.normal(keys[6], (CLASSES,), jnp.float32),
    }
    tokens = jax.random.randint(keys[7], (B, T), 0, VOCAB, dtype=jnp.int32)

    out = lstm_classifier_forward(tokens, params)
    out = jax.block_until_ready(out)

    ref = reference_forward(tokens, params)
    assert out.shape == (B, CLASSES)
    # bf16 MXU operands (f32 accumulation) -> loose-but-safe tolerance vs the f32 reference.
    assert jnp.allclose(out, ref, atol=2e-2, rtol=2e-2), (out, ref, jnp.max(jnp.abs(out - ref)))
    print("KERNEL_OK")
</pallas_src>

<mosaic_0001>
module attributes {stable_mosaic.version = 11 : i64} {
  func.func @lstm_fc_kernel(%arg0: i32, %arg1: memref<8x8xi32, #tpu.memory_space<smem>>, %arg2: memref<56x128xf32, #tpu.memory_space<vmem>>, %arg3: memref<128x512xbf16, #tpu.memory_space<vmem>>, %arg4: memref<128x512xbf16, #tpu.memory_space<vmem>>, %arg5: memref<1x512xf32, #tpu.memory_space<vmem>>, %arg6: memref<128x128xbf16, #tpu.memory_space<vmem>>, %arg7: memref<1x128xf32, #tpu.memory_space<vmem>>, %arg8: memref<8x128xf32, #tpu.memory_space<vmem>>, %arg9: memref<64x128xbf16, #tpu.memory_space<vmem>>, %arg10: memref<64x512xf32, #tpu.memory_space<vmem>>) attributes {dimension_semantics = [#tpu.dimension_semantics<parallel>], iteration_bounds = array<i64: 1>, scalar_prefetch = 1 : i64, scratch_operands = 2 : i64, tpu.core_type = #tpu.core_type<tc>, window_params = [{pipeline_mode = #tpu.pipeline_mode<synchronous>, transform_indices = @transform_0, window_bounds = array<i64: 56, 128>}, {pipeline_mode = #tpu.pipeline_mode<synchronous>, transform_indices = @transform_1, window_bounds = array<i64: 128, 512>}, {pipeline_mode = #tpu.pipeline_mode<synchronous>, transform_indices = @transform_2, window_bounds = array<i64: 128, 512>}, {pipeline_mode = #tpu.pipeline_mode<synchronous>, transform_indices = @transform_3, window_bounds = array<i64: 1, 512>}, {pipeline_mode = #tpu.pipeline_mode<synchronous>, transform_indices = @transform_4, window_bounds = array<i64: 128, 128>}, {pipeline_mode = #tpu.pipeline_mode<synchronous>, transform_indices = @transform_5, window_bounds = array<i64: 1, 128>}, {transform_indices = @transform_6, window_bounds = array<i64: 8, 128>}]} {
    %c8_i32 = arith.constant 8 : i32
    %0 = arith.muli %arg0, %c8_i32 : i32
    %c0_i32 = arith.constant 0 : i32
    %1 = arith.addi %0, %c0_i32 : i32
    %2 = arith.index_cast %1 : i32 to index
    %c0 = arith.constant 0 : index
    %3 = memref.load %arg1[%2, %c0] : memref<8x8xi32, #tpu.memory_space<smem>>
    %4 = arith.index_cast %3 : i32 to index
    %c0_0 = arith.constant 0 : index
    %5 = vector.load %arg2[%4, %c0_0] : memref<56x128xf32, #tpu.memory_space<vmem>>, vector<1x128xf32>
    %6 = arith.truncf %5 : vector<1x128xf32> to vector<1x128xbf16>
    %c0_1 = arith.constant 0 : index
    %c0_2 = arith.constant 0 : index
    %7 = vector.load %arg9[%c0_1, %c0_2] : memref<64x128xbf16, #tpu.memory_space<vmem>>, vector<1x128xbf16>
    tpu.vector_store %arg9[%c0_1, %c0_2], %6 {strides = array<i32>} : memref<64x128xbf16, #tpu.memory_space<vmem>>, vector<1x128xbf16>,
    %c1_i32 = arith.constant 1 : i32
    %8 = arith.addi %0, %c1_i32 : i32
    %9 = arith.index_cast %8 : i32 to index
    %c0_3 = arith.constant 0 : index
    %10 = memref.load %arg1[%9, %c0_3] : memref<8x8xi32, #tpu.memory_space<smem>>
    %11 = arith.index_cast %10 : i32 to index
    %c0_4 = arith.constant 0 : index
    %12 = vector.load %arg2[%11, %c0_4] : memref<56x128xf32, #tpu.memory_space<vmem>>, vector<1x128xf32>
    %13 = arith.truncf %12 : vector<1x128xf32> to vector<1x128xbf16>
    %c1 = arith.constant 1 : index
    %c0_5 = arith.constant 0 : index
    %14 = vector.load %arg9[%c1, %c0_5] : memref<64x128xbf16, #tpu.memory_space<vmem>>, vector<1x128xbf16>
    tpu.vector_store %arg9[%c1, %c0_5], %13 {strides = array<i32>} : memref<64x128xbf16, #tpu.memory_space<vmem>>, vector<1x128xbf16>,
    %c2_i32 = arith.constant 2 : i32
    %15 = arith.addi %0, %c2_i32 : i32
    %16 = arith.index_cast %15 : i32 to index
    %c0_6 = arith.constant 0 : index
    %17 = memref.load %arg1[%16, %c0_6] : memref<8x8xi32, #tpu.memory_space<smem>>
    %18 = arith.index_cast %17 : i32 to index
    %c0_7 = arith.constant 0 : index
    %19 = vector.load %arg2[%18, %c0_7] : memref<56x128xf32, #tpu.memory_space<vmem>>, vector<1x128xf32>
    %20 = arith.truncf %19 : vector<1x128xf32> to vector<1x128xbf16>
    %c2 = arith.constant 2 : index
    %c0_8 = arith.constant 0 : index
    %21 = vector.load %arg9[%c2, %c0_8] : memref<64x128xbf16, #tpu.memory_space<vmem>>, vector<1x128xbf16>
    tpu.vector_store %arg9[%c2, %c0_8], %20 {strides = array<i32>} : memref<64x128xbf16, #tpu.memory_space<vmem>>, vector<1x128xbf16>,
    %c3_i32 = arith.constant 3 : i32
    %22 = arith.addi %0, %c3_i32 : i32
    %23 = arith.index_cast %22 : i32 to index
    %c0_9 = arith.constant 0 : index
    %24 = memref.load %arg1[%23, %c0_9] : memref<8x8xi32, #tpu.memory_space<smem>>
    %25 = arith.index_cast %24 : i32 to index
    %c0_10 = arith.constant 0 : index
    %26 = vector.load %arg2[%25, %c0_10] : memref<56x128xf32, #tpu.memory_space<vmem>>, vector<1x128xf32>
    %27 = arith.truncf %26 : vector<1x128xf32> to vector<1x128xbf16>
    %c3 = arith.constant 3 : index
    %c0_11 = arith.constant 0 : index
    %28 = vector.load %arg9[%c3, %c0_11] : memref<64x128xbf16, #tpu.memory_space<vmem>>, vector<1x128xbf16>
    tpu.vector_store %arg9[%c3, %c0_11], %27 {strides = array<i32>} : memref<64x128xbf16, #tpu.memory_space<vmem>>, vector<1x128xbf16>,
    %c4_i32 = arith.constant 4 : i32
    %29 = arith.addi %0, %c4_i32 : i32
    %30 = arith.index_cast %29 : i32 to index
    %c0_12 = arith.constant 0 : index
    %31 = memref.load %arg1[%30, %c0_12] : memref<8x8xi32, #tpu.memory_space<smem>>
    %32 = arith.index_cast %31 : i32 to index
    %c0_13 = arith.constant 0 : index
    %33 = vector.load %arg2[%32, %c0_13] : memref<56x128xf32, #tpu.memory_space<vmem>>, vector<1x128xf32>
    %34 = arith.truncf %33 : vector<1x128xf32> to vector<1x128xbf16>
    %c4 = arith.constant 4 : index
    %c0_14 = arith.constant 0 : index
    %35 = vector.load %arg9[%c4, %c0_14] : memref<64x128xbf16, #tpu.memory_space<vmem>>, vector<1x128xbf16>
    tpu.vector_store %arg9[%c4, %c0_14], %34 {strides = array<i32>} : memref<64x128xbf16, #tpu.memory_space<vmem>>, vector<1x128xbf16>,
    %c5_i32 = arith.constant 5 : i32
    %36 = arith.addi %0, %c5_i32 : i32
    %37 = arith.index_cast %36 : i32 to index
    %c0_15 = arith.constant 0 : index
    %38 = memref.load %arg1[%37, %c0_15] : memref<8x8xi32, #tpu.memory_space<smem>>
    %39 = arith.index_cast %38 : i32 to index
    %c0_16 = arith.constant 0 : index
    %40 = vector.load %arg2[%39, %c0_16] : memref<56x128xf32, #tpu.memory_space<vmem>>, vector<1x128xf32>
    %41 = arith.truncf %40 : vector<1x128xf32> to vector<1x128xbf16>
    %c5 = arith.constant 5 : index
    %c0_17 = arith.constant 0 : index
    %42 = vector.load %arg9[%c5, %c0_17] : memref<64x128xbf16, #tpu.memory_space<vmem>>, vector<1x128xbf16>
    tpu.vector_store %arg9[%c5, %c0_17], %41 {strides = array<i32>} : memref<64x128xbf16, #tpu.memory_space<vmem>>, vector<1x128xbf16>,
    %c6_i32 = arith.constant 6 : i32
    %43 = arith.addi %0, %c6_i32 : i32
    %44 = arith.index_cast %43 : i32 to index
    %c0_18 = arith.constant 0 : index
    %45 = memref.load %arg1[%44, %c0_18] : memref<8x8xi32, #tpu.memory_space<smem>>
    %46 = arith.index_cast %45 : i32 to index
    %c0_19 = arith.constant 0 : index
    %47 = vector.load %arg2[%46, %c0_19] : memref<56x128xf32, #tpu.memory_space<vmem>>, vector<1x128xf32>
    %48 = arith.truncf %47 : vector<1x128xf32> to vector<1x128xbf16>
    %c6 = arith.constant 6 : index
    %c0_20 = arith.constant 0 : index
    %49 = vector.load %arg9[%c6, %c0_20] : memref<64x128xbf16, #tpu.memory_space<vmem>>, vector<1x128xbf16>
    tpu.vector_store %arg9[%c6, %c0_20], %48 {strides = array<i32>} : memref<64x128xbf16, #tpu.memory_space<vmem>>, vector<1x128xbf16>,
    %c7_i32 = arith.constant 7 : i32
    %50 = arith.addi %0, %c7_i32 : i32
    %51 = arith.index_cast %50 : i32 to index
    %c0_21 = arith.constant 0 : index
    %52 = memref.load %arg1[%51, %c0_21] : memref<8x8xi32, #tpu.memory_space<smem>>
    %53 = arith.index_cast %52 : i32 to index
    %c0_22 = arith.constant 0 : index
    %54 = vector.load %arg2[%53, %c0_22] : memref<56x128xf32, #tpu.memory_space<vmem>>, vector<1x128xf32>
    %55 = arith.truncf %54 : vector<1x128xf32> to vector<1x128xbf16>
    %c7 = arith.constant 7 : index
    %c0_23 = arith.constant 0 : index
    %56 = vector.load %arg9[%c7, %c0_23] : memref<64x128xbf16, #tpu.memory_space<vmem>>, vector<1x128xbf16>
    tpu.vector_store %arg9[%c7, %c0_23], %55 {strides = array<i32>} : memref<64x128xbf16, #tpu.memory_space<vmem>>, vector<1x128xbf16>,
    %c0_i32_24 = arith.constant 0 : i32
    %57 = arith.addi %0, %c0_i32_24 : i32
    %58 = arith.index_cast %57 : i32 to index
    %c1_25 = arith.constant 1 : index
    %59 = memref.load %arg1[%58, %c1_25] : memref<8x8xi32, #tpu.memory_space<smem>>
    %60 = arith.index_cast %59 : i32 to index
    %c0_26 = arith.constant 0 : index
    %61 = vector.load %arg2[%60, %c0_26] : memref<56x128xf32, #tpu.memory_space<vmem>>, vector<1x128xf32>
    %62 = arith.truncf %61 : vector<1x128xf32> to vector<1x128xbf16>
    %c8 = arith.constant 8 : index
    %c0_27 = arith.constant 0 : index
    %63 = vector.load %arg9[%c8, %c0_27] : memref<64x128xbf16, #tpu.memory_space<vmem>>, vector<1x128xbf16>
    tpu.vector_store %arg9[%c8, %c0_27], %62 {strides = array<i32>} : memref<64x128xbf16, #tpu.memory_space<vmem>>, vector<1x128xbf16>,
    %c1_i32_28 = arith.constant 1 : i32
    %64 = arith.addi %0, %c1_i32_28 : i32
    %65 = arith.index_cast %64 : i32 to index
    %c1_29 = arith.constant 1 : index
    %66 = memref.load %arg1[%65, %c1_29] : memref<8x8xi32, #tpu.memory_space<smem>>
    %67 = arith.index_cast %66 : i32 to index
    %c0_30 = arith.constant 0 : index
    %68 = vector.load %arg2[%67, %c0_30] : memref<56x128xf32, #tpu.memory_space<vmem>>, vector<1x128xf32>
    %69 = arith.truncf %68 : vector<1x128xf32> to vector<1x128xbf16>
    %c9 = arith.constant 9 : index
    %c0_31 = arith.constant 0 : index
    %70 = vector.load %arg9[%c9, %c0_31] : memref<64x128xbf16, #tpu.memory_space<vmem>>, vector<1x128xbf16>
    tpu.vector_store %arg9[%c9, %c0_31], %69 {strides = array<i32>} : memref<64x128xbf16, #tpu.memory_space<vmem>>, vector<1x128xbf16>,
    %c2_i32_32 = arith.constant 2 : i32
    %71 = arith.addi %0, %c2_i32_32 : i32
    %72 = arith.index_cast %71 : i32 to index
    %c1_33 = arith.constant 1 : index
    %73 = memref.load %arg1[%72, %c1_33] : memref<8x8xi32, #tpu.memory_space<smem>>
    %74 = arith.index_cast %73 : i32 to index
    %c0_34 = arith.constant 0 : index
    %75 = vector.load %arg2[%74, %c0_34] : memref<56x128xf32, #tpu.memory_space<vmem>>, vector<1x128xf32>
    %76 = arith.truncf %75 : vector<1x128xf32> to vector<1x128xbf16>
    %c10 = arith.constant 10 : index
    %c0_35 = arith.constant 0 : index
    %77 = vector.load %arg9[%c10, %c0_35] : memref<64x128xbf16, #tpu.memory_space<vmem>>, vector<1x128xbf16>
    tpu.vector_store %arg9[%c10, %c0_35], %76 {strides = array<i32>} : memref<64x128xbf16, #tpu.memory_space<vmem>>, vector<1x128xbf16>,
    %c3_i32_36 = arith.constant 3 : i32
    %78 = arith.addi %0, %c3_i32_36 : i32
    %79 = arith.index_cast %78 : i32 to index
    %c1_37 = arith.constant 1 : index
    %80 = memref.load %arg1[%79, %c1_37] : memref<8x8xi32, #tpu.memory_space<smem>>
    %81 = arith.index_cast %80 : i32 to index
    %c0_38 = arith.constant 0 : index
    %82 = vector.load %arg2[%81, %c0_38] : memref<56x128xf32, #tpu.memory_space<vmem>>, vector<1x128xf32>
    %83 = arith.truncf %82 : vector<1x128xf32> to vector<1x128xbf16>
    %c11 = arith.constant 11 : index
    %c0_39 = arith.constant 0 : index
    %84 = vector.load %arg9[%c11, %c0_39] : memref<64x128xbf16, #tpu.memory_space<vmem>>, vector<1x128xbf16>
    tpu.vector_store %arg9[%c11, %c0_39], %83 {strides = array<i32>} : memref<64x128xbf16, #tpu.memory_space<vmem>>, vector<1x128xbf16>,
    %c4_i32_40 = arith.constant 4 : i32
    %85 = arith.addi %0, %c4_i32_40 : i32
    %86 = arith.index_cast %85 : i32 to index
    %c1_41 = arith.constant 1 : index
    %87 = memref.load %arg1[%86, %c1_41] : memref<8x8xi32, #tpu.memory_space<smem>>
    %88 = arith.index_cast %87 : i32 to index
    %c0_42 = arith.constant 0 : index
    %89 = vector.load %arg2[%88, %c0_42] : memref<56x128xf32, #tpu.memory_space<vmem>>, vector<1x128xf32>
    %90 = arith.truncf %89 : vector<1x128xf32> to vector<1x128xbf16>
    %c12 = arith.constant 12 : index
    %c0_43 = arith.constant 0 : index
    %91 = vector.load %arg9[%c12, %c0_43] : memref<64x128xbf16, #tpu.memory_space<vmem>>, vector<1x128xbf16>
    tpu.vector_store %arg9[%c12, %c0_43], %90 {strides = array<i32>} : memref<64x128xbf16, #tpu.memory_space<vmem>>, vector<1x128xbf16>,
    %c5_i32_44 = arith.constant 5 : i32
    %92 = arith.addi %0, %c5_i32_44 : i32
    %93 = arith.index_cast %92 : i32 to index
    %c1_45 = arith.constant 1 : index
    %94 = memref.load %arg1[%93, %c1_45] : memref<8x8xi32, #tpu.memory_space<smem>>
    %95 = arith.index_cast %94 : i32 to index
    %c0_46 = arith.constant 0 : index
    %96 = vector.load %arg2[%95, %c0_46] : memref<56x128xf32, #tpu.memory_space<vmem>>, vector<1x128xf32>
    %97 = arith.truncf %96 : vector<1x128xf32> to vector<1x128xbf16>
    %c13 = arith.constant 13 : index
    %c0_47 = arith.constant 0 : index
    %98 = vector.load %arg9[%c13, %c0_47] : memref<64x128xbf16, #tpu.memory_space<vmem>>, vector<1x128xbf16>
    tpu.vector_store %arg9[%c13, %c0_47], %97 {strides = array<i32>} : memref<64x128xbf16, #tpu.memory_space<vmem>>, vector<1x128xbf16>,
    %c6_i32_48 = arith.constant 6 : i32
    %99 = arith.addi %0, %c6_i32_48 : i32
    %100 = arith.index_cast %99 : i32 to index
    %c1_49 = arith.constant 1 : index
    %101 = memref.load %arg1[%100, %c1_49] : memref<8x8xi32, #tpu.memory_space<smem>>
    %102 = arith.index_cast %101 : i32 to index
    %c0_50 = arith.constant 0 : index
    %103 = vector.load %arg2[%102, %c0_50] : memref<56x128xf32, #tpu.memory_space<vmem>>, vector<1x128xf32>
    %104 = arith.truncf %103 : vector<1x128xf32> to vector<1x128xbf16>
    %c14 = arith.constant 14 : index
    %c0_51 = arith.constant 0 : index
    %105 = vector.load %arg9[%c14, %c0_51] : memref<64x128xbf16, #tpu.memory_space<vmem>>, vector<1x128xbf16>
    tpu.vector_store %arg9[%c14, %c0_51], %104 {strides = array<i32>} : memref<64x128xbf16, #tpu.memory_space<vmem>>, vector<1x128xbf16>,
    %c7_i32_52 = arith.constant 7 : i32
    %106 = arith.addi %0, %c7_i32_52 : i32
    %107 = arith.index_cast %106 : i32 to index
    %c1_53 = arith.constant 1 : index
    %108 = memref.load %arg1[%107, %c1_53] : memref<8x8xi32, #tpu.memory_space<smem>>
    %109 = arith.index_cast %108 : i32 to index
    %c0_54 = arith.constant 0 : index
    %110 = vector.load %arg2[%109, %c0_54] : memref<56x128xf32, #tpu.memory_space<vmem>>, vector<1x128xf32>
    %111 = arith.truncf %110 : vector<1x128xf32> to vector<1x128xbf16>
    %c15 = arith.constant 15 : index
    %c0_55 = arith.constant 0 : index
    %112 = vector.load %arg9[%c15, %c0_55] : memref<64x128xbf16, #tpu.memory_space<vmem>>, vector<1x128xbf16>
    tpu.vector_store %arg9[%c15, %c0_55], %111 {strides = array<i32>} : memref<64x128xbf16, #tpu.memory_space<vmem>>, vector<1x128xbf16>,
    %c0_i32_56 = arith.constant 0 : i32
    %113 = arith.addi %0, %c0_i32_56 : i32
    %114 = arith.index_cast %113 : i32 to index
    %c2_57 = arith.constant 2 : index
    %115 = memref.load %arg1[%114, %c2_57] : memref<8x8xi32, #tpu.memory_space<smem>>
    %116 = arith.index_cast %115 : i32 to index
    %c0_58 = arith.constant 0 : index
    %117 = vector.load %arg2[%116, %c0_58] : memref<56x128xf32, #tpu.memory_space<vmem>>, vector<1x128xf32>
    %118 = arith.truncf %117 : vector<1x128xf32> to vector<1x128xbf16>
    %c16 = arith.constant 16 : index
    %c0_59 = arith.constant 0 : index
    %119 = vector.load %arg9[%c16, %c0_59] : memref<64x128xbf16, #tpu.memory_space<vmem>>, vector<1x128xbf16>
    tpu.vector_store %arg9[%c16, %c0_59], %118 {strides = array<i32>} : memref<64x128xbf16, #tpu.memory_space<vmem>>, vector<1x128xbf16>,
    %c1_i32_60 = arith.constant 1 : i32
    %120 = arith.addi %0, %c1_i32_60 : i32
    %121 = arith.index_cast %120 : i32 to index
    %c2_61 = arith.constant 2 : index
    %122 = memref.load %arg1[%121, %c2_61] : memref<8x8xi32, #tpu.memory_space<smem>>
    %123 = arith.index_cast %122 : i32 to index
    %c0_62 = arith.constant 0 : index
    %124 = vector.load %arg2[%123, %c0_62] : memref<56x128xf32, #tpu.memory_space<vmem>>, vector<1x128xf32>
    %125 = arith.truncf %124 : vector<1x128xf32> to vector<1x128xbf16>
    %c17 = arith.constant 17 : index
    %c0_63 = arith.constant 0 : index
    %126 = vector.load %arg9[%c17, %c0_63] : memref<64x128xbf16, #tpu.memory_space<vmem>>, vector<1x128xbf16>
    tpu.vector_store %arg9[%c17, %c0_63], %125 {strides = array<i32>} : memref<64x128xbf16, #tpu.memory_space<vmem>>, vector<1x128xbf16>,
    %c2_i32_64 = arith.constant 2 : i32
    %127 = arith.addi %0, %c2_i32_64 : i32
    %128 = arith.index_cast %127 : i32 to index
    %c2_65 = arith.constant 2 : index
    %129 = memref.load %arg1[%128, %c2_65] : memref<8x8xi32, #tpu.memory_space<smem>>
    %130 = arith.index_cast %129 : i32 to index
    %c0_66 = arith.constant 0 : index
    %131 = vector.load %arg2[%130, %c0_66] : memref<56x128xf32, #tpu.memory_space<vmem>>, vector<1x128xf32>
    %132 = arith.truncf %131 : vector<1x128xf32> to vector<1x128xbf16>
    %c18 = arith.constant 18 : index
    %c0_67 = arith.constant 0 : index
    %133 = vector.load %arg9[%c18, %c0_67] : memref<64x128xbf16, #tpu.memory_space<vmem>>, vector<1x128xbf16>
    tpu.vector_store %arg9[%c18, %c0_67], %132 {strides = array<i32>} : memref<64x128xbf16, #tpu.memory_space<vmem>>, vector<1x128xbf16>,
    %c3_i32_68 = arith.constant 3 : i32
    %134 = arith.addi %0, %c3_i32_68 : i32
    %135 = arith.index_cast %134 : i32 to index
    %c2_69 = arith.constant 2 : index
    %136 = memref.load %arg1[%135, %c2_69] : memref<8x8xi32, #tpu.memory_space<smem>>
    %137 = arith.index_cast %136 : i32 to index
    %c0_70 = arith.constant 0 : index
    %138 = vector.load %arg2[%137, %c0_70] : memref<56x128xf32, #tpu.memory_space<vmem>>, vector<1x128xf32>
    %139 = arith.truncf %138 : vector<1x128xf32> to vector<1x128xbf16>
    %c19 = arith.constant 19 : index
    %c0_71 = arith.constant 0 : index
    %140 = vector.load %arg9[%c19, %c0_71] : memref<64x128xbf16, #tpu.memory_space<vmem>>, vector<1x128xbf16>
    tpu.vector_store %arg9[%c19, %c0_71], %139 {strides = array<i32>} : memref<64x128xbf16, #tpu.memory_space<vmem>>, vector<1x128xbf16>,
    %c4_i32_72 = arith.constant 4 : i32
    %141 = arith.addi %0, %c4_i32_72 : i32
    %142 = arith.index_cast %141 : i32 to index
    %c2_73 = arith.constant 2 : index
    %143 = memref.load %arg1[%142, %c2_73] : memref<8x8xi32, #tpu.memory_space<smem>>
    %144 = arith.index_cast %143 : i32 to index
    %c0_74 = arith.constant 0 : index
    %145 = vector.load %arg2[%144, %c0_74] : memref<56x128xf32, #tpu.memory_space<vmem>>, vector<1x128xf32>
    %146 = arith.truncf %145 : vector<1x128xf32> to vector<1x128xbf16>
    %c20 = arith.constant 20 : index
    %c0_75 = arith.constant 0 : index
    %147 = vector.load %arg9[%c20, %c0_75] : memref<64x128xbf16, #tpu.memory_space<vmem>>, vector<1x128xbf16>
    tpu.vector_store %arg9[%c20, %c0_75], %146 {strides = array<i32>} : memref<64x128xbf16, #tpu.memory_space<vmem>>, vector<1x128xbf16>,
    %c5_i32_76 = arith.constant 5 : i32
    %148 = arith.addi %0, %c5_i32_76 : i32
    %149 = arith.index_cast %148 : i32 to index
    %c2_77 = arith.constant 2 : index
    %150 = memref.load %arg1[%149, %c2_77] : memref<8x8xi32, #tpu.memory_space<smem>>
    %151 = arith.index_cast %150 : i32 to index
    %c0_78 = arith.constant 0 : index
    %152 = vector.load %arg2[%151, %c0_78] : memref<56x128xf32, #tpu.memory_space<vmem>>, vector<1x128xf32>
    %153 = arith.truncf %152 : vector<1x128xf32> to vector<1x128xbf16>
    %c21 = arith.constant 21 : index
    %c0_79 = arith.constant 0 : index
    %154 = vector.load %arg9[%c21, %c0_79] : memref<64x128xbf16, #tpu.memory_space<vmem>>, vector<1x128xbf16>
    tpu.vector_store %arg9[%c21, %c0_79], %153 {strides = array<i32>} : memref<64x128xbf16, #tpu.memory_space<vmem>>, vector<1x128xbf16>,
    %c6_i32_80 = arith.constant 6 : i32
    %155 = arith.addi %0, %c6_i32_80 : i32
    %156 = arith.index_cast %155 : i32 to index
    %c2_81 = arith.constant 2 : index
    %157 = memref.load %arg1[%156, %c2_81] : memref<8x8xi32, #tpu.memory_space<smem>>
    %158 = arith.index_cast %157 : i32 to index
    %c0_82 = arith.constant 0 : index
    %159 = vector.load %arg2[%158, %c0_82] : memref<56x128xf32, #tpu.memory_space<vmem>>, vector<1x128xf32>
    %160 = arith.truncf %159 : vector<1x128xf32> to vector<1x128xbf16>
    %c22 = arith.constant 22 : index
    %c0_83 = arith.constant 0 : index
    %161 = vector.load %arg9[%c22, %c0_83] : memref<64x128xbf16, #tpu.memory_space<vmem>>, vector<1x128xbf16>
    tpu.vector_store %arg9[%c22, %c0_83], %160 {strides = array<i32>} : memref<64x128xbf16, #tpu.memory_space<vmem>>, vector<1x128xbf16>,
    %c7_i32_84 = arith.constant 7 : i32
    %162 = arith.addi %0, %c7_i32_84 : i32
    %163 = arith.index_cast %162 : i32 to index
    %c2_85 = arith.constant 2 : index
    %164 = memref.load %arg1[%163, %c2_85] : memref<8x8xi32, #tpu.memory_space<smem>>
    %165 = arith.index_cast %164 : i32 to index
    %c0_86 = arith.constant 0 : index
    %166 = vector.load %arg2[%165, %c0_86] : memref<56x128xf32, #tpu.memory_space<vmem>>, vector<1x128xf32>
    %167 = arith.truncf %166 : vector<1x128xf32> to vector<1x128xbf16>
    %c23 = arith.constant 23 : index
    %c0_87 = arith.constant 0 : index
    %168 = vector.load %arg9[%c23, %c0_87] : memref<64x128xbf16, #tpu.memory_space<vmem>>, vector<1x128xbf16>
    tpu.vector_store %arg9[%c23, %c0_87], %167 {strides = array<i32>} : memref<64x128xbf16, #tpu.memory_space<vmem>>, vector<1x128xbf16>,
    %c0_i32_88 = arith.constant 0 : i32
    %169 = arith.addi %0, %c0_i32_88 : i32
    %170 = arith.index_cast %169 : i32 to index
    %c3_89 = arith.constant 3 : index
    %171 = memref.load %arg1[%170, %c3_89] : memref<8x8xi32, #tpu.memory_space<smem>>
    %172 = arith.index_cast %171 : i32 to index
    %c0_90 = arith.constant 0 : index
    %173 = vector.load %arg2[%172, %c0_90] : memref<56x128xf32, #tpu.memory_space<vmem>>, vector<1x128xf32>
    %174 = arith.truncf %173 : vector<1x128xf32> to vector<1x128xbf16>
    %c24 = arith.constant 24 : index
    %c0_91 = arith.constant 0 : index
    %175 = vector.load %arg9[%c24, %c0_91] : memref<64x128xbf16, #tpu.memory_space<vmem>>, vector<1x128xbf16>
    tpu.vector_store %arg9[%c24, %c0_91], %174 {strides = array<i32>} : memref<64x128xbf16, #tpu.memory_space<vmem>>, vector<1x128xbf16>,
    %c1_i32_92 = arith.constant 1 : i32
    %176 = arith.addi %0, %c1_i32_92 : i32
    %177 = arith.index_cast %176 : i32 to index
    %c3_93 = arith.constant 3 : index
    %178 = memref.load %arg1[%177, %c3_93] : memref<8x8xi32, #tpu.memory_space<smem>>
    %179 = arith.index_cast %178 : i32 to index
    %c0_94 = arith.constant 0 : index
    %180 = vector.load %arg2[%179, %c0_94] : memref<56x128xf32, #tpu.memory_space<vmem>>, vector<1x128xf32>
    %181 = arith.truncf %180 : vector<1x128xf32> to vector<1x128xbf16>
    %c25 = arith.constant 25 : index
    %c0_95 = arith.constant 0 : index
    %182 = vector.load %arg9[%c25, %c0_95] : memref<64x128xbf16, #tpu.memory_space<vmem>>, vector<1x128xbf16>
    tpu.vector_store %arg9[%c25, %c0_95], %181 {strides = array<i32>} : memref<64x128xbf16, #tpu.memory_space<vmem>>, vector<1x128xbf16>,
    %c2_i32_96 = arith.constant 2 : i32
    %183 = arith.addi %0, %c2_i32_96 : i32
    %184 = arith.index_cast %183 : i32 to index
    %c3_97 = arith.constant 3 : index
    %185 = memref.load %arg1[%184, %c3_97] : memref<8x8xi32, #tpu.memory_space<smem>>
    %186 = arith.index_cast %185 : i32 to index
    %c0_98 = arith.constant 0 : index
    %187 = vector.load %arg2[%186, %c0_98] : memref<56x128xf32, #tpu.memory_space<vmem>>, vector<1x128xf32>
    %188 = arith.truncf %187 : vector<1x128xf32> to vector<1x128xbf16>
    %c26 = arith.constant 26 : index
    %c0_99 = arith.constant 0 : index
    %189 = vector.load %arg9[%c26, %c0_99] : memref<64x128xbf16, #tpu.memory_space<vmem>>, vector<1x128xbf16>
    tpu.vector_store %arg9[%c26, %c0_99], %188 {strides = array<i32>} : memref<64x128xbf16, #tpu.memory_space<vmem>>, vector<1x128xbf16>,
    %c3_i32_100 = arith.constant 3 : i32
    %190 = arith.addi %0, %c3_i32_100 : i32
    %191 = arith.index_cast %190 : i32 to index
    %c3_101 = arith.constant 3 : index
    %192 = memref.load %arg1[%191, %c3_101] : memref<8x8xi32, #tpu.memory_space<smem>>
    %193 = arith.index_cast %192 : i32 to index
    %c0_102 = arith.constant 0 : index
    %194 = vector.load %arg2[%193, %c0_102] : memref<56x128xf32, #tpu.memory_space<vmem>>, vector<1x128xf32>
    %195 = arith.truncf %194 : vector<1x128xf32> to vector<1x128xbf16>
    %c27 = arith.constant 27 : index
    %c0_103 = arith.constant 0 : index
    %196 = vector.load %arg9[%c27, %c0_103] : memref<64x128xbf16, #tpu.memory_space<vmem>>, vector<1x128xbf16>
    tpu.vector_store %arg9[%c27, %c0_103], %195 {strides = array<i32>} : memref<64x128xbf16, #tpu.memory_space<vmem>>, vector<1x128xbf16>,
    %c4_i32_104 = arith.constant 4 : i32
    %197 = arith.addi %0, %c4_i32_104 : i32
    %198 = arith.index_cast %197 : i32 to index
    %c3_105 = arith.constant 3 : index
    %199 = memref.load %arg1[%198, %c3_105] : memref<8x8xi32, #tpu.memory_space<smem>>
    %200 = arith.index_cast %199 : i32 to index
    %c0_106 = arith.constant 0 : index
    %201 = vector.load %arg2[%200, %c0_106] : memref<56x128xf32, #tpu.memory_space<vmem>>, vector<1x128xf32>
    %202 = arith.truncf %201 : vector<1x128xf32> to vector<1x128xbf16>
    %c28 = arith.constant 28 : index
    %c0_107 = arith.constant 0 : index
    %203 = vector.load %arg9[%c28, %c0_107] : memref<64x128xbf16, #tpu.memory_space<vmem>>, vector<1x128xbf16>
    tpu.vector_store %arg9[%c28, %c0_107], %202 {strides = array<i32>} : memref<64x128xbf16, #tpu.memory_space<vmem>>, vector<1x128xbf16>,
    %c5_i32_108 = arith.constant 5 : i32
    %204 = arith.addi %0, %c5_i32_108 : i32
    %205 = arith.index_cast %204 : i32 to index
    %c3_109 = arith.constant 3 : index
    %206 = memref.load %arg1[%205, %c3_109] : memref<8x8xi32, #tpu.memory_space<smem>>
    %207 = arith.index_cast %206 : i32 to index
    %c0_110 = arith.constant 0 : index
    %208 = vector.load %arg2[%207, %c0_110] : memref<56x128xf32, #tpu.memory_space<vmem>>, vector<1x128xf32>
    %209 = arith.truncf %208 : vector<1x128xf32> to vector<1x128xbf16>
    %c29 = arith.constant 29 : index
    %c0_111 = arith.constant 0 : index
    %210 = vector.load %arg9[%c29, %c0_111] : memref<64x128xbf16, #tpu.memory_space<vmem>>, vector<1x128xbf16>
    tpu.vector_store %arg9[%c29, %c0_111], %209 {strides = array<i32>} : memref<64x128xbf16, #tpu.memory_space<vmem>>, vector<1x128xbf16>,
    %c6_i32_112 = arith.constant 6 : i32
    %211 = arith.addi %0, %c6_i32_112 : i32
    %212 = arith.index_cast %211 : i32 to index
    %c3_113 = arith.constant 3 : index
    %213 = memref.load %arg1[%212, %c3_113] : memref<8x8xi32, #tpu.memory_space<smem>>
    %214 = arith.index_cast %213 : i32 to index
    %c0_114 = arith.constant 0 : index
    %215 = vector.load %arg2[%214, %c0_114] : memref<56x128xf32, #tpu.memory_space<vmem>>, vector<1x128xf32>
    %216 = arith.truncf %215 : vector<1x128xf32> to vector<1x128xbf16>
    %c30 = arith.constant 30 : index
    %c0_115 = arith.constant 0 : index
    %217 = vector.load %arg9[%c30, %c0_115] : memref<64x128xbf16, #tpu.memory_space<vmem>>, vector<1x128xbf16>
    tpu.vector_store %arg9[%c30, %c0_115], %216 {strides = array<i32>} : memref<64x128xbf16, #tpu.memory_space<vmem>>, vector<1x128xbf16>,
    %c7_i32_116 = arith.constant 7 : i32
    %218 = arith.addi %0, %c7_i32_116 : i32
    %219 = arith.index_cast %218 : i32 to index
    %c3_117 = arith.constant 3 : index
    %220 = memref.load %arg1[%219, %c3_117] : memref<8x8xi32, #tpu.memory_space<smem>>
    %221 = arith.index_cast %220 : i32 to index
    %c0_118 = arith.constant 0 : index
    %222 = vector.load %arg2[%221, %c0_118] : memref<56x128xf32, #tpu.memory_space<vmem>>, vector<1x128xf32>
    %223 = arith.truncf %222 : vector<1x128xf32> to vector<1x128xbf16>
    %c31 = arith.constant 31 : index
    %c0_119 = arith.constant 0 : index
    %224 = vector.load %arg9[%c31, %c0_119] : memref<64x128xbf16, #tpu.memory_space<vmem>>, vector<1x128xbf16>
    tpu.vector_store %arg9[%c31, %c0_119], %223 {strides = array<i32>} : memref<64x128xbf16, #tpu.memory_space<vmem>>, vector<1x128xbf16>,
    %c0_i32_120 = arith.constant 0 : i32
    %225 = arith.addi %0, %c0_i32_120 : i32
    %226 = arith.index_cast %225 : i32 to index
    %c4_121 = arith.constant 4 : index
    %227 = memref.load %arg1[%226, %c4_121] : memref<8x8xi32, #tpu.memory_space<smem>>
    %228 = arith.index_cast %227 : i32 to index
    %c0_122 = arith.constant 0 : index
    %229 = vector.load %arg2[%228, %c0_122] : memref<56x128xf32, #tpu.memory_space<vmem>>, vector<1x128xf32>
    %230 = arith.truncf %229 : vector<1x128xf32> to vector<1x128xbf16>
    %c32 = arith.constant 32 : index
    %c0_123 = arith.constant 0 : index
    %231 = vector.load %arg9[%c32, %c0_123] : memref<64x128xbf16, #tpu.memory_space<vmem>>, vector<1x128xbf16>
    tpu.vector_store %arg9[%c32, %c0_123], %230 {strides = array<i32>} : memref<64x128xbf16, #tpu.memory_space<vmem>>, vector<1x128xbf16>,
    %c1_i32_124 = arith.constant 1 : i32
    %232 = arith.addi %0, %c1_i32_124 : i32
    %233 = arith.index_cast %232 : i32 to index
    %c4_125 = arith.constant 4 : index
    %234 = memref.load %arg1[%233, %c4_125] : memref<8x8xi32, #tpu.memory_space<smem>>
    %235 = arith.index_cast %234 : i32 to index
    %c0_126 = arith.constant 0 : index
    %236 = vector.load %arg2[%235, %c0_126] : memref<56x128xf32, #tpu.memory_space<vmem>>, vector<1x128xf32>
    %237 = arith.truncf %236 : vector<1x128xf32> to vector<1x128xbf16>
    %c33 = arith.constant 33 : index
    %c0_127 = arith.constant 0 : index
    %238 = vector.load %arg9[%c33, %c0_127] : memref<64x128xbf16, #tpu.memory_space<vmem>>, vector<1x128xbf16>
    tpu.vector_store %arg9[%c33, %c0_127], %237 {strides = array<i32>} : memref<64x128xbf16, #tpu.memory_space<vmem>>, vector<1x128xbf16>,
    %c2_i32_128 = arith.constant 2 : i32
    %239 = arith.addi %0, %c2_i32_128 : i32
    %240 = arith.index_cast %239 : i32 to index
    %c4_129 = arith.constant 4 : index
    %241 = memref.load %arg1[%240, %c4_129] : memref<8x8xi32, #tpu.memory_space<smem>>
    %242 = arith.index_cast %241 : i32 to index
    %c0_130 = arith.constant 0 : index
    %243 = vector.load %arg2[%242, %c0_130] : memref<56x128xf32, #tpu.memory_space<vmem>>, vector<1x128xf32>
    %244 = arith.truncf %243 : vector<1x128xf32> to vector<1x128xbf16>
    %c34 = arith.constant 34 : index
    %c0_131 = arith.constant 0 : index
    %245 = vector.load %arg9[%c34, %c0_131] : memref<64x128xbf16, #tpu.memory_space<vmem>>, vector<1x128xbf16>
    tpu.vector_store %arg9[%c34, %c0_131], %244 {strides = array<i32>} : memref<64x128xbf16, #tpu.memory_space<vmem>>, vector<1x128xbf16>,
    %c3_i32_132 = arith.constant 3 : i32
    %246 = arith.addi %0, %c3_i32_132 : i32
    %247 = arith.index_cast %246 : i32 to index
    %c4_133 = arith.constant 4 : index
    %248 = memref.load %arg1[%247, %c4_133] : memref<8x8xi32, #tpu.memory_space<smem>>
    %249 = arith.index_cast %248 : i32 to index
    %c0_134 = arith.constant 0 : index
    %250 = vector.load %arg2[%249, %c0_134] : memref<56x128xf32, #tpu.memory_space<vmem>>, vector<1x128xf32>
    %251 = arith.truncf %250 : vector<1x128xf32> to vector<1x128xbf16>
    %c35 = arith.constant 35 : index
    %c0_135 = arith.constant 0 : index
    %252 = vector.load %arg9[%c35, %c0_135] : memref<64x128xbf16, #tpu.memory_space<vmem>>, vector<1x128xbf16>
    tpu.vector_store %arg9[%c35, %c0_135], %251 {strides = array<i32>} : memref<64x128xbf16, #tpu.memory_space<vmem>>, vector<1x128xbf16>,
    %c4_i32_136 = arith.constant 4 : i32
    %253 = arith.addi %0, %c4_i32_136 : i32
    %254 = arith.index_cast %253 : i32 to index
    %c4_137 = arith.constant 4 : index
    %255 = memref.load %arg1[%254, %c4_137] : memref<8x8xi32, #tpu.memory_space<smem>>
    %256 = arith.index_cast %255 : i32 to index
    %c0_138 = arith.constant 0 : index
    %257 = vector.load %arg2[%256, %c0_138] : memref<56x128xf32, #tpu.memory_space<vmem>>, vector<1x128xf32>
    %258 = arith.truncf %257 : vector<1x128xf32> to vector<1x128xbf16>
    %c36 = arith.constant 36 : index
    %c0_139 = arith.constant 0 : index
    %259 = vector.load %arg9[%c36, %c0_139] : memref<64x128xbf16, #tpu.memory_space<vmem>>, vector<1x128xbf16>
    tpu.vector_store %arg9[%c36, %c0_139], %258 {strides = array<i32>} : memref<64x128xbf16, #tpu.memory_space<vmem>>, vector<1x128xbf16>,
    %c5_i32_140 = arith.constant 5 : i32
    %260 = arith.addi %0, %c5_i32_140 : i32
    %261 = arith.index_cast %260 : i32 to index
    %c4_141 = arith.constant 4 : index
    %262 = memref.load %arg1[%261, %c4_141] : memref<8x8xi32, #tpu.memory_space<smem>>
    %263 = arith.index_cast %262 : i32 to index
    %c0_142 = arith.constant 0 : index
    %264 = vector.load %arg2[%263, %c0_142] : memref<56x128xf32, #tpu.memory_space<vmem>>, vector<1x128xf32>
    %265 = arith.truncf %264 : vector<1x128xf32> to vector<1x128xbf16>
    %c37 = arith.constant 37 : index
    %c0_143 = arith.constant 0 : index
    %266 = vector.load %arg9[%c37, %c0_143] : memref<64x128xbf16, #tpu.memory_space<vmem>>, vector<1x128xbf16>
    tpu.vector_store %arg9[%c37, %c0_143], %265 {strides = array<i32>} : memref<64x128xbf16, #tpu.memory_space<vmem>>, vector<1x128xbf16>,
    %c6_i32_144 = arith.constant 6 : i32
    %267 = arith.addi %0, %c6_i32_144 : i32
    %268 = arith.index_cast %267 : i32 to index
    %c4_145 = arith.constant 4 : index
    %269 = memref.load %arg1[%268, %c4_145] : memref<8x8xi32, #tpu.memory_space<smem>>
    %270 = arith.index_cast %269 : i32 to index
    %c0_146 = arith.constant 0 : index
    %271 = vector.load %arg2[%270, %c0_146] : memref<56x128xf32, #tpu.memory_space<vmem>>, vector<1x128xf32>
    %272 = arith.truncf %271 : vector<1x128xf32> to vector<1x128xbf16>
    %c38 = arith.constant 38 : index
    %c0_147 = arith.constant 0 : index
    %273 = vector.load %arg9[%c38, %c0_147] : memref<64x128xbf16, #tpu.memory_space<vmem>>, vector<1x128xbf16>
    tpu.vector_store %arg9[%c38, %c0_147], %272 {strides = array<i32>} : memref<64x128xbf16, #tpu.memory_space<vmem>>, vector<1x128xbf16>,
    %c7_i32_148 = arith.constant 7 : i32
    %274 = arith.addi %0, %c7_i32_148 : i32
    %275 = arith.index_cast %274 : i32 to index
    %c4_149 = arith.constant 4 : index
    %276 = memref.load %arg1[%275, %c4_149] : memref<8x8xi32, #tpu.memory_space<smem>>
    %277 = arith.index_cast %276 : i32 to index
    %c0_150 = arith.constant 0 : index
    %278 = vector.load %arg2[%277, %c0_150] : memref<56x128xf32, #tpu.memory_space<vmem>>, vector<1x128xf32>
    %279 = arith.truncf %278 : vector<1x128xf32> to vector<1x128xbf16>
    %c39 = arith.constant 39 : index
    %c0_151 = arith.constant 0 : index
    %280 = vector.load %arg9[%c39, %c0_151] : memref<64x128xbf16, #tpu.memory_space<vmem>>, vector<1x128xbf16>
    tpu.vector_store %arg9[%c39, %c0_151], %279 {strides = array<i32>} : memref<64x128xbf16, #tpu.memory_space<vmem>>, vector<1x128xbf16>,
    %c0_i32_152 = arith.constant 0 : i32
    %281 = arith.addi %0, %c0_i32_152 : i32
    %282 = arith.index_cast %281 : i32 to index
    %c5_153 = arith.constant 5 : index
    %283 = memref.load %arg1[%282, %c5_153] : memref<8x8xi32, #tpu.memory_space<smem>>
    %284 = arith.index_cast %283 : i32 to index
    %c0_154 = arith.constant 0 : index
    %285 = vector.load %arg2[%284, %c0_154] : memref<56x128xf32, #tpu.memory_space<vmem>>, vector<1x128xf32>
    %286 = arith.truncf %285 : vector<1x128xf32> to vector<1x128xbf16>
    %c40 = arith.constant 40 : index
    %c0_155 = arith.constant 0 : index
    %287 = vector.load %arg9[%c40, %c0_155] : memref<64x128xbf16, #tpu.memory_space<vmem>>, vector<1x128xbf16>
    tpu.vector_store %arg9[%c40, %c0_155], %286 {strides = array<i32>} : memref<64x128xbf16, #tpu.memory_space<vmem>>, vector<1x128xbf16>,
    %c1_i32_156 = arith.constant 1 : i32
    %288 = arith.addi %0, %c1_i32_156 : i32
    %289 = arith.index_cast %288 : i32 to index
    %c5_157 = arith.constant 5 : index
    %290 = memref.load %arg1[%289, %c5_157] : memref<8x8xi32, #tpu.memory_space<smem>>
    %291 = arith.index_cast %290 : i32 to index
    %c0_158 = arith.constant 0 : index
    %292 = vector.load %arg2[%291, %c0_158] : memref<56x128xf32, #tpu.memory_space<vmem>>, vector<1x128xf32>
    %293 = arith.truncf %292 : vector<1x128xf32> to vector<1x128xbf16>
    %c41 = arith.constant 41 : index
    %c0_159 = arith.constant 0 : index
    %294 = vector.load %arg9[%c41, %c0_159] : memref<64x128xbf16, #tpu.memory_space<vmem>>, vector<1x128xbf16>
    tpu.vector_store %arg9[%c41, %c0_159], %293 {strides = array<i32>} : memref<64x128xbf16, #tpu.memory_space<vmem>>, vector<1x128xbf16>,
    %c2_i32_160 = arith.constant 2 : i32
    %295 = arith.addi %0, %c2_i32_160 : i32
    %296 = arith.index_cast %295 : i32 to index
    %c5_161 = arith.constant 5 : index
    %297 = memref.load %arg1[%296, %c5_161] : memref<8x8xi32, #tpu.memory_space<smem>>
    %298 = arith.index_cast %297 : i32 to index
    %c0_162 = arith.constant 0 : index
    %299 = vector.load %arg2[%298, %c0_162] : memref<56x128xf32, #tpu.memory_space<vmem>>, vector<1x128xf32>
    %300 = arith.truncf %299 : vector<1x128xf32> to vector<1x128xbf16>
    %c42 = arith.constant 42 : index
    %c0_163 = arith.constant 0 : index
    %301 = vector.load %arg9[%c42, %c0_163] : memref<64x128xbf16, #tpu.memory_space<vmem>>, vector<1x128xbf16>
    tpu.vector_store %arg9[%c42, %c0_163], %300 {strides = array<i32>} : memref<64x128xbf16, #tpu.memory_space<vmem>>, vector<1x128xbf16>,
    %c3_i32_164 = arith.constant 3 : i32
    %302 = arith.addi %0, %c3_i32_164 : i32
    %303 = arith.index_cast %302 : i32 to index
    %c5_165 = arith.constant 5 : index
    %304 = memref.load %arg1[%303, %c5_165] : memref<8x8xi32, #tpu.memory_space<smem>>
    %305 = arith.index_cast %304 : i32 to index
    %c0_166 = arith.constant 0 : index
    %306 = vector.load %arg2[%305, %c0_166] : memref<56x128xf32, #tpu.memory_space<vmem>>, vector<1x128xf32>
    %307 = arith.truncf %306 : vector<1x128xf32> to vector<1x128xbf16>
    %c43 = arith.constant 43 : index
    %c0_167 = arith.constant 0 : index
    %308 = vector.load %arg9[%c43, %c0_167] : memref<64x128xbf16, #tpu.memory_space<vmem>>, vector<1x128xbf16>
    tpu.vector_store %arg9[%c43, %c0_167], %307 {strides = array<i32>} : memref<64x128xbf16, #tpu.memory_space<vmem>>, vector<1x128xbf16>,
    %c4_i32_168 = arith.constant 4 : i32
    %309 = arith.addi %0, %c4_i32_168 : i32
    %310 = arith.index_cast %309 : i32 to index
    %c5_169 = arith.constant 5 : index
    %311 = memref.load %arg1[%310, %c5_169] : memref<8x8xi32, #tpu.memory_space<smem>>
    %312 = arith.index_cast %311 : i32 to index
    %c0_170 = arith.constant 0 : index
    %313 = vector.load %arg2[%312, %c0_170] : memref<56x128xf32, #tpu.memory_space<vmem>>, vector<1x128xf32>
    %314 = arith.truncf %313 : vector<1x128xf32> to vector<1x128xbf16>
    %c44 = arith.constant 44 : index
    %c0_171 = arith.constant 0 : index
    %315 = vector.load %arg9[%c44, %c0_171] : memref<64x128xbf16, #tpu.memory_space<vmem>>, vector<1x128xbf16>
    tpu.vector_store %arg9[%c44, %c0_171], %314 {strides = array<i32>} : memref<64x128xbf16, #tpu.memory_space<vmem>>, vector<1x128xbf16>,
    %c5_i32_172 = arith.constant 5 : i32
    %316 = arith.addi %0, %c5_i32_172 : i32
    %317 = arith.index_cast %316 : i32 to index
    %c5_173 = arith.constant 5 : index
    %318 = memref.load %arg1[%317, %c5_173] : memref<8x8xi32, #tpu.memory_space<smem>>
    %319 = arith.index_cast %318 : i32 to index
    %c0_174 = arith.constant 0 : index
    %320 = vector.load %arg2[%319, %c0_174] : memref<56x128xf32, #tpu.memory_space<vmem>>, vector<1x128xf32>
    %321 = arith.truncf %320 : vector<1x128xf32> to vector<1x128xbf16>
    %c45 = arith.constant 45 : index
    %c0_175 = arith.constant 0 : index
    %322 = vector.load %arg9[%c45, %c0_175] : memref<64x128xbf16, #tpu.memory_space<vmem>>, vector<1x128xbf16>
    tpu.vector_store %arg9[%c45, %c0_175], %321 {strides = array<i32>} : memref<64x128xbf16, #tpu.memory_space<vmem>>, vector<1x128xbf16>,
    %c6_i32_176 = arith.constant 6 : i32
    %323 = arith.addi %0, %c6_i32_176 : i32
    %324 = arith.index_cast %323 : i32 to index
    %c5_177 = arith.constant 5 : index
    %325 = memref.load %arg1[%324, %c5_177] : memref<8x8xi32, #tpu.memory_space<smem>>
    %326 = arith.index_cast %325 : i32 to index
    %c0_178 = arith.constant 0 : index
    %327 = vector.load %arg2[%326, %c0_178] : memref<56x128xf32, #tpu.memory_space<vmem>>, vector<1x128xf32>
    %328 = arith.truncf %327 : vector<1x128xf32> to vector<1x128xbf16>
    %c46 = arith.constant 46 : index
    %c0_179 = arith.constant 0 : index
    %329 = vector.load %arg9[%c46, %c0_179] : memref<64x128xbf16, #tpu.memory_space<vmem>>, vector<1x128xbf16>
    tpu.vector_store %arg9[%c46, %c0_179], %328 {strides = array<i32>} : memref<64x128xbf16, #tpu.memory_space<vmem>>, vector<1x128xbf16>,
    %c7_i32_180 = arith.constant 7 : i32
    %330 = arith.addi %0, %c7_i32_180 : i32
    %331 = arith.index_cast %330 : i32 to index
    %c5_181 = arith.constant 5 : index
    %332 = memref.load %arg1[%331, %c5_181] : memref<8x8xi32, #tpu.memory_space<smem>>
    %333 = arith.index_cast %332 : i32 to index
    %c0_182 = arith.constant 0 : index
    %334 = vector.load %arg2[%333, %c0_182] : memref<56x128xf32, #tpu.memory_space<vmem>>, vector<1x128xf32>
    %335 = arith.truncf %334 : vector<1x128xf32> to vector<1x128xbf16>
    %c47 = arith.constant 47 : index
    %c0_183 = arith.constant 0 : index
    %336 = vector.load %arg9[%c47, %c0_183] : memref<64x128xbf16, #tpu.memory_space<vmem>>, vector<1x128xbf16>
    tpu.vector_store %arg9[%c47, %c0_183], %335 {strides = array<i32>} : memref<64x128xbf16, #tpu.memory_space<vmem>>, vector<1x128xbf16>,
    %c0_i32_184 = arith.constant 0 : i32
    %337 = arith.addi %0, %c0_i32_184 : i32
    %338 = arith.index_cast %337 : i32 to index
    %c6_185 = arith.constant 6 : index
    %339 = memref.load %arg1[%338, %c6_185] : memref<8x8xi32, #tpu.memory_space<smem>>
    %340 = arith.index_cast %339 : i32 to index
    %c0_186 = arith.constant 0 : index
    %341 = vector.load %arg2[%340, %c0_186] : memref<56x128xf32, #tpu.memory_space<vmem>>, vector<1x128xf32>
    %342 = arith.truncf %341 : vector<1x128xf32> to vector<1x128xbf16>
    %c48 = arith.constant 48 : index
    %c0_187 = arith.constant 0 : index
    %343 = vector.load %arg9[%c48, %c0_187] : memref<64x128xbf16, #tpu.memory_space<vmem>>, vector<1x128xbf16>
    tpu.vector_store %arg9[%c48, %c0_187], %342 {strides = array<i32>} : memref<64x128xbf16, #tpu.memory_space<vmem>>, vector<1x128xbf16>,
    %c1_i32_188 = arith.constant 1 : i32
    %344 = arith.addi %0, %c1_i32_188 : i32
    %345 = arith.index_cast %344 : i32 to index
    %c6_189 = arith.constant 6 : index
    %346 = memref.load %arg1[%345, %c6_189] : memref<8x8xi32, #tpu.memory_space<smem>>
    %347 = arith.index_cast %346 : i32 to index
    %c0_190 = arith.constant 0 : index
    %348 = vector.load %arg2[%347, %c0_190] : memref<56x128xf32, #tpu.memory_space<vmem>>, vector<1x128xf32>
    %349 = arith.truncf %348 : vector<1x128xf32> to vector<1x128xbf16>
    %c49 = arith.constant 49 : index
    %c0_191 = arith.constant 0 : index
    %350 = vector.load %arg9[%c49, %c0_191] : memref<64x128xbf16, #tpu.memory_space<vmem>>, vector<1x128xbf16>
    tpu.vector_store %arg9[%c49, %c0_191], %349 {strides = array<i32>} : memref<64x128xbf16, #tpu.memory_space<vmem>>, vector<1x128xbf16>,
    %c2_i32_192 = arith.constant 2 : i32
    %351 = arith.addi %0, %c2_i32_192 : i32
    %352 = arith.index_cast %351 : i32 to index
    %c6_193 = arith.constant 6 : index
    %353 = memref.load %arg1[%352, %c6_193] : memref<8x8xi32, #tpu.memory_space<smem>>
    %354 = arith.index_cast %353 : i32 to index
    %c0_194 = arith.constant 0 : index
    %355 = vector.load %arg2[%354, %c0_194] : memref<56x128xf32, #tpu.memory_space<vmem>>, vector<1x128xf32>
    %356 = arith.truncf %355 : vector<1x128xf32> to vector<1x128xbf16>
    %c50 = arith.constant 50 : index
    %c0_195 = arith.constant 0 : index
    %357 = vector.load %arg9[%c50, %c0_195] : memref<64x128xbf16, #tpu.memory_space<vmem>>, vector<1x128xbf16>
    tpu.vector_store %arg9[%c50, %c0_195], %356 {strides = array<i32>} : memref<64x128xbf16, #tpu.memory_space<vmem>>, vector<1x128xbf16>,
    %c3_i32_196 = arith.constant 3 : i32
    %358 = arith.addi %0, %c3_i32_196 : i32
    %359 = arith.index_cast %358 : i32 to index
    %c6_197 = arith.constant 6 : index
    %360 = memref.load %arg1[%359, %c6_197] : memref<8x8xi32, #tpu.memory_space<smem>>
    %361 = arith.index_cast %360 : i32 to index
    %c0_198 = arith.constant 0 : index
    %362 = vector.load %arg2[%361, %c0_198] : memref<56x128xf32, #tpu.memory_space<vmem>>, vector<1x128xf32>
    %363 = arith.truncf %362 : vector<1x128xf32> to vector<1x128xbf16>
    %c51 = arith.constant 51 : index
    %c0_199 = arith.constant 0 : index
    %364 = vector.load %arg9[%c51, %c0_199] : memref<64x128xbf16, #tpu.memory_space<vmem>>, vector<1x128xbf16>
    tpu.vector_store %arg9[%c51, %c0_199], %363 {strides = array<i32>} : memref<64x128xbf16, #tpu.memory_space<vmem>>, vector<1x128xbf16>,
    %c4_i32_200 = arith.constant 4 : i32
    %365 = arith.addi %0, %c4_i32_200 : i32
    %366 = arith.index_cast %365 : i32 to index
    %c6_201 = arith.constant 6 : index
    %367 = memref.load %arg1[%366, %c6_201] : memref<8x8xi32, #tpu.memory_space<smem>>
    %368 = arith.index_cast %367 : i32 to index
    %c0_202 = arith.constant 0 : index
    %369 = vector.load %arg2[%368, %c0_202] : memref<56x128xf32, #tpu.memory_space<vmem>>, vector<1x128xf32>
    %370 = arith.truncf %369 : vector<1x128xf32> to vector<1x128xbf16>
    %c52 = arith.constant 52 : index
    %c0_203 = arith.constant 0 : index
    %371 = vector.load %arg9[%c52, %c0_203] : memref<64x128xbf16, #tpu.memory_space<vmem>>, vector<1x128xbf16>
    tpu.vector_store %arg9[%c52, %c0_203], %370 {strides = array<i32>} : memref<64x128xbf16, #tpu.memory_space<vmem>>, vector<1x128xbf16>,
    %c5_i32_204 = arith.constant 5 : i32
    %372 = arith.addi %0, %c5_i32_204 : i32
    %373 = arith.index_cast %372 : i32 to index
    %c6_205 = arith.constant 6 : index
    %374 = memref.load %arg1[%373, %c6_205] : memref<8x8xi32, #tpu.memory_space<smem>>
    %375 = arith.index_cast %374 : i32 to index
    %c0_206 = arith.constant 0 : index
    %376 = vector.load %arg2[%375, %c0_206] : memref<56x128xf32, #tpu.memory_space<vmem>>, vector<1x128xf32>
    %377 = arith.truncf %376 : vector<1x128xf32> to vector<1x128xbf16>
    %c53 = arith.constant 53 : index
    %c0_207 = arith.constant 0 : index
    %378 = vector.load %arg9[%c53, %c0_207] : memref<64x128xbf16, #tpu.memory_space<vmem>>, vector<1x128xbf16>
    tpu.vector_store %arg9[%c53, %c0_207], %377 {strides = array<i32>} : memref<64x128xbf16, #tpu.memory_space<vmem>>, vector<1x128xbf16>,
    %c6_i32_208 = arith.constant 6 : i32
    %379 = arith.addi %0, %c6_i32_208 : i32
    %380 = arith.index_cast %379 : i32 to index
    %c6_209 = arith.constant 6 : index
    %381 = memref.load %arg1[%380, %c6_209] : memref<8x8xi32, #tpu.memory_space<smem>>
    %382 = arith.index_cast %381 : i32 to index
    %c0_210 = arith.constant 0 : index
    %383 = vector.load %arg2[%382, %c0_210] : memref<56x128xf32, #tpu.memory_space<vmem>>, vector<1x128xf32>
    %384 = arith.truncf %383 : vector<1x128xf32> to vector<1x128xbf16>
    %c54 = arith.constant 54 : index
    %c0_211 = arith.constant 0 : index
    %385 = vector.load %arg9[%c54, %c0_211] : memref<64x128xbf16, #tpu.memory_space<vmem>>, vector<1x128xbf16>
    tpu.vector_store %arg9[%c54, %c0_211], %384 {strides = array<i32>} : memref<64x128xbf16, #tpu.memory_space<vmem>>, vector<1x128xbf16>,
    %c7_i32_212 = arith.constant 7 : i32
    %386 = arith.addi %0, %c7_i32_212 : i32
    %387 = arith.index_cast %386 : i32 to index
    %c6_213 = arith.constant 6 : index
    %388 = memref.load %arg1[%387, %c6_213] : memref<8x8xi32, #tpu.memory_space<smem>>
    %389 = arith.index_cast %388 : i32 to index
    %c0_214 = arith.constant 0 : index
    %390 = vector.load %arg2[%389, %c0_214] : memref<56x128xf32, #tpu.memory_space<vmem>>, vector<1x128xf32>
    %391 = arith.truncf %390 : vector<1x128xf32> to vector<1x128xbf16>
    %c55 = arith.constant 55 : index
    %c0_215 = arith.constant 0 : index
    %392 = vector.load %arg9[%c55, %c0_215] : memref<64x128xbf16, #tpu.memory_space<vmem>>, vector<1x128xbf16>
    tpu.vector_store %arg9[%c55, %c0_215], %391 {strides = array<i32>} : memref<64x128xbf16, #tpu.memory_space<vmem>>, vector<1x128xbf16>,
    %c0_i32_216 = arith.constant 0 : i32
    %393 = arith.addi %0, %c0_i32_216 : i32
    %394 = arith.index_cast %393 : i32 to index
    %c7_217 = arith.constant 7 : index
    %395 = memref.load %arg1[%394, %c7_217] : memref<8x8xi32, #tpu.memory_space<smem>>
    %396 = arith.index_cast %395 : i32 to index
    %c0_218 = arith.constant 0 : index
    %397 = vector.load %arg2[%396, %c0_218] : memref<56x128xf32, #tpu.memory_space<vmem>>, vector<1x128xf32>
    %398 = arith.truncf %397 : vector<1x128xf32> to vector<1x128xbf16>
    %c56 = arith.constant 56 : index
    %c0_219 = arith.constant 0 : index
    %399 = vector.load %arg9[%c56, %c0_219] : memref<64x128xbf16, #tpu.memory_space<vmem>>, vector<1x128xbf16>
    tpu.vector_store %arg9[%c56, %c0_219], %398 {strides = array<i32>} : memref<64x128xbf16, #tpu.memory_space<vmem>>, vector<1x128xbf16>,
    %c1_i32_220 = arith.constant 1 : i32
    %400 = arith.addi %0, %c1_i32_220 : i32
    %401 = arith.index_cast %400 : i32 to index
    %c7_221 = arith.constant 7 : index
    %402 = memref.load %arg1[%401, %c7_221] : memref<8x8xi32, #tpu.memory_space<smem>>
    %403 = arith.index_cast %402 : i32 to index
    %c0_222 = arith.constant 0 : index
    %404 = vector.load %arg2[%403, %c0_222] : memref<56x128xf32, #tpu.memory_space<vmem>>, vector<1x128xf32>
    %405 = arith.truncf %404 : vector<1x128xf32> to vector<1x128xbf16>
    %c57 = arith.constant 57 : index
    %c0_223 = arith.constant 0 : index
    %406 = vector.load %arg9[%c57, %c0_223] : memref<64x128xbf16, #tpu.memory_space<vmem>>, vector<1x128xbf16>
    tpu.vector_store %arg9[%c57, %c0_223], %405 {strides = array<i32>} : memref<64x128xbf16, #tpu.memory_space<vmem>>, vector<1x128xbf16>,
    %c2_i32_224 = arith.constant 2 : i32
    %407 = arith.addi %0, %c2_i32_224 : i32
    %408 = arith.index_cast %407 : i32 to index
    %c7_225 = arith.constant 7 : index
    %409 = memref.load %arg1[%408, %c7_225] : memref<8x8xi32, #tpu.memory_space<smem>>
    %410 = arith.index_cast %409 : i32 to index
    %c0_226 = arith.constant 0 : index
    %411 = vector.load %arg2[%410, %c0_226] : memref<56x128xf32, #tpu.memory_space<vmem>>, vector<1x128xf32>
    %412 = arith.truncf %411 : vector<1x128xf32> to vector<1x128xbf16>
    %c58 = arith.constant 58 : index
    %c0_227 = arith.constant 0 : index
    %413 = vector.load %arg9[%c58, %c0_227] : memref<64x128xbf16, #tpu.memory_space<vmem>>, vector<1x128xbf16>
    tpu.vector_store %arg9[%c58, %c0_227], %412 {strides = array<i32>} : memref<64x128xbf16, #tpu.memory_space<vmem>>, vector<1x128xbf16>,
    %c3_i32_228 = arith.constant 3 : i32
    %414 = arith.addi %0, %c3_i32_228 : i32
    %415 = arith.index_cast %414 : i32 to index
    %c7_229 = arith.constant 7 : index
    %416 = memref.load %arg1[%415, %c7_229] : memref<8x8xi32, #tpu.memory_space<smem>>
    %417 = arith.index_cast %416 : i32 to index
    %c0_230 = arith.constant 0 : index
    %418 = vector.load %arg2[%417, %c0_230] : memref<56x128xf32, #tpu.memory_space<vmem>>, vector<1x128xf32>
    %419 = arith.truncf %418 : vector<1x128xf32> to vector<1x128xbf16>
    %c59 = arith.constant 59 : index
    %c0_231 = arith.constant 0 : index
    %420 = vector.load %arg9[%c59, %c0_231] : memref<64x128xbf16, #tpu.memory_space<vmem>>, vector<1x128xbf16>
    tpu.vector_store %arg9[%c59, %c0_231], %419 {strides = array<i32>} : memref<64x128xbf16, #tpu.memory_space<vmem>>, vector<1x128xbf16>,
    %c4_i32_232 = arith.constant 4 : i32
    %421 = arith.addi %0, %c4_i32_232 : i32
    %422 = arith.index_cast %421 : i32 to index
    %c7_233 = arith.constant 7 : index
    %423 = memref.load %arg1[%422, %c7_233] : memref<8x8xi32, #tpu.memory_space<smem>>
    %424 = arith.index_cast %423 : i32 to index
    %c0_234 = arith.constant 0 : index
    %425 = vector.load %arg2[%424, %c0_234] : memref<56x128xf32, #tpu.memory_space<vmem>>, vector<1x128xf32>
    %426 = arith.truncf %425 : vector<1x128xf32> to vector<1x128xbf16>
    %c60 = arith.constant 60 : index
    %c0_235 = arith.constant 0 : index
    %427 = vector.load %arg9[%c60, %c0_235] : memref<64x128xbf16, #tpu.memory_space<vmem>>, vector<1x128xbf16>
    tpu.vector_store %arg9[%c60, %c0_235], %426 {strides = array<i32>} : memref<64x128xbf16, #tpu.memory_space<vmem>>, vector<1x128xbf16>,
    %c5_i32_236 = arith.constant 5 : i32
    %428 = arith.addi %0, %c5_i32_236 : i32
    %429 = arith.index_cast %428 : i32 to index
    %c7_237 = arith.constant 7 : index
    %430 = memref.load %arg1[%429, %c7_237] : memref<8x8xi32, #tpu.memory_space<smem>>
    %431 = arith.index_cast %430 : i32 to index
    %c0_238 = arith.constant 0 : index
    %432 = vector.load %arg2[%431, %c0_238] : memref<56x128xf32, #tpu.memory_space<vmem>>, vector<1x128xf32>
    %433 = arith.truncf %432 : vector<1x128xf32> to vector<1x128xbf16>
    %c61 = arith.constant 61 : index
    %c0_239 = arith.constant 0 : index
    %434 = vector.load %arg9[%c61, %c0_239] : memref<64x128xbf16, #tpu.memory_space<vmem>>, vector<1x128xbf16>
    tpu.vector_store %arg9[%c61, %c0_239], %433 {strides = array<i32>} : memref<64x128xbf16, #tpu.memory_space<vmem>>, vector<1x128xbf16>,
    %c6_i32_240 = arith.constant 6 : i32
    %435 = arith.addi %0, %c6_i32_240 : i32
    %436 = arith.index_cast %435 : i32 to index
    %c7_241 = arith.constant 7 : index
    %437 = memref.load %arg1[%436, %c7_241] : memref<8x8xi32, #tpu.memory_space<smem>>
    %438 = arith.index_cast %437 : i32 to index
    %c0_242 = arith.constant 0 : index
    %439 = vector.load %arg2[%438, %c0_242] : memref<56x128xf32, #tpu.memory_space<vmem>>, vector<1x128xf32>
    %440 = arith.truncf %439 : vector<1x128xf32> to vector<1x128xbf16>
    %c62 = arith.constant 62 : index
    %c0_243 = arith.constant 0 : index
    %441 = vector.load %arg9[%c62, %c0_243] : memref<64x128xbf16, #tpu.memory_space<vmem>>, vector<1x128xbf16>
    tpu.vector_store %arg9[%c62, %c0_243], %440 {strides = array<i32>} : memref<64x128xbf16, #tpu.memory_space<vmem>>, vector<1x128xbf16>,
    %c7_i32_244 = arith.constant 7 : i32
    %442 = arith.addi %0, %c7_i32_244 : i32
    %443 = arith.index_cast %442 : i32 to index
    %c7_245 = arith.constant 7 : index
    %444 = memref.load %arg1[%443, %c7_245] : memref<8x8xi32, #tpu.memory_space<smem>>
    %445 = arith.index_cast %444 : i32 to index
    %c0_246 = arith.constant 0 : index
    %446 = vector.load %arg2[%445, %c0_246] : memref<56x128xf32, #tpu.memory_space<vmem>>, vector<1x128xf32>
    %447 = arith.truncf %446 : vector<1x128xf32> to vector<1x128xbf16>
    %c63 = arith.constant 63 : index
    %c0_247 = arith.constant 0 : index
    %448 = vector.load %arg9[%c63, %c0_247] : memref<64x128xbf16, #tpu.memory_space<vmem>>, vector<1x128xbf16>
    tpu.vector_store %arg9[%c63, %c0_247], %447 {strides = array<i32>} : memref<64x128xbf16, #tpu.memory_space<vmem>>, vector<1x128xbf16>,
    %c0_248 = arith.constant 0 : index
    %c0_249 = arith.constant 0 : index
    %449 = vector.load %arg9[%c0_248, %c0_249] : memref<64x128xbf16, #tpu.memory_space<vmem>>, vector<64x128xbf16>
    %c0_250 = arith.constant 0 : index
    %c0_251 = arith.constant 0 : index
    %450 = vector.load %arg3[%c0_250, %c0_251] : memref<128x512xbf16, #tpu.memory_space<vmem>>, vector<128x512xbf16>
    %cst = arith.constant dense<0.000000e+00> : vector<64x512xf32>
    %451 = tpu.matmul %449, %450, %cst {dimension_numbers = #tpu.dot_dimension_numbers<[1], [0], [0], [1], [0, 0, 1, 1], [], []>} : vector<64x128xbf16>, vector<128x512xbf16>, vector<64x512xf32> -> vector<64x512xf32>
    %c0_252 = arith.constant 0 : index
    %c0_253 = arith.constant 0 : index
    %452 = vector.load %arg5[%c0_252, %c0_253] : memref<1x512xf32, #tpu.memory_space<vmem>>, vector<1x512xf32>
    %453 = vector.broadcast %452 : vector<1x512xf32> to vector<64x512xf32>
    %454 = arith.addf %451, %453 : vector<64x512xf32>
    %c0_254 = arith.constant 0 : index
    %c0_255 = arith.constant 0 : index
    %455 = vector.load %arg10[%c0_254, %c0_255] : memref<64x512xf32, #tpu.memory_space<vmem>>, vector<64x512xf32>
    tpu.vector_store %arg10[%c0_254, %c0_255], %454 {strides = array<i32>} : memref<64x512xf32, #tpu.memory_space<vmem>>, vector<64x512xf32>,
    %cst_256 = arith.constant 0.000000e+00 : f32
    %456 = vector.broadcast %cst_256 : f32 to vector<8x128xf32>
    %cst_257 = arith.constant 0.000000e+00 : f32
    %457 = vector.broadcast %cst_257 : f32 to vector<8x128xf32>
    %c0_258 = arith.constant 0 : index
    %c0_259 = arith.constant 0 : index
    %458 = vector.load %arg10[%c0_258, %c0_259] : memref<64x512xf32, #tpu.memory_space<vmem>>, vector<8x512xf32>
    %459 = arith.truncf %456 : vector<8x128xf32> to vector<8x128xbf16>
    %c0_260 = arith.constant 0 : index
    %c0_261 = arith.constant 0 : index
    %460 = vector.load %arg4[%c0_260, %c0_261] : memref<128x512xbf16, #tpu.memory_space<vmem>>, vector<128x512xbf16>
    %cst_262 = arith.constant dense<0.000000e+00> : vector<8x512xf32>
    %461 = tpu.matmul %459, %460, %cst_262 {dimension_numbers = #tpu.dot_dimension_numbers<[1], [0], [0], [1], [0, 0, 1, 1], [], []>} : vector<8x128xbf16>, vector<128x512xbf16>, vector<8x512xf32> -> vector<8x512xf32>
    %462 = arith.addf %458, %461 : vector<8x512xf32>
    %463 = vector.extract_strided_slice %462 {offsets = [0, 0], sizes = [8, 384], strides = [1, 1]} : vector<8x512xf32> to vector<8x384xf32>
    %464 = arith.negf %463 : vector<8x384xf32>
    %465 = math.exp %464 : vector<8x384xf32>
    %cst_263 = arith.constant 1.000000e+00 : f32
    %466 = vector.broadcast %cst_263 : f32 to vector<8x384xf32>
    %467 = arith.addf %466, %465 : vector<8x384xf32>
    %468 = arith.divf %466, %467 : vector<8x384xf32>
    %469 = vector.extract_strided_slice %462 {offsets = [0, 384], sizes = [8, 128], strides = [1, 1]} : vector<8x512xf32> to vector<8x128xf32>
    %470 = math.tanh %469 : vector<8x128xf32>
    %471 = vector.extract_strided_slice %468 {offsets = [0, 0], sizes = [8, 128], strides = [1, 1]} : vector<8x384xf32> to vector<8x128xf32>
    %472 = vector.extract_strided_slice %468 {offsets = [0, 128], sizes = [8, 128], strides = [1, 1]} : vector<8x384xf32> to vector<8x128xf32>
    %473 = vector.extract_strided_slice %468 {offsets = [0, 256], sizes = [8, 128], strides = [1, 1]} : vector<8x384xf32> to vector<8x128xf32>
    %474 = arith.mulf %472, %457 : vector<8x128xf32>
    %475 = arith.mulf %471, %470 : vector<8x128xf32>
    %476 = arith.addf %474, %475 : vector<8x128xf32>
    %477 = math.tanh %476 : vector<8x128xf32>
    %478 = arith.mulf %473, %477 : vector<8x128xf32>
    %c8_264 = arith.constant 8 : index
    %c0_265 = arith.constant 0 : index
    %479 = vector.load %arg10[%c8_264, %c0_265] : memref<64x512xf32, #tpu.memory_space<vmem>>, vector<8x512xf32>
    %480 = arith.truncf %478 : vector<8x128xf32> to vector<8x128xbf16>
    %c0_266 = arith.constant 0 : index
    %c0_267 = arith.constant 0 : index
    %481 = vector.load %arg4[%c0_266, %c0_267] : memref<128x512xbf16, #tpu.memory_space<vmem>>, vector<128x512xbf16>
    %cst_268 = arith.constant dense<0.000000e+00> : vector<8x512xf32>
    %482 = tpu.matmul %480, %481, %cst_268 {dimension_numbers = #tpu.dot_dimension_numbers<[1], [0], [0], [1], [0, 0, 1, 1], [], []>} : vector<8x128xbf16>, vector<128x512xbf16>, vector<8x512xf32> -> vector<8x512xf32>
    %483 = arith.addf %479, %482 : vector<8x512xf32>
    %484 = vector.extract_strided_slice %483 {offsets = [0, 0], sizes = [8, 384], strides = [1, 1]} : vector<8x512xf32> to vector<8x384xf32>
    %485 = arith.negf %484 : vector<8x384xf32>
    %486 = math.exp %485 : vector<8x384xf32>
    %cst_269 = arith.constant 1.000000e+00 : f32
    %487 = vector.broadcast %cst_269 : f32 to vector<8x384xf32>
    %488 = arith.addf %487, %486 : vector<8x384xf32>
    %489 = arith.divf %487, %488 : vector<8x384xf32>
    %490 = vector.extract_strided_slice %483 {offsets = [0, 384], sizes = [8, 128], strides = [1, 1]} : vector<8x512xf32> to vector<8x128xf32>
    %491 = math.tanh %490 : vector<8x128xf32>
    %492 = vector.extract_strided_slice %489 {offsets = [0, 0], sizes = [8, 128], strides = [1, 1]} : vector<8x384xf32> to vector<8x128xf32>
    %493 = vector.extract_strided_slice %489 {offsets = [0, 128], sizes = [8, 128], strides = [1, 1]} : vector<8x384xf32> to vector<8x128xf32>
    %494 = vector.extract_strided_slice %489 {offsets = [0, 256], sizes = [8, 128], strides = [1, 1]} : vector<8x384xf32> to vector<8x128xf32>
    %495 = arith.mulf %493, %476 : vector<8x128xf32>
    %496 = arith.mulf %492, %491 : vector<8x128xf32>
    %497 = arith.addf %495, %496 : vector<8x128xf32>
    %498 = math.tanh %497 : vector<8x128xf32>
    %499 = arith.mulf %494, %498 : vector<8x128xf32>
    %c16_270 = arith.constant 16 : index
    %c0_271 = arith.constant 0 : index
    %500 = vector.load %arg10[%c16_270, %c0_271] : memref<64x512xf32, #tpu.memory_space<vmem>>, vector<8x512xf32>
    %501 = arith.truncf %499 : vector<8x128xf32> to vector<8x128xbf16>
    %c0_272 = arith.constant 0 : index
    %c0_273 = arith.constant 0 : index
    %502 = vector.load %arg4[%c0_272, %c0_273] : memref<128x512xbf16, #tpu.memory_space<vmem>>, vector<128x512xbf16>
    %cst_274 = arith.constant dense<0.000000e+00> : vector<8x512xf32>
    %503 = tpu.matmul %501, %502, %cst_274 {dimension_numbers = #tpu.dot_dimension_numbers<[1], [0], [0], [1], [0, 0, 1, 1], [], []>} : vector<8x128xbf16>, vector<128x512xbf16>, vector<8x512xf32> -> vector<8x512xf32>
    %504 = arith.addf %500, %503 : vector<8x512xf32>
    %505 = vector.extract_strided_slice %504 {offsets = [0, 0], sizes = [8, 384], strides = [1, 1]} : vector<8x512xf32> to vector<8x384xf32>
    %506 = arith.negf %505 : vector<8x384xf32>
    %507 = math.exp %506 : vector<8x384xf32>
    %cst_275 = arith.constant 1.000000e+00 : f32
    %508 = vector.broadcast %cst_275 : f32 to vector<8x384xf32>
    %509 = arith.addf %508, %507 : vector<8x384xf32>
    %510 = arith.divf %508, %509 : vector<8x384xf32>
    %511 = vector.extract_strided_slice %504 {offsets = [0, 384], sizes = [8, 128], strides = [1, 1]} : vector<8x512xf32> to vector<8x128xf32>
    %512 = math.tanh %511 : vector<8x128xf32>
    %513 = vector.extract_strided_slice %510 {offsets = [0, 0], sizes = [8, 128], strides = [1, 1]} : vector<8x384xf32> to vector<8x128xf32>
    %514 = vector.extract_strided_slice %510 {offsets = [0, 128], sizes = [8, 128], strides = [1, 1]} : vector<8x384xf32> to vector<8x128xf32>
    %515 = vector.extract_strided_slice %510 {offsets = [0, 256], sizes = [8, 128], strides = [1, 1]} : vector<8x384xf32> to vector<8x128xf32>
    %516 = arith.mulf %514, %497 : vector<8x128xf32>
    %517 = arith.mulf %513, %512 : vector<8x128xf32>
    %518 = arith.addf %516, %517 : vector<8x128xf32>
    %519 = math.tanh %518 : vector<8x128xf32>
    %520 = arith.mulf %515, %519 : vector<8x128xf32>
    %c24_276 = arith.constant 24 : index
    %c0_277 = arith.constant 0 : index
    %521 = vector.load %arg10[%c24_276, %c0_277] : memref<64x512xf32, #tpu.memory_space<vmem>>, vector<8x512xf32>
    %522 = arith.truncf %520 : vector<8x128xf32> to vector<8x128xbf16>
    %c0_278 = arith.constant 0 : index
    %c0_279 = arith.constant 0 : index
    %523 = vector.load %arg4[%c0_278, %c0_279] : memref<128x512xbf16, #tpu.memory_space<vmem>>, vector<128x512xbf16>
    %cst_280 = arith.constant dense<0.000000e+00> : vector<8x512xf32>
    %524 = tpu.matmul %522, %523, %cst_280 {dimension_numbers = #tpu.dot_dimension_numbers<[1], [0], [0], [1], [0, 0, 1, 1], [], []>} : vector<8x128xbf16>, vector<128x512xbf16>, vector<8x512xf32> -> vector<8x512xf32>
    %525 = arith.addf %521, %524 : vector<8x512xf32>
    %526 = vector.extract_strided_slice %525 {offsets = [0, 0], sizes = [8, 384], strides = [1, 1]} : vector<8x512xf32> to vector<8x384xf32>
    %527 = arith.negf %526 : vector<8x384xf32>
    %528 = math.exp %527 : vector<8x384xf32>
    %cst_281 = arith.constant 1.000000e+00 : f32
    %529 = vector.broadcast %cst_281 : f32 to vector<8x384xf32>
    %530 = arith.addf %529, %528 : vector<8x384xf32>
    %531 = arith.divf %529, %530 : vector<8x384xf32>
    %532 = vector.extract_strided_slice %525 {offsets = [0, 384], sizes = [8, 128], strides = [1, 1]} : vector<8x512xf32> to vector<8x128xf32>
    %533 = math.tanh %532 : vector<8x128xf32>
    %534 = vector.extract_strided_slice %531 {offsets = [0, 0], sizes = [8, 128], strides = [1, 1]} : vector<8x384xf32> to vector<8x128xf32>
    %535 = vector.extract_strided_slice %531 {offsets = [0, 128], sizes = [8, 128], strides = [1, 1]} : vector<8x384xf32> to vector<8x128xf32>
    %536 = vector.extract_strided_slice %531 {offsets = [0, 256], sizes = [8, 128], strides = [1, 1]} : vector<8x384xf32> to vector<8x128xf32>
    %537 = arith.mulf %535, %518 : vector<8x128xf32>
    %538 = arith.mulf %534, %533 : vector<8x128xf32>
    %539 = arith.addf %537, %538 : vector<8x128xf32>
    %540 = math.tanh %539 : vector<8x128xf32>
    %541 = arith.mulf %536, %540 : vector<8x128xf32>
    %c32_282 = arith.constant 32 : index
    %c0_283 = arith.constant 0 : index
    %542 = vector.load %arg10[%c32_282, %c0_283] : memref<64x512xf32, #tpu.memory_space<vmem>>, vector<8x512xf32>
    %543 = arith.truncf %541 : vector<8x128xf32> to vector<8x128xbf16>
    %c0_284 = arith.constant 0 : index
    %c0_285 = arith.constant 0 : index
    %544 = vector.load %arg4[%c0_284, %c0_285] : memref<128x512xbf16, #tpu.memory_space<vmem>>, vector<128x512xbf16>
    %cst_286 = arith.constant dense<0.000000e+00> : vector<8x512xf32>
    %545 = tpu.matmul %543, %544, %cst_286 {dimension_numbers = #tpu.dot_dimension_numbers<[1], [0], [0], [1], [0, 0, 1, 1], [], []>} : vector<8x128xbf16>, vector<128x512xbf16>, vector<8x512xf32> -> vector<8x512xf32>
    %546 = arith.addf %542, %545 : vector<8x512xf32>
    %547 = vector.extract_strided_slice %546 {offsets = [0, 0], sizes = [8, 384], strides = [1, 1]} : vector<8x512xf32> to vector<8x384xf32>
    %548 = arith.negf %547 : vector<8x384xf32>
    %549 = math.exp %548 : vector<8x384xf32>
    %cst_287 = arith.constant 1.000000e+00 : f32
    %550 = vector.broadcast %cst_287 : f32 to vector<8x384xf32>
    %551 = arith.addf %550, %549 : vector<8x384xf32>
    %552 = arith.divf %550, %551 : vector<8x384xf32>
    %553 = vector.extract_strided_slice %546 {offsets = [0, 384], sizes = [8, 128], strides = [1, 1]} : vector<8x512xf32> to vector<8x128xf32>
    %554 = math.tanh %553 : vector<8x128xf32>
    %555 = vector.extract_strided_slice %552 {offsets = [0, 0], sizes = [8, 128], strides = [1, 1]} : vector<8x384xf32> to vector<8x128xf32>
    %556 = vector.extract_strided_slice %552 {offsets = [0, 128], sizes = [8, 128], strides = [1, 1]} : vector<8x384xf32> to vector<8x128xf32>
    %557 = vector.extract_strided_slice %552 {offsets = [0, 256], sizes = [8, 128], strides = [1, 1]} : vector<8x384xf32> to vector<8x128xf32>
    %558 = arith.mulf %556, %539 : vector<8x128xf32>
    %559 = arith.mulf %555, %554 : vector<8x128xf32>
    %560 = arith.addf %558, %559 : vector<8x128xf32>
    %561 = math.tanh %560 : vector<8x128xf32>
    %562 = arith.mulf %557, %561 : vector<8x128xf32>
    %c40_288 = arith.constant 40 : index
    %c0_289 = arith.constant 0 : index
    %563 = vector.load %arg10[%c40_288, %c0_289] : memref<64x512xf32, #tpu.memory_space<vmem>>, vector<8x512xf32>
    %564 = arith.truncf %562 : vector<8x128xf32> to vector<8x128xbf16>
    %c0_290 = arith.constant 0 : index
    %c0_291 = arith.constant 0 : index
    %565 = vector.load %arg4[%c0_290, %c0_291] : memref<128x512xbf16, #tpu.memory_space<vmem>>, vector<128x512xbf16>
    %cst_292 = arith.constant dense<0.000000e+00> : vector<8x512xf32>
    %566 = tpu.matmul %564, %565, %cst_292 {dimension_numbers = #tpu.dot_dimension_numbers<[1], [0], [0], [1], [0, 0, 1, 1], [], []>} : vector<8x128xbf16>, vector<128x512xbf16>, vector<8x512xf32> -> vector<8x512xf32>
    %567 = arith.addf %563, %566 : vector<8x512xf32>
    %568 = vector.extract_strided_slice %567 {offsets = [0, 0], sizes = [8, 384], strides = [1, 1]} : vector<8x512xf32> to vector<8x384xf32>
    %569 = arith.negf %568 : vector<8x384xf32>
    %570 = math.exp %569 : vector<8x384xf32>
    %cst_293 = arith.constant 1.000000e+00 : f32
    %571 = vector.broadcast %cst_293 : f32 to vector<8x384xf32>
    %572 = arith.addf %571, %570 : vector<8x384xf32>
    %573 = arith.divf %571, %572 : vector<8x384xf32>
    %574 = vector.extract_strided_slice %567 {offsets = [0, 384], sizes = [8, 128], strides = [1, 1]} : vector<8x512xf32> to vector<8x128xf32>
    %575 = math.tanh %574 : vector<8x128xf32>
    %576 = vector.extract_strided_slice %573 {offsets = [0, 0], sizes = [8, 128], strides = [1, 1]} : vector<8x384xf32> to vector<8x128xf32>
    %577 = vector.extract_strided_slice %573 {offsets = [0, 128], sizes = [8, 128], strides = [1, 1]} : vector<8x384xf32> to vector<8x128xf32>
    %578 = vector.extract_strided_slice %573 {offsets = [0, 256], sizes = [8, 128], strides = [1, 1]} : vector<8x384xf32> to vector<8x128xf32>
    %579 = arith.mulf %577, %560 : vector<8x128xf32>
    %580 = arith.mulf %576, %575 : vector<8x128xf32>
    %581 = arith.addf %579, %580 : vector<8x128xf32>
    %582 = math.tanh %581 : vector<8x128xf32>
    %583 = arith.mulf %578, %582 : vector<8x128xf32>
    %c48_294 = arith.constant 48 : index
    %c0_295 = arith.constant 0 : index
    %584 = vector.load %arg10[%c48_294, %c0_295] : memref<64x512xf32, #tpu.memory_space<vmem>>, vector<8x512xf32>
    %585 = arith.truncf %583 : vector<8x128xf32> to vector<8x128xbf16>
    %c0_296 = arith.constant 0 : index
    %c0_297 = arith.constant 0 : index
    %586 = vector.load %arg4[%c0_296, %c0_297] : memref<128x512xbf16, #tpu.memory_space<vmem>>, vector<128x512xbf16>
    %cst_298 = arith.constant dense<0.000000e+00> : vector<8x512xf32>
    %587 = tpu.matmul %585, %586, %cst_298 {dimension_numbers = #tpu.dot_dimension_numbers<[1], [0], [0], [1], [0, 0, 1, 1], [], []>} : vector<8x128xbf16>, vector<128x512xbf16>, vector<8x512xf32> -> vector<8x512xf32>
    %588 = arith.addf %584, %587 : vector<8x512xf32>
    %589 = vector.extract_strided_slice %588 {offsets = [0, 0], sizes = [8, 384], strides = [1, 1]} : vector<8x512xf32> to vector<8x384xf32>
    %590 = arith.negf %589 : vector<8x384xf32>
    %591 = math.exp %590 : vector<8x384xf32>
    %cst_299 = arith.constant 1.000000e+00 : f32
    %592 = vector.broadcast %cst_299 : f32 to vector<8x384xf32>
    %593 = arith.addf %592, %591 : vector<8x384xf32>
    %594 = arith.divf %592, %593 : vector<8x384xf32>
    %595 = vector.extract_strided_slice %588 {offsets = [0, 384], sizes = [8, 128], strides = [1, 1]} : vector<8x512xf32> to vector<8x128xf32>
    %596 = math.tanh %595 : vector<8x128xf32>
    %597 = vector.extract_strided_slice %594 {offsets = [0, 0], sizes = [8, 128], strides = [1, 1]} : vector<8x384xf32> to vector<8x128xf32>
    %598 = vector.extract_strided_slice %594 {offsets = [0, 128], sizes = [8, 128], strides = [1, 1]} : vector<8x384xf32> to vector<8x128xf32>
    %599 = vector.extract_strided_slice %594 {offsets = [0, 256], sizes = [8, 128], strides = [1, 1]} : vector<8x384xf32> to vector<8x128xf32>
    %600 = arith.mulf %598, %581 : vector<8x128xf32>
    %601 = arith.mulf %597, %596 : vector<8x128xf32>
    %602 = arith.addf %600, %601 : vector<8x128xf32>
    %603 = math.tanh %602 : vector<8x128xf32>
    %604 = arith.mulf %599, %603 : vector<8x128xf32>
    %c56_300 = arith.constant 56 : index
    %c0_301 = arith.constant 0 : index
    %605 = vector.load %arg10[%c56_300, %c0_301] : memref<64x512xf32, #tpu.memory_space<vmem>>, vector<8x512xf32>
    %606 = arith.truncf %604 : vector<8x128xf32> to vector<8x128xbf16>
    %c0_302 = arith.constant 0 : index
    %c0_303 = arith.constant 0 : index
    %607 = vector.load %arg4[%c0_302, %c0_303] : memref<128x512xbf16, #tpu.memory_space<vmem>>, vector<128x512xbf16>
    %cst_304 = arith.constant dense<0.000000e+00> : vector<8x512xf32>
    %608 = tpu.matmul %606, %607, %cst_304 {dimension_numbers = #tpu.dot_dimension_numbers<[1], [0], [0], [1], [0, 0, 1, 1], [], []>} : vector<8x128xbf16>, vector<128x512xbf16>, vector<8x512xf32> -> vector<8x512xf32>
    %609 = arith.addf %605, %608 : vector<8x512xf32>
    %610 = vector.extract_strided_slice %609 {offsets = [0, 0], sizes = [8, 384], strides = [1, 1]} : vector<8x512xf32> to vector<8x384xf32>
    %611 = arith.negf %610 : vector<8x384xf32>
    %612 = math.exp %611 : vector<8x384xf32>
    %cst_305 = arith.constant 1.000000e+00 : f32
    %613 = vector.broadcast %cst_305 : f32 to vector<8x384xf32>
    %614 = arith.addf %613, %612 : vector<8x384xf32>
    %615 = arith.divf %613, %614 : vector<8x384xf32>
    %616 = vector.extract_strided_slice %609 {offsets = [0, 384], sizes = [8, 128], strides = [1, 1]} : vector<8x512xf32> to vector<8x128xf32>
    %617 = math.tanh %616 : vector<8x128xf32>
    %618 = vector.extract_strided_slice %615 {offsets = [0, 0], sizes = [8, 128], strides = [1, 1]} : vector<8x384xf32> to vector<8x128xf32>
    %619 = vector.extract_strided_slice %615 {offsets = [0, 128], sizes = [8, 128], strides = [1, 1]} : vector<8x384xf32> to vector<8x128xf32>
    %620 = vector.extract_strided_slice %615 {offsets = [0, 256], sizes = [8, 128], strides = [1, 1]} : vector<8x384xf32> to vector<8x128xf32>
    %621 = arith.mulf %619, %602 : vector<8x128xf32>
    %622 = arith.mulf %618, %617 : vector<8x128xf32>
    %623 = arith.addf %621, %622 : vector<8x128xf32>
    %624 = math.tanh %623 : vector<8x128xf32>
    %625 = arith.mulf %620, %624 : vector<8x128xf32>
    %626 = arith.truncf %625 : vector<8x128xf32> to vector<8x128xbf16>
    %c0_306 = arith.constant 0 : index
    %c0_307 = arith.constant 0 : index
    %627 = vector.load %arg6[%c0_306, %c0_307] : memref<128x128xbf16, #tpu.memory_space<vmem>>, vector<128x128xbf16>
    %cst_308 = arith.constant dense<0.000000e+00> : vector<8x128xf32>
    %628 = tpu.matmul %626, %627, %cst_308 {dimension_numbers = #tpu.dot_dimension_numbers<[1], [0], [0], [1], [0, 0, 1, 1], [], []>} : vector<8x128xbf16>, vector<128x128xbf16>, vector<8x128xf32> -> vector<8x128xf32>
    %c0_309 = arith.constant 0 : index
    %c0_310 = arith.constant 0 : index
    %629 = vector.load %arg7[%c0_309, %c0_310] : memref<1x128xf32, #tpu.memory_space<vmem>>, vector<1x128xf32>
    %630 = vector.broadcast %629 : vector<1x128xf32> to vector<8x128xf32>
    %631 = arith.addf %628, %630 : vector<8x128xf32>
    %c0_311 = arith.constant 0 : index
    %c0_312 = arith.constant 0 : index
    %632 = vector.load %arg8[%c0_311, %c0_312] : memref<8x128xf32, #tpu.memory_space<vmem>>, vector<8x128xf32>
    tpu.vector_store %arg8[%c0_311, %c0_312], %631 {strides = array<i32>} : memref<8x128xf32, #tpu.memory_space<vmem>>, vector<8x128xf32>,
    return
  }
  func.func @transform_0(%arg0: i32, %arg1: memref<8x8xi32, #tpu.memory_space<smem>>) -> (i32, i32) {
    %c0_i32 = arith.constant 0 : i32
    %c0_i32_0 = arith.constant 0 : i32
    %c0_i32_1 = arith.constant 0 : i32
    return %c0_i32, %c0_i32_0 : i32, i32
  }
  func.func @transform_1(%arg0: i32, %arg1: memref<8x8xi32, #tpu.memory_space<smem>>) -> (i32, i32) {
    %c0_i32 = arith.constant 0 : i32
    %c0_i32_0 = arith.constant 0 : i32
    %c0_i32_1 = arith.constant 0 : i32
    return %c0_i32, %c0_i32_0 : i32, i32
  }
  func.func @transform_2(%arg0: i32, %arg1: memref<8x8xi32, #tpu.memory_space<smem>>) -> (i32, i32) {
    %c0_i32 = arith.constant 0 : i32
    %c0_i32_0 = arith.constant 0 : i32
    %c0_i32_1 = arith.constant 0 : i32
    return %c0_i32, %c0_i32_0 : i32, i32
  }
  func.func @transform_3(%arg0: i32, %arg1: memref<8x8xi32, #tpu.memory_space<smem>>) -> (i32, i32) {
    %c0_i32 = arith.constant 0 : i32
    %c0_i32_0 = arith.constant 0 : i32
    %c0_i32_1 = arith.constant 0 : i32
    return %c0_i32, %c0_i32_0 : i32, i32
  }
  func.func @transform_4(%arg0: i32, %arg1: memref<8x8xi32, #tpu.memory_space<smem>>) -> (i32, i32) {
    %c0_i32 = arith.constant 0 : i32
    %c0_i32_0 = arith.constant 0 : i32
    %c0_i32_1 = arith.constant 0 : i32
    return %c0_i32, %c0_i32_0 : i32, i32
  }
  func.func @transform_5(%arg0: i32, %arg1: memref<8x8xi32, #tpu.memory_space<smem>>) -> (i32, i32) {
    %c0_i32 = arith.constant 0 : i32
    %c0_i32_0 = arith.constant 0 : i32
    %c0_i32_1 = arith.constant 0 : i32
    return %c0_i32, %c0_i32_0 : i32, i32
  }
  func.func @transform_6(%arg0: i32, %arg1: memref<8x8xi32, #tpu.memory_space<smem>>) -> (i32, i32) {
    %c0_i32 = arith.constant 0 : i32
    %c0_i32_0 = arith.constant 0 : i32
    return %arg0, %c0_i32 : i32, i32
  }
}

</mosaic_0001>

<llo_original>
// kernel: tpu_custom_call.1
$region0: #{tpu_custom_call.1}
  #allocation0 [shape = 'u32[]', space=smem, size = 0x4, offset = 0x4, fixed_abs, tag = 'smem constant byte address 0x4 - core index']
  #allocation1 [shape = 'u32[72,128]{1,0:T(1,128)}', space=vmem, size = 0x9000, scoped, tag = 'internal scratch']
  #allocation2 [shape = 'bf16[64,128]{1,0:T(8,128)(2,1)}', space=vmem, size = 0x4000, scoped, tag = 'scratch operand']
  #allocation3 [shape = 'f32[64,512]{1,0:T(8,128)}', space=vmem, size = 0x20000, scoped, tag = 'scratch operand']
  #allocation4 [shape = 's32[1]{0}', space=sflag, size = 0x4, scoped, tag = 'scoped memory for tpu_custom_call.1']
  #allocation5 [shape = 'u8[4096]{0}', space=smem, size = 0x1000, scoped, tag = 'prefetched SMEM operand 0']
  %s0 = inlined_call_operand.hbm [shape: s32[8,8], index: 0, kind: input, shape index: {}]
  %s1 = inlined_call_operand.hbm [shape: f32[56,128], index: 1, kind: input, shape index: {}]
  %s2 = inlined_call_operand.hbm [shape: bf16[128,512], index: 2, kind: input, shape index: {}]
  %s3 = inlined_call_operand.hbm [shape: bf16[128,512], index: 3, kind: input, shape index: {}]
  %s4 = inlined_call_operand.hbm [shape: f32[1,512], index: 4, kind: input, shape index: {}]
  %s5 = inlined_call_operand.hbm [shape: bf16[128,128], index: 5, kind: input, shape index: {}]
  %s6 = inlined_call_operand.vmem [shape: f32[1,128], index: 6, kind: input, shape index: {}]
  %s7 = inlined_call_operand.hbm [shape: f32[8,128], index: 7, kind: output, shape index: {}]
  %s8 = sld [smem:[#allocation0]]
  $region54: #{tpu_custom_call.1} parent=0
    _
  %s10 = ssub.s32 1, %s8
  %s11 = scalar_select 0, %s10, %s8
  %s13 = sshll.u32 %s0, 4
  %s14 = int_to_ptr.hbm [resolvable:$true] %s13
  %16 = dma.hbm_to_smem %s14, 128, [#allocation5], [#allocation4]
  %18 = dma.done [#allocation4], 128
  %19 = sfence
  $region1: #{tpu_custom_call.1} parent=0
    #allocation6 [shape = 'u8[28672]{0}', space=vmem, size = 0x7000, scoped, tag = 'input window, operand 1, single buffered']
    #allocation7 [shape = 's32[1]{0}', space=sflag, size = 0x4, scoped, tag = 'scoped memory for tpu_custom_call.1']
    #allocation8 [shape = 's32[1]{0}', space=sflag, size = 0x4, scoped, tag = 'scoped memory for tpu_custom_call.1']
    #allocation9 [shape = 'u8[131072]{0}', space=vmem, size = 0x20000, scoped, tag = 'input window, operand 2, single buffered']
    #allocation10 [shape = 's32[1]{0}', space=sflag, size = 0x4, scoped, tag = 'scoped memory for tpu_custom_call.1']
    #allocation11 [shape = 'u8[131072]{0}', space=vmem, size = 0x20000, scoped, tag = 'input window, operand 3, single buffered']
    #allocation12 [shape = 'u8[2048]{0}', space=vmem, size = 0x800, scoped, tag = 'input window, operand 4, single buffered']
    #allocation13 [shape = 's32[1]{0}', space=sflag, size = 0x4, scoped, tag = 'scoped memory for tpu_custom_call.1']
    #allocation14 [shape = 'u8[32768]{0}', space=vmem, size = 0x8000, scoped, tag = 'input window, operand 5, single buffered']
    #allocation15 [shape = 'u8[4096]{0}', space=vmem, size = 0x1000, scoped, tag = 'output window, operand 0, single buffered']
    %20 = vsyncpa [#allocation7], 0
    %21 = vsyncpa [#allocation10], 0
    %22 = vsyncpa [#allocation13], 0
    %23 = vsyncpa [#allocation8], 0
    // Predicated region
    $region2: #{tpu_custom_call.1} parent=1 // pred_check
      _
    $region3: #{tpu_custom_call.1} parent=1 // pred_check_branch
      %25 = sbr.rel (0) target = $region5
    $region4: #{tpu_custom_call.1} parent=1 // pred_region
      %27 = vsyncadd [#allocation7], 0
      %s28 = sshll.u32 %s1, 4
      %s29 = int_to_ptr.hbm [resolvable:$true] %s28
      %s30 = sshll.u32 [#allocation6], 4
      %s31 = int_to_ptr.vmem [resolvable:$true] %s30
      %36 = dma.hbm_to_vmem [thread:$0]  %s29, 896, %s31, [#allocation7], 128, 128, 8
    $region5: #{tpu_custom_call.1} parent=1 // pred_fallthru
      _
    // Predicated region
    $region6: #{tpu_custom_call.1} parent=1 // pred_check
      _
    $region7: #{tpu_custom_call.1} parent=1 // pred_check_branch
      %38 = sbr.rel (0) target = $region9
    $region8: #{tpu_custom_call.1} parent=1 // pred_region
      %40 = vsyncadd [#allocation10], 0
      %s41 = sshll.u32 %s2, 4
      %s42 = int_to_ptr.hbm [resolvable:$true] %s41
      %s43 = sshll.u32 [#allocation9], 4
      %s44 = int_to_ptr.vmem [resolvable:$true] %s43
      %49 = dma.hbm_to_vmem [thread:$0]  %s42, 4096, %s44, [#allocation10], 256, 256, 16
    $region9: #{tpu_custom_call.1} parent=1 // pred_fallthru
      _
    // Predicated region
    $region10: #{tpu_custom_call.1} parent=1 // pred_check
      _
    $region11: #{tpu_custom_call.1} parent=1 // pred_check_branch
      %51 = sbr.rel (0) target = $region13
    $region12: #{tpu_custom_call.1} parent=1 // pred_region
      %53 = vsyncadd [#allocation10], 0
      %s54 = sshll.u32 %s3, 4
      %s55 = int_to_ptr.hbm [resolvable:$true] %s54
      %s56 = sshll.u32 [#allocation11], 4
      %s57 = int_to_ptr.vmem [resolvable:$true] %s56
      %62 = dma.hbm_to_vmem [thread:$0]  %s55, 4096, %s57, [#allocation10], 256, 256, 16
    $region13: #{tpu_custom_call.1} parent=1 // pred_fallthru
      _
    // Predicated region
    $region14: #{tpu_custom_call.1} parent=1 // pred_check
      _
    $region15: #{tpu_custom_call.1} parent=1 // pred_check_branch
      %64 = sbr.rel (0) target = $region17
    $region16: #{tpu_custom_call.1} parent=1 // pred_region
      %66 = vsyncadd [#allocation13], 0
      %s68 = sshll.u32 %s4, 4
      %s69 = int_to_ptr.hbm [resolvable:$true] %s68
      %s70 = sshll.u32 [#allocation12], 4
      %s71 = int_to_ptr.vmem [resolvable:$true] %s70
      %73 = dma.hbm_to_vmem [thread:$0]  %s69, 64, %s71, [#allocation13]
    $region17: #{tpu_custom_call.1} parent=1 // pred_fallthru
      _
    // Predicated region
    $region18: #{tpu_custom_call.1} parent=1 // pred_check
      _
    $region19: #{tpu_custom_call.1} parent=1 // pred_check_branch
      %75 = sbr.rel (0) target = $region21
    $region20: #{tpu_custom_call.1} parent=1 // pred_region
      %77 = vsyncadd [#allocation13], 0
      %s78 = sshll.u32 %s5, 4
      %s79 = int_to_ptr.hbm [resolvable:$true] %s78
      %s80 = sshll.u32 [#allocation14], 4
      %s81 = int_to_ptr.vmem [resolvable:$true] %s80
      %86 = dma.hbm_to_vmem [thread:$0]  %s79, 1024, %s81, [#allocation13], 64, 64, 4
    $region21: #{tpu_custom_call.1} parent=1 // pred_fallthru
      _
    // Predicated region
    $region22: #{tpu_custom_call.1} parent=1 // pred_check
      _
    $region23: #{tpu_custom_call.1} parent=1 // pred_check_branch
      %88 = sbr.rel (0) target = $region25
    $region24: #{tpu_custom_call.1} parent=1 // pred_region
      _
    $region25: #{tpu_custom_call.1} parent=1 // pred_fallthru
      _
    // Predicated region
    $region26: #{tpu_custom_call.1} parent=1 // pred_check
      _
    $region27: #{tpu_custom_call.1} parent=1 // pred_check_branch
      %90 = sbr.rel (0) target = $region29
    $region28: #{tpu_custom_call.1} parent=1 // pred_region
      %92 = dma.done [#allocation7], 896
    $region29: #{tpu_custom_call.1} parent=1 // pred_fallthru
      _
    // Predicated region
    $region30: #{tpu_custom_call.1} parent=1 // pred_check
      _
    $region31: #{tpu_custom_call.1} parent=1 // pred_check_branch
      %94 = sbr.rel (0) target = $region33
    $region32: #{tpu_custom_call.1} parent=1 // pred_region
      %96 = dma.done [#allocation10], 4096
    $region33: #{tpu_custom_call.1} parent=1 // pred_fallthru
      _
    // Predicated region
    $region34: #{tpu_custom_call.1} parent=1 // pred_check
      _
    $region35: #{tpu_custom_call.1} parent=1 // pred_check_branch
      %98 = sbr.rel (0) target = $region37
    $region36: #{tpu_custom_call.1} parent=1 // pred_region
      %100 = dma.done [#allocation10], 4096
    $region37: #{tpu_custom_call.1} parent=1 // pred_fallthru
      _
    // Predicated region
    $region38: #{tpu_custom_call.1} parent=1 // pred_check
      _
    $region39: #{tpu_custom_call.1} parent=1 // pred_check_branch
      %102 = sbr.rel (0) target = $region41
    $region40: #{tpu_custom_call.1} parent=1 // pred_region
      %104 = dma.done [#allocation13], 64
    $region41: #{tpu_custom_call.1} parent=1 // pred_fallthru
      _
    // Predicated region
    $region42: #{tpu_custom_call.1} parent=1 // pred_check
      _
    $region43: #{tpu_custom_call.1} parent=1 // pred_check_branch
      %106 = sbr.rel (0) target = $region45
    $region44: #{tpu_custom_call.1} parent=1 // pred_region
      %108 = dma.done [#allocation13], 1024
    $region45: #{tpu_custom_call.1} parent=1 // pred_fallthru
      _
    %s110 = smul.u32 0, 8
    %s111 = smul.u32 %s110, 128
    %s112 = sld [smem:[#allocation5 + %s111]]
    %s113 = scalar_lea.vmem [#allocation6], %s112
    %v114 = vld [vmem:[%s113] sm:$0x1]
    %v115 = vpack.c.bf16 %v114, %v114
    %vm116 = vcmask 1040384
    %vm117 = vsmask.f32 256
    %vm118 = vmand %vm116, %vm117
    %v119 = vld [vmem:[#allocation2] sm:$0x1]
    %v120 = vsel %vm118, %v115, %v119
    %121 = vst [vmem:[#allocation2] sm:$0x1] %v120
    %s122 = sadd.s32 %s110, 1
    %s123 = smul.u32 %s122, 128
    %s124 = sld [smem:[#allocation5 + %s123]]
    %s125 = scalar_lea.vmem [#allocation6], %s124
    %v126 = vld [vmem:[%s125] sm:$0x1]
    %v127 = vpack.c.bf16 %v126, %v126
    %v129 = vshll.u32 %v127, 16
    %vm132 = vsmask.f32 7938
    %vm133 = vmand %vm116, %vm132
    %v134 = vld [vmem:[#allocation2] sm:$0x1]
    %v135 = vsel %vm133, %v129, %v134
    %136 = vst [vmem:[#allocation2] sm:$0x1] %v135
    %s137 = sadd.s32 %s110, 2
    %s138 = smul.u32 %s137, 128
    %s139 = sld [smem:[#allocation5 + %s138]]
    %s140 = scalar_lea.vmem [#allocation6], %s139
    %v141 = vld [vmem:[%s140] sm:$0x1]
    %v142 = vpack.c.bf16 %v141, %v141
    %v144 = vrot.slane %v142, 7
    %vm146 = vcmask 1041409
    %vm147 = vsmask.f32 1280
    %vm148 = vmand %vm146, %vm147
    %v149 = vld [vmem:[#allocation2] sm:$0x2]
    %v150 = vsel %vm148, %v144, %v149
    %151 = vst [vmem:[#allocation2] sm:$0x2] %v150
    %s152 = sadd.s32 %s110, 3
    %s153 = smul.u32 %s152, 128
    %s154 = sld [smem:[#allocation5 + %s153]]
    %s155 = scalar_lea.vmem [#allocation6], %s154
    %v156 = vld [vmem:[%s155] sm:$0x1]
    %v157 = vpack.c.bf16 %v156, %v156
    %v159 = vshll.u32 %v157, 16
    %v161 = vrot.slane %v159, 7
    %vm163 = vsmask.f32 7942
    %vm164 = vmand %vm146, %vm163
    %v165 = vld [vmem:[#allocation2] sm:$0x2]
    %v166 = vsel %vm164, %v161, %v165
    %167 = vst [vmem:[#allocation2] sm:$0x2] %v166
    %s168 = sadd.s32 %s110, 4
    %s169 = smul.u32 %s168, 128
    %s170 = sld [smem:[#allocation5 + %s169]]
    %s171 = scalar_lea.vmem [#allocation6], %s170
    %v172 = vld [vmem:[%s171] sm:$0x1]
    %v173 = vpack.c.bf16 %v172, %v172
    %v175 = vrot.slane %v173, 6
    %vm177 = vcmask 1042434
    %vm178 = vsmask.f32 2304
    %vm179 = vmand %vm177, %vm178
    %v180 = vld [vmem:[#allocation2] sm:$0x4]
    %v181 = vsel %vm179, %v175, %v180
    %182 = vst [vmem:[#allocation2] sm:$0x4] %v181
    %s183 = sadd.s32 %s110, 5
    %s184 = smul.u32 %s183, 128
    %s185 = sld [smem:[#allocation5 + %s184]]
    %s186 = scalar_lea.vmem [#allocation6], %s185
    %v187 = vld [vmem:[%s186] sm:$0x1]
    %v188 = vpack.c.bf16 %v187, %v187
    %v190 = vshll.u32 %v188, 16
    %v192 = vrot.slane %v190, 6
    %vm194 = vsmask.f32 7946
    %vm195 = vmand %vm177, %vm194
    %v196 = vld [vmem:[#allocation2] sm:$0x4]
    %v197 = vsel %vm195, %v192, %v196
    %198 = vst [vmem:[#allocation2] sm:$0x4] %v197
    %s199 = sadd.s32 %s110, 6
    %s200 = smul.u32 %s199, 128
    %s201 = sld [smem:[#allocation5 + %s200]]
    %s202 = scalar_lea.vmem [#allocation6], %s201
    %v203 = vld [vmem:[%s202] sm:$0x1]
    %v204 = vpack.c.bf16 %v203, %v203
    %v206 = vrot.slane %v204, 5
    %vm208 = vcmask 1043459
    %vm209 = vsmask.f32 3328
    %vm210 = vmand %vm208, %vm209
    %v211 = vld [vmem:[#allocation2] sm:$0x8]
    %v212 = vsel %vm210, %v206, %v211
    %213 = vst [vmem:[#allocation2] sm:$0x8] %v212
    %s214 = sadd.s32 %s110, 7
    %s215 = smul.u32 %s214, 128
    %s216 = sld [smem:[#allocation5 + %s215]]
    %s217 = scalar_lea.vmem [#allocation6], %s216
    %v218 = vld [vmem:[%s217] sm:$0x1]
    %v219 = vpack.c.bf16 %v218, %v218
    %v221 = vshll.u32 %v219, 16
    %v223 = vrot.slane %v221, 5
    %vm225 = vsmask.f32 7950
    %vm226 = vmand %vm208, %vm225
    %v227 = vld [vmem:[#allocation2] sm:$0x8]
    %v228 = vsel %vm226, %v223, %v227
    %229 = vst [vmem:[#allocation2] sm:$0x8] %v228
    %s230 = sadd.s32 %s111, 1
    %s231 = sld [smem:[#allocation5 + %s230]]
    %s232 = scalar_lea.vmem [#allocation6], %s231
    %v233 = vld [vmem:[%s232] sm:$0x1]
    %v234 = vpack.c.bf16 %v233, %v233
    %v235 = vld [vmem:[#allocation2 + $0x4] sm:$0x1]
    %v236 = vsel %vm118, %v234, %v235
    %237 = vst [vmem:[#allocation2 + $0x4] sm:$0x1] %v236
    %s238 = sadd.s32 %s123, 1
    %s239 = sld [smem:[#allocation5 + %s238]]
    %s240 = scalar_lea.vmem [#allocation6], %s239
    %v241 = vld [vmem:[%s240] sm:$0x1]
    %v242 = vpack.c.bf16 %v241, %v241
    %v244 = vshll.u32 %v242, 16
    %v247 = vld [vmem:[#allocation2 + $0x4] sm:$0x1]
    %v248 = vsel %vm133, %v244, %v247
    %249 = vst [vmem:[#allocation2 + $0x4] sm:$0x1] %v248
    %s250 = sadd.s32 %s138, 1
    %s251 = sld [smem:[#allocation5 + %s250]]
    %s252 = scalar_lea.vmem [#allocation6], %s251
    %v253 = vld [vmem:[%s252] sm:$0x1]
    %v254 = vpack.c.bf16 %v253, %v253
    %v256 = vrot.slane %v254, 7
    %v258 = vld [vmem:[#allocation2 + $0x4] sm:$0x2]
    %v259 = vsel %vm148, %v256, %v258
    %260 = vst [vmem:[#allocation2 + $0x4] sm:$0x2] %v259
    %s261 = sadd.s32 %s153, 1
    %s262 = sld [smem:[#allocation5 + %s261]]
    %s263 = scalar_lea.vmem [#allocation6], %s262
    %v264 = vld [vmem:[%s263] sm:$0x1]
    %v265 = vpack.c.bf16 %v264, %v264
    %v267 = vshll.u32 %v265, 16
    %v269 = vrot.slane %v267, 7
    %v271 = vld [vmem:[#allocation2 + $0x4] sm:$0x2]
    %v272 = vsel %vm164, %v269, %v271
    %273 = vst [vmem:[#allocation2 + $0x4] sm:$0x2] %v272
    %s274 = sadd.s32 %s169, 1
    %s275 = sld [smem:[#allocation5 + %s274]]
    %s276 = scalar_lea.vmem [#allocation6], %s275
    %v277 = vld [vmem:[%s276] sm:$0x1]
    %v278 = vpack.c.bf16 %v277, %v277
    %v280 = vrot.slane %v278, 6
    %v282 = vld [vmem:[#allocation2 + $0x4] sm:$0x4]
    %v283 = vsel %vm179, %v280, %v282
    %284 = vst [vmem:[#allocation2 + $0x4] sm:$0x4] %v283
    %s285 = sadd.s32 %s184, 1
    %s286 = sld [smem:[#allocation5 + %s285]]
    %s287 = scalar_lea.vmem [#allocation6], %s286
    %v288 = vld [vmem:[%s287] sm:$0x1]
    %v289 = vpack.c.bf16 %v288, %v288
    %v291 = vshll.u32 %v289, 16
    %v293 = vrot.slane %v291, 6
    %v295 = vld [vmem:[#allocation2 + $0x4] sm:$0x4]
    %v296 = vsel %vm195, %v293, %v295
    %297 = vst [vmem:[#allocation2 + $0x4] sm:$0x4] %v296
    %s298 = sadd.s32 %s200, 1
    %s299 = sld [smem:[#allocation5 + %s298]]
    %s300 = scalar_lea.vmem [#allocation6], %s299
    %v301 = vld [vmem:[%s300] sm:$0x1]
    %v302 = vpack.c.bf16 %v301, %v301
    %v304 = vrot.slane %v302, 5
    %v306 = vld [vmem:[#allocation2 + $0x4] sm:$0x8]
    %v307 = vsel %vm210, %v304, %v306
    %308 = vst [vmem:[#allocation2 + $0x4] sm:$0x8] %v307
    %s309 = sadd.s32 %s215, 1
    %s310 = sld [smem:[#allocation5 + %s309]]
    %s311 = scalar_lea.vmem [#allocation6], %s310
    %v312 = vld [vmem:[%s311] sm:$0x1]
    %v313 = vpack.c.bf16 %v312, %v312
    %v315 = vshll.u32 %v313, 16
    %v317 = vrot.slane %v315, 5
    %v319 = vld [vmem:[#allocation2 + $0x4] sm:$0x8]
    %v320 = vsel %vm226, %v317, %v319
    %321 = vst [vmem:[#allocation2 + $0x4] sm:$0x8] %v320
    %s322 = sadd.s32 %s111, 2
    %s323 = sld [smem:[#allocation5 + %s322]]
    %s324 = scalar_lea.vmem [#allocation6], %s323
    %v325 = vld [vmem:[%s324] sm:$0x1]
    %v326 = vpack.c.bf16 %v325, %v325
    %v327 = vld [vmem:[#allocation2 + $0x8] sm:$0x1]
    %v328 = vsel %vm118, %v326, %v327
    %329 = vst [vmem:[#allocation2 + $0x8] sm:$0x1] %v328
    %s330 = sadd.s32 %s123, 2
    %s331 = sld [smem:[#allocation5 + %s330]]
    %s332 = scalar_lea.vmem [#allocation6], %s331
    %v333 = vld [vmem:[%s332] sm:$0x1]
    %v334 = vpack.c.bf16 %v333, %v333
    %v336 = vshll.u32 %v334, 16
    %v339 = vld [vmem:[#allocation2 + $0x8] sm:$0x1]
    %v340 = vsel %vm133, %v336, %v339
    %341 = vst [vmem:[#allocation2 + $0x8] sm:$0x1] %v340
    %s342 = sadd.s32 %s138, 2
    %s343 = sld [smem:[#allocation5 + %s342]]
    %s344 = scalar_lea.vmem [#allocation6], %s343
    %v345 = vld [vmem:[%s344] sm:$0x1]
    %v346 = vpack.c.bf16 %v345, %v345
    %v348 = vrot.slane %v346, 7
    %v350 = vld [vmem:[#allocation2 + $0x8] sm:$0x2]
    %v351 = vsel %vm148, %v348, %v350
    %352 = vst [vmem:[#allocation2 + $0x8] sm:$0x2] %v351
    %s353 = sadd.s32 %s153, 2
    %s354 = sld [smem:[#allocation5 + %s353]]
    %s355 = scalar_lea.vmem [#allocation6], %s354
    %v356 = vld [vmem:[%s355] sm:$0x1]
    %v357 = vpack.c.bf16 %v356, %v356
    %v359 = vshll.u32 %v357, 16
    %v361 = vrot.slane %v359, 7
    %v363 = vld [vmem:[#allocation2 + $0x8] sm:$0x2]
    %v364 = vsel %vm164, %v361, %v363
    %365 = vst [vmem:[#allocation2 + $0x8] sm:$0x2] %v364
    %s366 = sadd.s32 %s169, 2
    %s367 = sld [smem:[#allocation5 + %s366]]
    %s368 = scalar_lea.vmem [#allocation6], %s367
    %v369 = vld [vmem:[%s368] sm:$0x1]
    %v370 = vpack.c.bf16 %v369, %v369
    %v372 = vrot.slane %v370, 6
    %v374 = vld [vmem:[#allocation2 + $0x8] sm:$0x4]
    %v375 = vsel %vm179, %v372, %v374
    %376 = vst [vmem:[#allocation2 + $0x8] sm:$0x4] %v375
    %s377 = sadd.s32 %s184, 2
    %s378 = sld [smem:[#allocation5 + %s377]]
    %s379 = scalar_lea.vmem [#allocation6], %s378
    %v380 = vld [vmem:[%s379] sm:$0x1]
    %v381 = vpack.c.bf16 %v380, %v380
    %v383 = vshll.u32 %v381, 16
    %v385 = vrot.slane %v383, 6
    %v387 = vld [vmem:[#allocation2 + $0x8] sm:$0x4]
    %v388 = vsel %vm195, %v385, %v387
    %389 = vst [vmem:[#allocation2 + $0x8] sm:$0x4] %v388
    %s390 = sadd.s32 %s200, 2
    %s391 = sld [smem:[#allocation5 + %s390]]
    %s392 = scalar_lea.vmem [#allocation6], %s391
    %v393 = vld [vmem:[%s392] sm:$0x1]
    %v394 = vpack.c.bf16 %v393, %v393
    %v396 = vrot.slane %v394, 5
    %v398 = vld [vmem:[#allocation2 + $0x8] sm:$0x8]
    %v399 = vsel %vm210, %v396, %v398
    %400 = vst [vmem:[#allocation2 + $0x8] sm:$0x8] %v399
    %s401 = sadd.s32 %s215, 2
    %s402 = sld [smem:[#allocation5 + %s401]]
    %s403 = scalar_lea.vmem [#allocation6], %s402
    %v404 = vld [vmem:[%s403] sm:$0x1]
    %v405 = vpack.c.bf16 %v404, %v404
    %v407 = vshll.u32 %v405, 16
    %v409 = vrot.slane %v407, 5
    %v411 = vld [vmem:[#allocation2 + $0x8] sm:$0x8]
    %v412 = vsel %vm226, %v409, %v411
    %413 = vst [vmem:[#allocation2 + $0x8] sm:$0x8] %v412
    %s414 = sadd.s32 %s111, 3
    %s415 = sld [smem:[#allocation5 + %s414]]
    %s416 = scalar_lea.vmem [#allocation6], %s415
    %v417 = vld [vmem:[%s416] sm:$0x1]
    %v418 = vpack.c.bf16 %v417, %v417
    %v419 = vld [vmem:[#allocation2 + $0xc] sm:$0x1]
    %v420 = vsel %vm118, %v418, %v419
    %421 = vst [vmem:[#allocation2 + $0xc] sm:$0x1] %v420
    %s422 = sadd.s32 %s123, 3
    %s423 = sld [smem:[#allocation5 + %s422]]
    %s424 = scalar_lea.vmem [#allocation6], %s423
    %v425 = vld [vmem:[%s424] sm:$0x1]
    %v426 = vpack.c.bf16 %v425, %v425
    %v428 = vshll.u32 %v426, 16
    %v431 = vld [vmem:[#allocation2 + $0xc] sm:$0x1]
    %v432 = vsel %vm133, %v428, %v431
    %433 = vst [vmem:[#allocation2 + $0xc] sm:$0x1] %v432
    %s434 = sadd.s32 %s138, 3
    %s435 = sld [smem:[#allocation5 + %s434]]
    %s436 = scalar_lea.vmem [#allocation6], %s435
    %v437 = vld [vmem:[%s436] sm:$0x1]
    %v438 = vpack.c.bf16 %v437, %v437
    %v440 = vrot.slane %v438, 7
    %v442 = vld [vmem:[#allocation2 + $0xc] sm:$0x2]
    %v443 = vsel %vm148, %v440, %v442
    %444 = vst [vmem:[#allocation2 + $0xc] sm:$0x2] %v443
    %s445 = sadd.s32 %s153, 3
    %s446 = sld [smem:[#allocation5 + %s445]]
    %s447 = scalar_lea.vmem [#allocation6], %s446
    %v448 = vld [vmem:[%s447] sm:$0x1]
    %v449 = vpack.c.bf16 %v448, %v448
    %v451 = vshll.u32 %v449, 16
    %v453 = vrot.slane %v451, 7
    %v455 = vld [vmem:[#allocation2 + $0xc] sm:$0x2]
    %v456 = vsel %vm164, %v453, %v455
    %457 = vst [vmem:[#allocation2 + $0xc] sm:$0x2] %v456
    %s458 = sadd.s32 %s169, 3
    %s459 = sld [smem:[#allocation5 + %s458]]
    %s460 = scalar_lea.vmem [#allocation6], %s459
    %v461 = vld [vmem:[%s460] sm:$0x1]
    %v462 = vpack.c.bf16 %v461, %v461
    %v464 = vrot.slane %v462, 6
    %v466 = vld [vmem:[#allocation2 + $0xc] sm:$0x4]
    %v467 = vsel %vm179, %v464, %v466
    %468 = vst [vmem:[#allocation2 + $0xc] sm:$0x4] %v467
    %s469 = sadd.s32 %s184, 3
    %s470 = sld [smem:[#allocation5 + %s469]]
    %s471 = scalar_lea.vmem [#allocation6], %s470
    %v472 = vld [vmem:[%s471] sm:$0x1]
    %v473 = vpack.c.bf16 %v472, %v472
    %v475 = vshll.u32 %v473, 16
    %v477 = vrot.slane %v475, 6
    %v479 = vld [vmem:[#allocation2 + $0xc] sm:$0x4]
    %v480 = vsel %vm195, %v477, %v479
    %481 = vst [vmem:[#allocation2 + $0xc] sm:$0x4] %v480
    %s482 = sadd.s32 %s200, 3
    %s483 = sld [smem:[#allocation5 + %s482]]
    %s484 = scalar_lea.vmem [#allocation6], %s483
    %v485 = vld [vmem:[%s484] sm:$0x1]
    %v486 = vpack.c.bf16 %v485, %v485
    %v488 = vrot.slane %v486, 5
    %v490 = vld [vmem:[#allocation2 + $0xc] sm:$0x8]
    %v491 = vsel %vm210, %v488, %v490
    %492 = vst [vmem:[#allocation2 + $0xc] sm:$0x8] %v491
    %s493 = sadd.s32 %s215, 3
    %s494 = sld [smem:[#allocation5 + %s493]]
    %s495 = scalar_lea.vmem [#allocation6], %s494
    %v496 = vld [vmem:[%s495] sm:$0x1]
    %v497 = vpack.c.bf16 %v496, %v496
    %v499 = vshll.u32 %v497, 16
    %v501 = vrot.slane %v499, 5
    %v503 = vld [vmem:[#allocation2 + $0xc] sm:$0x8]
    %v504 = vsel %vm226, %v501, %v503
    %505 = vst [vmem:[#allocation2 + $0xc] sm:$0x8] %v504
    %s506 = sadd.s32 %s111, 4
    %s507 = sld [smem:[#allocation5 + %s506]]
    %s508 = scalar_lea.vmem [#allocation6], %s507
    %v509 = vld [vmem:[%s508] sm:$0x1]
    %v510 = vpack.c.bf16 %v509, %v509
    %v511 = vld [vmem:[#allocation2 + $0x10] sm:$0x1]
    %v512 = vsel %vm118, %v510, %v511
    %513 = vst [vmem:[#allocation2 + $0x10] sm:$0x1] %v512
    %s514 = sadd.s32 %s123, 4
    %s515 = sld [smem:[#allocation5 + %s514]]
    %s516 = scalar_lea.vmem [#allocation6], %s515
    %v517 = vld [vmem:[%s516] sm:$0x1]
    %v518 = vpack.c.bf16 %v517, %v517
    %v520 = vshll.u32 %v518, 16
    %v523 = vld [vmem:[#allocation2 + $0x10] sm:$0x1]
    %v524 = vsel %vm133, %v520, %v523
    %525 = vst [vmem:[#allocation2 + $0x10] sm:$0x1] %v524
    %s526 = sadd.s32 %s138, 4
    %s527 = sld [smem:[#allocation5 + %s526]]
    %s528 = scalar_lea.vmem [#allocation6], %s527
    %v529 = vld [vmem:[%s528] sm:$0x1]
    %v530 = vpack.c.bf16 %v529, %v529
    %v532 = vrot.slane %v530, 7
    %v534 = vld [vmem:[#allocation2 + $0x10] sm:$0x2]
    %v535 = vsel %vm148, %v532, %v534
    %536 = vst [vmem:[#allocation2 + $0x10] sm:$0x2] %v535
    %s537 = sadd.s32 %s153, 4
    %s538 = sld [smem:[#allocation5 + %s537]]
    %s539 = scalar_lea.vmem [#allocation6], %s538
    %v540 = vld [vmem:[%s539] sm:$0x1]
    %v541 = vpack.c.bf16 %v540, %v540
    %v543 = vshll.u32 %v541, 16
    %v545 = vrot.slane %v543, 7
    %v547 = vld [vmem:[#allocation2 + $0x10] sm:$0x2]
    %v548 = vsel %vm164, %v545, %v547
    %549 = vst [vmem:[#allocation2 + $0x10] sm:$0x2] %v548
    %s550 = sadd.s32 %s169, 4
    %s551 = sld [smem:[#allocation5 + %s550]]
    %s552 = scalar_lea.vmem [#allocation6], %s551
    %v553 = vld [vmem:[%s552] sm:$0x1]
    %v554 = vpack.c.bf16 %v553, %v553
    %v556 = vrot.slane %v554, 6
    %v558 = vld [vmem:[#allocation2 + $0x10] sm:$0x4]
    %v559 = vsel %vm179, %v556, %v558
    %560 = vst [vmem:[#allocation2 + $0x10] sm:$0x4] %v559
    %s561 = sadd.s32 %s184, 4
    %s562 = sld [smem:[#allocation5 + %s561]]
    %s563 = scalar_lea.vmem [#allocation6], %s562
    %v564 = vld [vmem:[%s563] sm:$0x1]
    %v565 = vpack.c.bf16 %v564, %v564
    %v567 = vshll.u32 %v565, 16
    %v569 = vrot.slane %v567, 6
    %v571 = vld [vmem:[#allocation2 + $0x10] sm:$0x4]
    %v572 = vsel %vm195, %v569, %v571
    %573 = vst [vmem:[#allocation2 + $0x10] sm:$0x4] %v572
    %s574 = sadd.s32 %s200, 4
    %s575 = sld [smem:[#allocation5 + %s574]]
    %s576 = scalar_lea.vmem [#allocation6], %s575
    %v577 = vld [vmem:[%s576] sm:$0x1]
    %v578 = vpack.c.bf16 %v577, %v577
    %v580 = vrot.slane %v578, 5
    %v582 = vld [vmem:[#allocation2 + $0x10] sm:$0x8]
    %v583 = vsel %vm210, %v580, %v582
    %584 = vst [vmem:[#allocation2 + $0x10] sm:$0x8] %v583
    %s585 = sadd.s32 %s215, 4
    %s586 = sld [smem:[#allocation5 + %s585]]
    %s587 = scalar_lea.vmem [#allocation6], %s586
    %v588 = vld [vmem:[%s587] sm:$0x1]
    %v589 = vpack.c.bf16 %v588, %v588
    %v591 = vshll.u32 %v589, 16
    %v593 = vrot.slane %v591, 5
    %v595 = vld [vmem:[#allocation2 + $0x10] sm:$0x8]
    %v596 = vsel %vm226, %v593, %v595
    %597 = vst [vmem:[#allocation2 + $0x10] sm:$0x8] %v596
    %s598 = sadd.s32 %s111, 5
    %s599 = sld [smem:[#allocation5 + %s598]]
    %s600 = scalar_lea.vmem [#allocation6], %s599
    %v601 = vld [vmem:[%s600] sm:$0x1]
    %v602 = vpack.c.bf16 %v601, %v601
    %v603 = vld [vmem:[#allocation2 + $0x14] sm:$0x1]
    %v604 = vsel %vm118, %v602, %v603
    %605 = vst [vmem:[#allocation2 + $0x14] sm:$0x1] %v604
    %s606 = sadd.s32 %s123, 5
    %s607 = sld [smem:[#allocation5 + %s606]]
    %s608 = scalar_lea.vmem [#allocation6], %s607
    %v609 = vld [vmem:[%s608] sm:$0x1]
    %v610 = vpack.c.bf16 %v609, %v609
    %v612 = vshll.u32 %v610, 16
    %v615 = vld [vmem:[#allocation2 + $0x14] sm:$0x1]
    %v616 = vsel %vm133, %v612, %v615
    %617 = vst [vmem:[#allocation2 + $0x14] sm:$0x1] %v616
    %s618 = sadd.s32 %s138, 5
    %s619 = sld [smem:[#allocation5 + %s618]]
    %s620 = scalar_lea.vmem [#allocation6], %s619
    %v621 = vld [vmem:[%s620] sm:$0x1]
    %v622 = vpack.c.bf16 %v621, %v621
    %v624 = vrot.slane %v622, 7
    %v626 = vld [vmem:[#allocation2 + $0x14] sm:$0x2]
    %v627 = vsel %vm148, %v624, %v626
    %628 = vst [vmem:[#allocation2 + $0x14] sm:$0x2] %v627
    %s629 = sadd.s32 %s153, 5
    %s630 = sld [smem:[#allocation5 + %s629]]
    %s631 = scalar_lea.vmem [#allocation6], %s630
    %v632 = vld [vmem:[%s631] sm:$0x1]
    %v633 = vpack.c.bf16 %v632, %v632
    %v635 = vshll.u32 %v633, 16
    %v637 = vrot.slane %v635, 7
    %v639 = vld [vmem:[#allocation2 + $0x14] sm:$0x2]
    %v640 = vsel %vm164, %v637, %v639
    %641 = vst [vmem:[#allocation2 + $0x14] sm:$0x2] %v640
    %s642 = sadd.s32 %s169, 5
    %s643 = sld [smem:[#allocation5 + %s642]]
    %s644 = scalar_lea.vmem [#allocation6], %s643
    %v645 = vld [vmem:[%s644] sm:$0x1]
    %v646 = vpack.c.bf16 %v645, %v645
    %v648 = vrot.slane %v646, 6
    %v650 = vld [vmem:[#allocation2 + $0x14] sm:$0x4]
    %v651 = vsel %vm179, %v648, %v650
    %652 = vst [vmem:[#allocation2 + $0x14] sm:$0x4] %v651
    %s653 = sadd.s32 %s184, 5
    %s654 = sld [smem:[#allocation5 + %s653]]
    %s655 = scalar_lea.vmem [#allocation6], %s654
    %v656 = vld [vmem:[%s655] sm:$0x1]
    %v657 = vpack.c.bf16 %v656, %v656
    %v659 = vshll.u32 %v657, 16
    %v661 = vrot.slane %v659, 6
    %v663 = vld [vmem:[#allocation2 + $0x14] sm:$0x4]
    %v664 = vsel %vm195, %v661, %v663
    %665 = vst [vmem:[#allocation2 + $0x14] sm:$0x4] %v664
    %s666 = sadd.s32 %s200, 5
    %s667 = sld [smem:[#allocation5 + %s666]]
    %s668 = scalar_lea.vmem [#allocation6], %s667
    %v669 = vld [vmem:[%s668] sm:$0x1]
    %v670 = vpack.c.bf16 %v669, %v669
    %v672 = vrot.slane %v670, 5
    %v674 = vld [vmem:[#allocation2 + $0x14] sm:$0x8]
    %v675 = vsel %vm210, %v672, %v674
    %676 = vst [vmem:[#allocation2 + $0x14] sm:$0x8] %v675
    %s677 = sadd.s32 %s215, 5
    %s678 = sld [smem:[#allocation5 + %s677]]
    %s679 = scalar_lea.vmem [#allocation6], %s678
    %v680 = vld [vmem:[%s679] sm:$0x1]
    %v681 = vpack.c.bf16 %v680, %v680
    %v683 = vshll.u32 %v681, 16
    %v685 = vrot.slane %v683, 5
    %v687 = vld [vmem:[#allocation2 + $0x14] sm:$0x8]
    %v688 = vsel %vm226, %v685, %v687
    %689 = vst [vmem:[#allocation2 + $0x14] sm:$0x8] %v688
    %s690 = sadd.s32 %s111, 6
    %s691 = sld [smem:[#allocation5 + %s690]]
    %s692 = scalar_lea.vmem [#allocation6], %s691
    %v693 = vld [vmem:[%s692] sm:$0x1]
    %v694 = vpack.c.bf16 %v693, %v693
    %v695 = vld [vmem:[#allocation2 + $0x18] sm:$0x1]
    %v696 = vsel %vm118, %v694, %v695
    %697 = vst [vmem:[#allocation2 + $0x18] sm:$0x1] %v696
    %s698 = sadd.s32 %s123, 6
    %s699 = sld [smem:[#allocation5 + %s698]]
    %s700 = scalar_lea.vmem [#allocation6], %s699
    %v701 = vld [vmem:[%s700] sm:$0x1]
    %v702 = vpack.c.bf16 %v701, %v701
    %v704 = vshll.u32 %v702, 16
    %v707 = vld [vmem:[#allocation2 + $0x18] sm:$0x1]
    %v708 = vsel %vm133, %v704, %v707
    %709 = vst [vmem:[#allocation2 + $0x18] sm:$0x1] %v708
    %s710 = sadd.s32 %s138, 6
    %s711 = sld [smem:[#allocation5 + %s710]]
    %s712 = scalar_lea.vmem [#allocation6], %s711
    %v713 = vld [vmem:[%s712] sm:$0x1]
    %v714 = vpack.c.bf16 %v713, %v713
    %v716 = vrot.slane %v714, 7
    %v718 = vld [vmem:[#allocation2 + $0x18] sm:$0x2]
    %v719 = vsel %vm148, %v716, %v718
    %720 = vst [vmem:[#allocation2 + $0x18] sm:$0x2] %v719
    %s721 = sadd.s32 %s153, 6
    %s722 = sld [smem:[#allocation5 + %s721]]
    %s723 = scalar_lea.vmem [#allocation6], %s722
    %v724 = vld [vmem:[%s723] sm:$0x1]
    %v725 = vpack.c.bf16 %v724, %v724
    %v727 = vshll.u32 %v725, 16
    %v729 = vrot.slane %v727, 7
    %v731 = vld [vmem:[#allocation2 + $0x18] sm:$0x2]
    %v732 = vsel %vm164, %v729, %v731
    %733 = vst [vmem:[#allocation2 + $0x18] sm:$0x2] %v732
    %s734 = sadd.s32 %s169, 6
    %s735 = sld [smem:[#allocation5 + %s734]]
    %s736 = scalar_lea.vmem [#allocation6], %s735
    %v737 = vld [vmem:[%s736] sm:$0x1]
    %v738 = vpack.c.bf16 %v737, %v737
    %v740 = vrot.slane %v738, 6
    %v742 = vld [vmem:[#allocation2 + $0x18] sm:$0x4]
    %v743 = vsel %vm179, %v740, %v742
    %744 = vst [vmem:[#allocation2 + $0x18] sm:$0x4] %v743
    %s745 = sadd.s32 %s184, 6
    %s746 = sld [smem:[#allocation5 + %s745]]
    %s747 = scalar_lea.vmem [#allocation6], %s746
    %v748 = vld [vmem:[%s747] sm:$0x1]
    %v749 = vpack.c.bf16 %v748, %v748
    %v751 = vshll.u32 %v749, 16
    %v753 = vrot.slane %v751, 6
    %v755 = vld [vmem:[#allocation2 + $0x18] sm:$0x4]
    %v756 = vsel %vm195, %v753, %v755
    %757 = vst [vmem:[#allocation2 + $0x18] sm:$0x4] %v756
    %s758 = sadd.s32 %s200, 6
    %s759 = sld [smem:[#allocation5 + %s758]]
    %s760 = scalar_lea.vmem [#allocation6], %s759
    %v761 = vld [vmem:[%s760] sm:$0x1]
    %v762 = vpack.c.bf16 %v761, %v761
    %v764 = vrot.slane %v762, 5
    %v766 = vld [vmem:[#allocation2 + $0x18] sm:$0x8]
    %v767 = vsel %vm210, %v764, %v766
    %768 = vst [vmem:[#allocation2 + $0x18] sm:$0x8] %v767
    %s769 = sadd.s32 %s215, 6
    %s770 = sld [smem:[#allocation5 + %s769]]
    %s771 = scalar_lea.vmem [#allocation6], %s770
    %v772 = vld [vmem:[%s771] sm:$0x1]
    %v773 = vpack.c.bf16 %v772, %v772
    %v775 = vshll.u32 %v773, 16
    %v777 = vrot.slane %v775, 5
    %v779 = vld [vmem:[#allocation2 + $0x18] sm:$0x8]
    %v780 = vsel %vm226, %v777, %v779
    %781 = vst [vmem:[#allocation2 + $0x18] sm:$0x8] %v780
    %s782 = sadd.s32 %s111, 7
    %s783 = sld [smem:[#allocation5 + %s782]]
    %s784 = scalar_lea.vmem [#allocation6], %s783
    %v785 = vld [vmem:[%s784] sm:$0x1]
    %v786 = vpack.c.bf16 %v785, %v785
    %v787 = vld [vmem:[#allocation2 + $0x1c] sm:$0x1]
    %v788 = vsel %vm118, %v786, %v787
    %789 = vst [vmem:[#allocation2 + $0x1c] sm:$0x1] %v788
    %s790 = sadd.s32 %s123, 7
    %s791 = sld [smem:[#allocation5 + %s790]]
    %s792 = scalar_lea.vmem [#allocation6], %s791
    %v793 = vld [vmem:[%s792] sm:$0x1]
    %v794 = vpack.c.bf16 %v793, %v793
    %v796 = vshll.u32 %v794, 16
    %v799 = vld [vmem:[#allocation2 + $0x1c] sm:$0x1]
    %v800 = vsel %vm133, %v796, %v799
    %801 = vst [vmem:[#allocation2 + $0x1c] sm:$0x1] %v800
    %s802 = sadd.s32 %s138, 7
    %s803 = sld [smem:[#allocation5 + %s802]]
    %s804 = scalar_lea.vmem [#allocation6], %s803
    %v805 = vld [vmem:[%s804] sm:$0x1]
    %v806 = vpack.c.bf16 %v805, %v805
    %v808 = vrot.slane %v806, 7
    %v810 = vld [vmem:[#allocation2 + $0x1c] sm:$0x2]
    %v811 = vsel %vm148, %v808, %v810
    %812 = vst [vmem:[#allocation2 + $0x1c] sm:$0x2] %v811
    %s813 = sadd.s32 %s153, 7
    %s814 = sld [smem:[#allocation5 + %s813]]
    %s815 = scalar_lea.vmem [#allocation6], %s814
    %v816 = vld [vmem:[%s815] sm:$0x1]
    %v817 = vpack.c.bf16 %v816, %v816
    %v819 = vshll.u32 %v817, 16
    %v821 = vrot.slane %v819, 7
    %v823 = vld [vmem:[#allocation2 + $0x1c] sm:$0x2]
    %v824 = vsel %vm164, %v821, %v823
    %825 = vst [vmem:[#allocation2 + $0x1c] sm:$0x2] %v824
    %s826 = sadd.s32 %s169, 7
    %s827 = sld [smem:[#allocation5 + %s826]]
    %s828 = scalar_lea.vmem [#allocation6], %s827
    %v829 = vld [vmem:[%s828] sm:$0x1]
    %v830 = vpack.c.bf16 %v829, %v829
    %v832 = vrot.slane %v830, 6
    %v834 = vld [vmem:[#allocation2 + $0x1c] sm:$0x4]
    %v835 = vsel %vm179, %v832, %v834
    %836 = vst [vmem:[#allocation2 + $0x1c] sm:$0x4] %v835
    %s837 = sadd.s32 %s184, 7
    %s838 = sld [smem:[#allocation5 + %s837]]
    %s839 = scalar_lea.vmem [#allocation6], %s838
    %v840 = vld [vmem:[%s839] sm:$0x1]
    %v841 = vpack.c.bf16 %v840, %v840
    %v843 = vshll.u32 %v841, 16
    %v845 = vrot.slane %v843, 6
    %v847 = vld [vmem:[#allocation2 + $0x1c] sm:$0x4]
    %v848 = vsel %vm195, %v845, %v847
    %849 = vst [vmem:[#allocation2 + $0x1c] sm:$0x4] %v848
    %s850 = sadd.s32 %s200, 7
    %s851 = sld [smem:[#allocation5 + %s850]]
    %s852 = scalar_lea.vmem [#allocation6], %s851
    %v853 = vld [vmem:[%s852] sm:$0x1]
    %v854 = vpack.c.bf16 %v853, %v853
    %v856 = vrot.slane %v854, 5
    %v858 = vld [vmem:[#allocation2 + $0x1c] sm:$0x8]
    %v859 = vsel %vm210, %v856, %v858
    %860 = vst [vmem:[#allocation2 + $0x1c] sm:$0x8] %v859
    %s861 = sadd.s32 %s215, 7
    %s862 = sld [smem:[#allocation5 + %s861]]
    %s863 = scalar_lea.vmem [#allocation6], %s862
    %v864 = vld [vmem:[%s863] sm:$0x1]
    %v865 = vpack.c.bf16 %v864, %v864
    %v867 = vshll.u32 %v865, 16
    %v869 = vrot.slane %v867, 5
    %v871 = vld [vmem:[#allocation2 + $0x1c] sm:$0x8]
    %v872 = vsel %vm226, %v869, %v871
    %873 = vst [vmem:[#allocation2 + $0x1c] sm:$0x8] %v872
    %v874 = vld [vmem:[#allocation2] sm:$0xf]
    %v875 = vld [vmem:[#allocation2 + $0x4] sm:$0xf]
    %v876 = vld [vmem:[#allocation2 + $0x8] sm:$0xf]
    %v877 = vld [vmem:[#allocation2 + $0xc] sm:$0xf]
    %v878 = vld [vmem:[#allocation2 + $0x10] sm:$0xf]
    %v879 = vld [vmem:[#allocation2 + $0x14] sm:$0xf]
    %v880 = vld [vmem:[#allocation2 + $0x18] sm:$0xf]
    %v881 = vld [vmem:[#allocation2 + $0x1c] sm:$0xf]
    %v882 = vld [vmem:[#allocation9] sm:$0xff]
    %v883 = vld [vmem:[#allocation9 + $0x8] sm:$0xff]
    %v884 = vld [vmem:[#allocation9 + $0x10] sm:$0xff]
    %v885 = vld [vmem:[#allocation9 + $0x18] sm:$0xff]
    %v886 = vld [vmem:[#allocation9 + $0x20] sm:$0xff]
    %v887 = vld [vmem:[#allocation9 + $0x28] sm:$0xff]
    %v888 = vld [vmem:[#allocation9 + $0x30] sm:$0xff]
    %v889 = vld [vmem:[#allocation9 + $0x38] sm:$0xff]
    %v890 = vld [vmem:[#allocation9 + $0x40] sm:$0xff]
    %v891 = vld [vmem:[#allocation9 + $0x48] sm:$0xff]
    %v892 = vld [vmem:[#allocation9 + $0x50] sm:$0xff]
    %v893 = vld [vmem:[#allocation9 + $0x58] sm:$0xff]
    %v894 = vld [vmem:[#allocation9 + $0x60] sm:$0xff]
    %v895 = vld [vmem:[#allocation9 + $0x68] sm:$0xff]
    %v896 = vld [vmem:[#allocation9 + $0x70] sm:$0xff]
    %v897 = vld [vmem:[#allocation9 + $0x78] sm:$0xff]
    %v898 = vld [vmem:[#allocation9 + $0x80] sm:$0xff]
    %v899 = vld [vmem:[#allocation9 + $0x88] sm:$0xff]
    %v900 = vld [vmem:[#allocation9 + $0x90] sm:$0xff]
    %v901 = vld [vmem:[#allocation9 + $0x98] sm:$0xff]
    %v902 = vld [vmem:[#allocation9 + $0xa0] sm:$0xff]
    %v903 = vld [vmem:[#allocation9 + $0xa8] sm:$0xff]
    %v904 = vld [vmem:[#allocation9 + $0xb0] sm:$0xff]
    %v905 = vld [vmem:[#allocation9 + $0xb8] sm:$0xff]
    %v906 = vld [vmem:[#allocation9 + $0xc0] sm:$0xff]
    %v907 = vld [vmem:[#allocation9 + $0xc8] sm:$0xff]
    %v908 = vld [vmem:[#allocation9 + $0xd0] sm:$0xff]
    %v909 = vld [vmem:[#allocation9 + $0xd8] sm:$0xff]
    %v910 = vld [vmem:[#allocation9 + $0xe0] sm:$0xff]
    %v911 = vld [vmem:[#allocation9 + $0xe8] sm:$0xff]
    %v912 = vld [vmem:[#allocation9 + $0xf0] sm:$0xff]
    %v913 = vld [vmem:[#allocation9 + $0xf8] sm:$0xff]
    %v914 = vld [vmem:[#allocation12] sm:$0xf]
    %v916 = vperm.slane %v914, 0
    %v917 = vperm.slane %v914, 1
    %v918 = vperm.slane %v914, 2
    %v919 = vperm.slane %v914, 3
    %v932 = vunpack.c.l.b16 %v874
    %v933 = vunpack.c.l.b16 %v875
    %v934 = vunpack.c.l.b16 %v876
    %v935 = vunpack.c.l.b16 %v877
    %v936 = vunpack.c.l.b16 %v878
    %v937 = vunpack.c.l.b16 %v879
    %v938 = vunpack.c.l.b16 %v880
    %v939 = vunpack.c.l.b16 %v881
    %v940 = vpack.c.b16 %v933, %v932
    %v941 = vpack.c.b16 %v935, %v934
    %v942 = vpack.c.b16 %v937, %v936
    %v943 = vpack.c.b16 %v939, %v938
    %v980 = vunpack.c.l.b16 %v882
    %v981 = vunpack.c.h.b16 %v882
    %v982 = vunpack.c.l.b16 %v883
    %v983 = vunpack.c.h.b16 %v883
    %v984 = vunpack.c.l.b16 %v884
    %v985 = vunpack.c.h.b16 %v884
    %v986 = vunpack.c.l.b16 %v885
    %v987 = vunpack.c.h.b16 %v885
    %v988 = vunpack.c.l.b16 %v886
    %v989 = vunpack.c.h.b16 %v886
    %v990 = vunpack.c.l.b16 %v887
    %v991 = vunpack.c.h.b16 %v887
    %v992 = vunpack.c.l.b16 %v888
    %v993 = vunpack.c.h.b16 %v888
    %v994 = vunpack.c.l.b16 %v889
    %v995 = vunpack.c.h.b16 %v889
    %v996 = vunpack.c.l.b16 %v890
    %v997 = vunpack.c.h.b16 %v890
    %v998 = vunpack.c.l.b16 %v891
    %v999 = vunpack.c.h.b16 %v891
    %v1000 = vunpack.c.l.b16 %v892
    %v1001 = vunpack.c.h.b16 %v892
    %v1002 = vunpack.c.l.b16 %v893
    %v1003 = vunpack.c.h.b16 %v893
    %v1004 = vunpack.c.l.b16 %v894
    %v1005 = vunpack.c.h.b16 %v894
    %v1006 = vunpack.c.l.b16 %v895
    %v1007 = vunpack.c.h.b16 %v895
    %v1008 = vunpack.c.l.b16 %v896
    %v1009 = vunpack.c.h.b16 %v896
    %v1010 = vunpack.c.l.b16 %v897
    %v1011 = vunpack.c.h.b16 %v897
    %v1012 = vunpack.c.l.b16 %v898
    %v1013 = vunpack.c.h.b16 %v898
    %v1014 = vunpack.c.l.b16 %v899
    %v1015 = vunpack.c.h.b16 %v899
    %v1016 = vunpack.c.l.b16 %v900
    %v1017 = vunpack.c.h.b16 %v900
    %v1018 = vunpack.c.l.b16 %v901
    %v1019 = vunpack.c.h.b16 %v901
    %v1020 = vunpack.c.l.b16 %v902
    %v1021 = vunpack.c.h.b16 %v902
    %v1022 = vunpack.c.l.b16 %v903
    %v1023 = vunpack.c.h.b16 %v903
    %v1024 = vunpack.c.l.b16 %v904
    %v1025 = vunpack.c.h.b16 %v904
    %v1026 = vunpack.c.l.b16 %v905
    %v1027 = vunpack.c.h.b16 %v905
    %v1028 = vunpack.c.l.b16 %v906
    %v1029 = vunpack.c.h.b16 %v906
    %v1030 = vunpack.c.l.b16 %v907
    %v1031 = vunpack.c.h.b16 %v907
    %v1032 = vunpack.c.l.b16 %v908
    %v1033 = vunpack.c.h.b16 %v908
    %v1034 = vunpack.c.l.b16 %v909
    %v1035 = vunpack.c.h.b16 %v909
    %v1036 = vunpack.c.l.b16 %v910
    %v1037 = vunpack.c.h.b16 %v910
    %v1038 = vunpack.c.l.b16 %v911
    %v1039 = vunpack.c.h.b16 %v911
    %v1040 = vunpack.c.l.b16 %v912
    %v1041 = vunpack.c.h.b16 %v912
    %v1042 = vunpack.c.l.b16 %v913
    %v1043 = vunpack.c.h.b16 %v913
    %v1044 = vpack.c.b16 %v984, %v980
    %v1045 = vpack.c.b16 %v985, %v981
    %v1046 = vpack.c.b16 %v986, %v982
    %v1047 = vpack.c.b16 %v987, %v983
    %v1048 = vpack.c.b16 %v992, %v988
    %v1049 = vpack.c.b16 %v993, %v989
    %v1050 = vpack.c.b16 %v994, %v990
    %v1051 = vpack.c.b16 %v995, %v991
    %v1052 = vpack.c.b16 %v1000, %v996
    %v1053 = vpack.c.b16 %v1001, %v997
    %v1054 = vpack.c.b16 %v1002, %v998
    %v1055 = vpack.c.b16 %v1003, %v999
    %v1056 = vpack.c.b16 %v1008, %v1004
    %v1057 = vpack.c.b16 %v1009, %v1005
    %v1058 = vpack.c.b16 %v1010, %v1006
    %v1059 = vpack.c.b16 %v1011, %v1007
    %v1060 = vpack.c.b16 %v1016, %v1012
    %v1061 = vpack.c.b16 %v1017, %v1013
    %v1062 = vpack.c.b16 %v1018, %v1014
    %v1063 = vpack.c.b16 %v1019, %v1015
    %v1064 = vpack.c.b16 %v1024, %v1020
    %v1065 = vpack.c.b16 %v1025, %v1021
    %v1066 = vpack.c.b16 %v1026, %v1022
    %v1067 = vpack.c.b16 %v1027, %v1023
    %v1068 = vpack.c.b16 %v1032, %v1028
    %v1069 = vpack.c.b16 %v1033, %v1029
    %v1070 = vpack.c.b16 %v1034, %v1030
    %v1071 = vpack.c.b16 %v1035, %v1031
    %v1072 = vpack.c.b16 %v1040, %v1036
    %v1073 = vpack.c.b16 %v1041, %v1037
    %v1074 = vpack.c.b16 %v1042, %v1038
    %v1075 = vpack.c.b16 %v1043, %v1039
    %1108 = vmatpush.bf16.msra.mxu0 %v1072
    %1109 = vmatpush.bf16.msra.mxu0 %v1068
    %1110 = vmatpush.bf16.msra.mxu0 %v1064
    %1111 = vmatpush.bf16.msra.mxu0 %v1060
    %1112 = vmatpush.bf16.msra.mxu0 %v1056
    %1113 = vmatpush.bf16.msra.mxu0 %v1052
    %1114 = vmatpush.bf16.msra.mxu0 %v1048
    %1115 = vmatpush.bf16.msra.mxu0 %v1044
    %1116 = vmatmul.bf16.gmra.mxu0 %v940
    %v1117 = vpop.f32.mrf.mxu0
    %v1118 = vadd.f32 %v916, %v1117
    %v1119 = vpop.f32.mrf.mxu0
    %v1120 = vadd.f32 %v916, %v1119
    %1121 = vmatmul.bf16.gmra.mxu0 %v941
    %v1122 = vpop.f32.mrf.mxu0
    %v1123 = vadd.f32 %v916, %v1122
    %v1124 = vpop.f32.mrf.mxu0
    %v1125 = vadd.f32 %v916, %v1124
    %1126 = vmatmul.bf16.gmra.mxu0 %v942
    %v1127 = vpop.f32.mrf.mxu0
    %v1128 = vadd.f32 %v916, %v1127
    %v1129 = vpop.f32.mrf.mxu0
    %v1130 = vadd.f32 %v916, %v1129
    %1131 = vmatmul.bf16.gmra.mxu0 %v943
    %v1132 = vpop.f32.mrf.mxu0
    %v1133 = vadd.f32 %v916, %v1132
    %v1134 = vpop.f32.mrf.mxu0
    %v1135 = vadd.f32 %v916, %v1134
    %1136 = vdwg.mxu0
    %1137 = vmatpush.bf16.msra.mxu0 %v1073
    %1138 = vmatpush.bf16.msra.mxu0 %v1069
    %1139 = vmatpush.bf16.msra.mxu0 %v1065
    %1140 = vmatpush.bf16.msra.mxu0 %v1061
    %1141 = vmatpush.bf16.msra.mxu0 %v1057
    %1142 = vmatpush.bf16.msra.mxu0 %v1053
    %1143 = vmatpush.bf16.msra.mxu0 %v1049
    %1144 = vmatpush.bf16.msra.mxu0 %v1045
    %1145 = vmatmul.bf16.gmra.mxu0 %v940
    %v1146 = vpop.f32.mrf.mxu0
    %v1147 = vadd.f32 %v917, %v1146
    %v1148 = vpop.f32.mrf.mxu0
    %v1149 = vadd.f32 %v917, %v1148
    %1150 = vmatmul.bf16.gmra.mxu0 %v941
    %v1151 = vpop.f32.mrf.mxu0
    %v1152 = vadd.f32 %v917, %v1151
    %v1153 = vpop.f32.mrf.mxu0
    %v1154 = vadd.f32 %v917, %v1153
    %1155 = vmatmul.bf16.gmra.mxu0 %v942
    %v1156 = vpop.f32.mrf.mxu0
    %v1157 = vadd.f32 %v917, %v1156
    %v1158 = vpop.f32.mrf.mxu0
    %v1159 = vadd.f32 %v917, %v1158
    %1160 = vmatmul.bf16.gmra.mxu0 %v943
    %v1161 = vpop.f32.mrf.mxu0
    %v1162 = vadd.f32 %v917, %v1161
    %v1163 = vpop.f32.mrf.mxu0
    %v1164 = vadd.f32 %v917, %v1163
    %1165 = vdwg.mxu0
    %1166 = vmatpush.bf16.msra.mxu0 %v1074
    %1167 = vmatpush.bf16.msra.mxu0 %v1070
    %1168 = vmatpush.bf16.msra.mxu0 %v1066
    %1169 = vmatpush.bf16.msra.mxu0 %v1062
    %1170 = vmatpush.bf16.msra.mxu0 %v1058
    %1171 = vmatpush.bf16.msra.mxu0 %v1054
    %1172 = vmatpush.bf16.msra.mxu0 %v1050
    %1173 = vmatpush.bf16.msra.mxu0 %v1046
    %1174 = vmatmul.bf16.gmra.mxu0 %v940
    %v1175 = vpop.f32.mrf.mxu0
    %v1176 = vadd.f32 %v918, %v1175
    %v1177 = vpop.f32.mrf.mxu0
    %v1178 = vadd.f32 %v918, %v1177
    %1179 = vmatmul.bf16.gmra.mxu0 %v941
    %v1180 = vpop.f32.mrf.mxu0
    %v1181 = vadd.f32 %v918, %v1180
    %v1182 = vpop.f32.mrf.mxu0
    %v1183 = vadd.f32 %v918, %v1182
    %1184 = vmatmul.bf16.gmra.mxu0 %v942
    %v1185 = vpop.f32.mrf.mxu0
    %v1186 = vadd.f32 %v918, %v1185
    %v1187 = vpop.f32.mrf.mxu0
    %v1188 = vadd.f32 %v918, %v1187
    %1189 = vmatmul.bf16.gmra.mxu0 %v943
    %v1190 = vpop.f32.mrf.mxu0
    %v1191 = vadd.f32 %v918, %v1190
    %v1192 = vpop.f32.mrf.mxu0
    %v1193 = vadd.f32 %v918, %v1192
    %1194 = vdwg.mxu0
    %1195 = vmatpush.bf16.msra.mxu0 %v1075
    %1196 = vmatpush.bf16.msra.mxu0 %v1071
    %1197 = vmatpush.bf16.msra.mxu0 %v1067
    %1198 = vmatpush.bf16.msra.mxu0 %v1063
    %1199 = vmatpush.bf16.msra.mxu0 %v1059
    %1200 = vmatpush.bf16.msra.mxu0 %v1055
    %1201 = vmatpush.bf16.msra.mxu0 %v1051
    %1202 = vmatpush.bf16.msra.mxu0 %v1047
    %1203 = vmatmul.bf16.gmra.mxu0 %v940
    %v1204 = vpop.f32.mrf.mxu0
    %v1205 = vadd.f32 %v919, %v1204
    %v1206 = vpop.f32.mrf.mxu0
    %v1207 = vadd.f32 %v919, %v1206
    %1208 = vmatmul.bf16.gmra.mxu0 %v941
    %v1209 = vpop.f32.mrf.mxu0
    %v1210 = vadd.f32 %v919, %v1209
    %v1211 = vpop.f32.mrf.mxu0
    %v1212 = vadd.f32 %v919, %v1211
    %1213 = vmatmul.bf16.gmra.mxu0 %v942
    %v1214 = vpop.f32.mrf.mxu0
    %v1215 = vadd.f32 %v919, %v1214
    %v1216 = vpop.f32.mrf.mxu0
    %v1217 = vadd.f32 %v919, %v1216
    %1218 = vmatmul.bf16.gmra.mxu0 %v943
    %v1219 = vpop.f32.mrf.mxu0
    %v1220 = vadd.f32 %v919, %v1219
    %v1221 = vpop.f32.mrf.mxu0
    %v1222 = vadd.f32 %v919, %v1221
    %1223 = vdwg.mxu0
    %1224 = vst [vmem:[#allocation3] sm:$0xff] %v1118
    %1225 = vst [vmem:[#allocation3 + $0x8] sm:$0xff] %v1147
    %1226 = vst [vmem:[#allocation3 + $0x10] sm:$0xff] %v1176
    %1227 = vst [vmem:[#allocation3 + $0x18] sm:$0xff] %v1205
    %1228 = vst [vmem:[#allocation3 + $0x20] sm:$0xff] %v1120
    %1229 = vst [vmem:[#allocation3 + $0x28] sm:$0xff] %v1149
    %1230 = vst [vmem:[#allocation3 + $0x30] sm:$0xff] %v1178
    %1231 = vst [vmem:[#allocation3 + $0x38] sm:$0xff] %v1207
    %1232 = vst [vmem:[#allocation3 + $0x40] sm:$0xff] %v1123
    %1233 = vst [vmem:[#allocation3 + $0x48] sm:$0xff] %v1152
    %1234 = vst [vmem:[#allocation3 + $0x50] sm:$0xff] %v1181
    %1235 = vst [vmem:[#allocation3 + $0x58] sm:$0xff] %v1210
    %1236 = vst [vmem:[#allocation3 + $0x60] sm:$0xff] %v1125
    %1237 = vst [vmem:[#allocation3 + $0x68] sm:$0xff] %v1154
    %1238 = vst [vmem:[#allocation3 + $0x70] sm:$0xff] %v1183
    %1239 = vst [vmem:[#allocation3 + $0x78] sm:$0xff] %v1212
    %1240 = vst [vmem:[#allocation3 + $0x80] sm:$0xff] %v1128
    %1241 = vst [vmem:[#allocation3 + $0x88] sm:$0xff] %v1157
    %1242 = vst [vmem:[#allocation3 + $0x90] sm:$0xff] %v1186
    %1243 = vst [vmem:[#allocation3 + $0x98] sm:$0xff] %v1215
    %1244 = vst [vmem:[#allocation3 + $0xa0] sm:$0xff] %v1130
    %1245 = vst [vmem:[#allocation3 + $0xa8] sm:$0xff] %v1159
    %1246 = vst [vmem:[#allocation3 + $0xb0] sm:$0xff] %v1188
    %1247 = vst [vmem:[#allocation3 + $0xb8] sm:$0xff] %v1217
    %1248 = vst [vmem:[#allocation3 + $0xc0] sm:$0xff] %v1133
    %1249 = vst [vmem:[#allocation3 + $0xc8] sm:$0xff] %v1162
    %1250 = vst [vmem:[#allocation3 + $0xd0] sm:$0xff] %v1191
    %1251 = vst [vmem:[#allocation3 + $0xd8] sm:$0xff] %v1220
    %1252 = vst [vmem:[#allocation3 + $0xe0] sm:$0xff] %v1135
    %1253 = vst [vmem:[#allocation3 + $0xe8] sm:$0xff] %v1164
    %1254 = vst [vmem:[#allocation3 + $0xf0] sm:$0xff] %v1193
    %1255 = vst [vmem:[#allocation3 + $0xf8] sm:$0xff] %v1222
    %v1256 = vld [vmem:[#allocation3] sm:$0xff]
    %v1257 = vld [vmem:[#allocation3 + $0x8] sm:$0xff]
    %v1258 = vld [vmem:[#allocation3 + $0x10] sm:$0xff]
    %v1259 = vld [vmem:[#allocation3 + $0x18] sm:$0xff]
    %v1260 = vld [vmem:[#allocation11] sm:$0xff]
    %v1261 = vld [vmem:[#allocation11 + $0x8] sm:$0xff]
    %v1262 = vld [vmem:[#allocation11 + $0x10] sm:$0xff]
    %v1263 = vld [vmem:[#allocation11 + $0x18] sm:$0xff]
    %v1264 = vld [vmem:[#allocation11 + $0x20] sm:$0xff]
    %v1265 = vld [vmem:[#allocation11 + $0x28] sm:$0xff]
    %v1266 = vld [vmem:[#allocation11 + $0x30] sm:$0xff]
    %v1267 = vld [vmem:[#allocation11 + $0x38] sm:$0xff]
    %v1268 = vld [vmem:[#allocation11 + $0x40] sm:$0xff]
    %v1269 = vld [vmem:[#allocation11 + $0x48] sm:$0xff]
    %v1270 = vld [vmem:[#allocation11 + $0x50] sm:$0xff]
    %v1271 = vld [vmem:[#allocation11 + $0x58] sm:$0xff]
    %v1272 = vld [vmem:[#allocation11 + $0x60] sm:$0xff]
    %v1273 = vld [vmem:[#allocation11 + $0x68] sm:$0xff]
    %v1274 = vld [vmem:[#allocation11 + $0x70] sm:$0xff]
    %v1275 = vld [vmem:[#allocation11 + $0x78] sm:$0xff]
    %v1276 = vld [vmem:[#allocation11 + $0x80] sm:$0xff]
    %v1277 = vld [vmem:[#allocation11 + $0x88] sm:$0xff]
    %v1278 = vld [vmem:[#allocation11 + $0x90] sm:$0xff]
    %v1279 = vld [vmem:[#allocation11 + $0x98] sm:$0xff]
    %v1280 = vld [vmem:[#allocation11 + $0xa0] sm:$0xff]
    %v1281 = vld [vmem:[#allocation11 + $0xa8] sm:$0xff]
    %v1282 = vld [vmem:[#allocation11 + $0xb0] sm:$0xff]
    %v1283 = vld [vmem:[#allocation11 + $0xb8] sm:$0xff]
    %v1284 = vld [vmem:[#allocation11 + $0xc0] sm:$0xff]
    %v1285 = vld [vmem:[#allocation11 + $0xc8] sm:$0xff]
    %v1286 = vld [vmem:[#allocation11 + $0xd0] sm:$0xff]
    %v1287 = vld [vmem:[#allocation11 + $0xd8] sm:$0xff]
    %v1288 = vld [vmem:[#allocation11 + $0xe0] sm:$0xff]
    %v1289 = vld [vmem:[#allocation11 + $0xe8] sm:$0xff]
    %v1290 = vld [vmem:[#allocation11 + $0xf0] sm:$0xff]
    %v1291 = vld [vmem:[#allocation11 + $0xf8] sm:$0xff]
    %v1324 = vunpack.c.l.b16 %v1260
    %v1325 = vunpack.c.h.b16 %v1260
    %v1326 = vunpack.c.l.b16 %v1261
    %v1327 = vunpack.c.h.b16 %v1261
    %v1328 = vunpack.c.l.b16 %v1262
    %v1329 = vunpack.c.h.b16 %v1262
    %v1330 = vunpack.c.l.b16 %v1263
    %v1331 = vunpack.c.h.b16 %v1263
    %v1332 = vunpack.c.l.b16 %v1264
    %v1333 = vunpack.c.h.b16 %v1264
    %v1334 = vunpack.c.l.b16 %v1265
    %v1335 = vunpack.c.h.b16 %v1265
    %v1336 = vunpack.c.l.b16 %v1266
    %v1337 = vunpack.c.h.b16 %v1266
    %v1338 = vunpack.c.l.b16 %v1267
    %v1339 = vunpack.c.h.b16 %v1267
    %v1340 = vunpack.c.l.b16 %v1268
    %v1341 = vunpack.c.h.b16 %v1268
    %v1342 = vunpack.c.l.b16 %v1269
    %v1343 = vunpack.c.h.b16 %v1269
    %v1344 = vunpack.c.l.b16 %v1270
    %v1345 = vunpack.c.h.b16 %v1270
    %v1346 = vunpack.c.l.b16 %v1271
    %v1347 = vunpack.c.h.b16 %v1271
    %v1348 = vunpack.c.l.b16 %v1272
    %v1349 = vunpack.c.h.b16 %v1272
    %v1350 = vunpack.c.l.b16 %v1273
    %v1351 = vunpack.c.h.b16 %v1273
    %v1352 = vunpack.c.l.b16 %v1274
    %v1353 = vunpack.c.h.b16 %v1274
    %v1354 = vunpack.c.l.b16 %v1275
    %v1355 = vunpack.c.h.b16 %v1275
    %v1356 = vunpack.c.l.b16 %v1276
    %v1357 = vunpack.c.h.b16 %v1276
    %v1358 = vunpack.c.l.b16 %v1277
    %v1359 = vunpack.c.h.b16 %v1277
    %v1360 = vunpack.c.l.b16 %v1278
    %v1361 = vunpack.c.h.b16 %v1278
    %v1362 = vunpack.c.l.b16 %v1279
    %v1363 = vunpack.c.h.b16 %v1279
    %v1364 = vunpack.c.l.b16 %v1280
    %v1365 = vunpack.c.h.b16 %v1280
    %v1366 = vunpack.c.l.b16 %v1281
    %v1367 = vunpack.c.h.b16 %v1281
    %v1368 = vunpack.c.l.b16 %v1282
    %v1369 = vunpack.c.h.b16 %v1282
    %v1370 = vunpack.c.l.b16 %v1283
    %v1371 = vunpack.c.h.b16 %v1283
    %v1372 = vunpack.c.l.b16 %v1284
    %v1373 = vunpack.c.h.b16 %v1284
    %v1374 = vunpack.c.l.b16 %v1285
    %v1375 = vunpack.c.h.b16 %v1285
    %v1376 = vunpack.c.l.b16 %v1286
    %v1377 = vunpack.c.h.b16 %v1286
    %v1378 = vunpack.c.l.b16 %v1287
    %v1379 = vunpack.c.h.b16 %v1287
    %v1380 = vunpack.c.l.b16 %v1288
    %v1381 = vunpack.c.h.b16 %v1288
    %v1382 = vunpack.c.l.b16 %v1289
    %v1383 = vunpack.c.h.b16 %v1289
    %v1384 = vunpack.c.l.b16 %v1290
    %v1385 = vunpack.c.h.b16 %v1290
    %v1386 = vunpack.c.l.b16 %v1291
    %v1387 = vunpack.c.h.b16 %v1291
    %v1388 = vpack.c.b16 %v1328, %v1324
    %v1389 = vpack.c.b16 %v1329, %v1325
    %v1390 = vpack.c.b16 %v1330, %v1326
    %v1391 = vpack.c.b16 %v1331, %v1327
    %v1392 = vpack.c.b16 %v1336, %v1332
    %v1393 = vpack.c.b16 %v1337, %v1333
    %v1394 = vpack.c.b16 %v1338, %v1334
    %v1395 = vpack.c.b16 %v1339, %v1335
    %v1396 = vpack.c.b16 %v1344, %v1340
    %v1397 = vpack.c.b16 %v1345, %v1341
    %v1398 = vpack.c.b16 %v1346, %v1342
    %v1399 = vpack.c.b16 %v1347, %v1343
    %v1400 = vpack.c.b16 %v1352, %v1348
    %v1401 = vpack.c.b16 %v1353, %v1349
    %v1402 = vpack.c.b16 %v1354, %v1350
    %v1403 = vpack.c.b16 %v1355, %v1351
    %v1404 = vpack.c.b16 %v1360, %v1356
    %v1405 = vpack.c.b16 %v1361, %v1357
    %v1406 = vpack.c.b16 %v1362, %v1358
    %v1407 = vpack.c.b16 %v1363, %v1359
    %v1408 = vpack.c.b16 %v1368, %v1364
    %v1409 = vpack.c.b16 %v1369, %v1365
    %v1410 = vpack.c.b16 %v1370, %v1366
    %v1411 = vpack.c.b16 %v1371, %v1367
    %v1412 = vpack.c.b16 %v1376, %v1372
    %v1413 = vpack.c.b16 %v1377, %v1373
    %v1414 = vpack.c.b16 %v1378, %v1374
    %v1415 = vpack.c.b16 %v1379, %v1375
    %v1416 = vpack.c.b16 %v1384, %v1380
    %v1417 = vpack.c.b16 %v1385, %v1381
    %v1418 = vpack.c.b16 %v1386, %v1382
    %v1419 = vpack.c.b16 %v1387, %v1383
    %1452 = vmatpush.bf16.msra.mxu0 %v1416
    %1453 = vmatpush.bf16.msra.mxu0 %v1412
    %1454 = vmatpush.bf16.msra.mxu0 %v1408
    %1455 = vmatpush.bf16.msra.mxu0 %v1404
    %1456 = vmatpush.bf16.msra.mxu0 %v1400
    %1457 = vmatpush.bf16.msra.mxu0 %v1396
    %1458 = vmatpush.bf16.msra.mxu0 %v1392
    %1459 = vmatpush.bf16.msra.mxu0 %v1388
    %1460 = vmatmul.bf16.gmra.mxu0 0
    %v1461 = vpop.f32.mrf.mxu0
    %v1462 = vadd.f32 0.0, %v1461
    %v1463 = vpop.f32.mrf.mxu0
    %1464 = vdwg.mxu0
    %1465 = vmatpush.bf16.msra.mxu0 %v1417
    %1466 = vmatpush.bf16.msra.mxu0 %v1413
    %1467 = vmatpush.bf16.msra.mxu0 %v1409
    %1468 = vmatpush.bf16.msra.mxu0 %v1405
    %1469 = vmatpush.bf16.msra.mxu0 %v1401
    %1470 = vmatpush.bf16.msra.mxu0 %v1397
    %1471 = vmatpush.bf16.msra.mxu0 %v1393
    %1472 = vmatpush.bf16.msra.mxu0 %v1389
    %1473 = vmatmul.bf16.gmra.mxu0 0
    %v1474 = vpop.f32.mrf.mxu0
    %v1475 = vadd.f32 0.0, %v1474
    %v1476 = vpop.f32.mrf.mxu0
    %1477 = vdwg.mxu0
    %1478 = vmatpush.bf16.msra.mxu0 %v1418
    %1479 = vmatpush.bf16.msra.mxu0 %v1414
    %1480 = vmatpush.bf16.msra.mxu0 %v1410
    %1481 = vmatpush.bf16.msra.mxu0 %v1406
    %1482 = vmatpush.bf16.msra.mxu0 %v1402
    %1483 = vmatpush.bf16.msra.mxu0 %v1398
    %1484 = vmatpush.bf16.msra.mxu0 %v1394
    %1485 = vmatpush.bf16.msra.mxu0 %v1390
    %1486 = vmatmul.bf16.gmra.mxu0 0
    %v1487 = vpop.f32.mrf.mxu0
    %v1488 = vadd.f32 0.0, %v1487
    %v1489 = vpop.f32.mrf.mxu0
    %1490 = vdwg.mxu0
    %1491 = vmatpush.bf16.msra.mxu0 %v1419
    %1492 = vmatpush.bf16.msra.mxu0 %v1415
    %1493 = vmatpush.bf16.msra.mxu0 %v1411
    %1494 = vmatpush.bf16.msra.mxu0 %v1407
    %1495 = vmatpush.bf16.msra.mxu0 %v1403
    %1496 = vmatpush.bf16.msra.mxu0 %v1399
    %1497 = vmatpush.bf16.msra.mxu0 %v1395
    %1498 = vmatpush.bf16.msra.mxu0 %v1391
    %1499 = vmatmul.bf16.gmra.mxu0 0
    %v1500 = vpop.f32.mrf.mxu0
    %v1501 = vadd.f32 0.0, %v1500
    %v1502 = vpop.f32.mrf.mxu0
    %1503 = vdwg.mxu0
    %v1504 = vadd.f32 %v1256, %v1462
    %v1505 = vadd.f32 %v1257, %v1475
    %v1506 = vadd.f32 %v1258, %v1488
    %v1507 = vadd.f32 %v1259, %v1501
    %v1508 = vxor.u32 %v1504, 2147483648
    %v1509 = vxor.u32 %v1505, 2147483648
    %v1510 = vxor.u32 %v1506, 2147483648
    %v1511 = vmul.f32 %v1508, 1.442695
    %v1512 = vpow.pop %v1511
    %v1513 = vmul.f32 %v1509, 1.442695
    %v1514 = vpow.pop %v1513
    %v1515 = vmul.f32 %v1510, 1.442695
    %v1516 = vpow.pop %v1515
    %v1517 = vadd.f32 %v1512, 1.0
    %v1518 = vadd.f32 %v1514, 1.0
    %v1519 = vadd.f32 %v1516, 1.0
    %v1520 = vrcp.pop %v1517
    %v1521 = vmul.f32 %v1517, %v1520
    %v1522 = vsub.f32 1.0, %v1521
    %v1523 = vmul.f32 %v1520, %v1522
    %v1524 = vadd.f32 %v1520, %v1523
    %vm1525 = vweird.f32 %v1517
    %vm1526 = vweird.f32 %v1520
    %vm1527 = vmor %vm1525, %vm1526
    %v1528 = vsel %vm1527, %v1520, %v1524
    %v1529 = vand.u32 2147483647, %v1517
    %vm1530 = vcmp.eq.f32.partialorder %v1529, 8.507059e+37
    %v1531 = vand.u32 %v1517, 2147483648
    %v1532 = vor.u32 1.1754944e-38, %v1531
    %v1533 = vsel %vm1530, %v1532, %v1528
    %v1534 = vmul.f32 1.0, %v1533
    %v1535 = vrcp.pop %v1518
    %v1536 = vmul.f32 %v1518, %v1535
    %v1537 = vsub.f32 1.0, %v1536
    %v1538 = vmul.f32 %v1535, %v1537
    %v1539 = vadd.f32 %v1535, %v1538
    %vm1540 = vweird.f32 %v1518
    %vm1541 = vweird.f32 %v1535
    %vm1542 = vmor %vm1540, %vm1541
    %v1543 = vsel %vm1542, %v1535, %v1539
    %v1544 = vand.u32 2147483647, %v1518
    %vm1545 = vcmp.eq.f32.partialorder %v1544, 8.507059e+37
    %v1546 = vand.u32 %v1518, 2147483648
    %v1547 = vor.u32 1.1754944e-38, %v1546
    %v1548 = vsel %vm1545, %v1547, %v1543
    %v1549 = vmul.f32 1.0, %v1548
    %v1550 = vrcp.pop %v1519
    %v1551 = vmul.f32 %v1519, %v1550
    %v1552 = vsub.f32 1.0, %v1551
    %v1553 = vmul.f32 %v1550, %v1552
    %v1554 = vadd.f32 %v1550, %v1553
    %vm1555 = vweird.f32 %v1519
    %vm1556 = vweird.f32 %v1550
    %vm1557 = vmor %vm1555, %vm1556
    %v1558 = vsel %vm1557, %v1550, %v1554
    %v1559 = vand.u32 2147483647, %v1519
    %vm1560 = vcmp.eq.f32.partialorder %v1559, 8.507059e+37
    %v1561 = vand.u32 %v1519, 2147483648
    %v1562 = vor.u32 1.1754944e-38, %v1561
    %v1563 = vsel %vm1560, %v1562, %v1558
    %v1564 = vmul.f32 1.0, %v1563
    %v1565 = vtanh.pop %v1507
    %v1566 = vmul.f32 %v1549, 0.0
    %v1567 = vmul.f32 %v1534, %v1565
    %v1568 = vadd.f32 %v1566, %v1567
    %v1569 = vtanh.pop %v1568
    %v1570 = vmul.f32 %v1564, %v1569
    %v1571 = vld [vmem:[#allocation3 + $0x20] sm:$0xff]
    %v1572 = vld [vmem:[#allocation3 + $0x28] sm:$0xff]
    %v1573 = vld [vmem:[#allocation3 + $0x30] sm:$0xff]
    %v1574 = vld [vmem:[#allocation3 + $0x38] sm:$0xff]
    %v1575 = vpack.c.bf16 %v1570, %v1570
    %1576 = vmatpush.bf16.msra.mxu0 %v1416
    %1577 = vmatpush.bf16.msra.mxu0 %v1412
    %1578 = vmatpush.bf16.msra.mxu0 %v1408
    %1579 = vmatpush.bf16.msra.mxu0 %v1404
    %1580 = vmatpush.bf16.msra.mxu0 %v1400
    %1581 = vmatpush.bf16.msra.mxu0 %v1396
    %1582 = vmatpush.bf16.msra.mxu0 %v1392
    %1583 = vmatpush.bf16.msra.mxu0 %v1388
    %1584 = vmatmul.bf16.gmra.mxu0 %v1575
    %v1585 = vpop.f32.mrf.mxu0
    %v1586 = vadd.f32 0.0, %v1585
    %v1587 = vpop.f32.mrf.mxu0
    %1588 = vdwg.mxu0
    %1589 = vmatpush.bf16.msra.mxu0 %v1417
    %1590 = vmatpush.bf16.msra.mxu0 %v1413
    %1591 = vmatpush.bf16.msra.mxu0 %v1409
    %1592 = vmatpush.bf16.msra.mxu0 %v1405
    %1593 = vmatpush.bf16.msra.mxu0 %v1401
    %1594 = vmatpush.bf16.msra.mxu0 %v1397
    %1595 = vmatpush.bf16.msra.mxu0 %v1393
    %1596 = vmatpush.bf16.msra.mxu0 %v1389
    %1597 = vmatmul.bf16.gmra.mxu0 %v1575
    %v1598 = vpop.f32.mrf.mxu0
    %v1599 = vadd.f32 0.0, %v1598
    %v1600 = vpop.f32.mrf.mxu0
    %1601 = vdwg.mxu0
    %1602 = vmatpush.bf16.msra.mxu0 %v1418
    %1603 = vmatpush.bf16.msra.mxu0 %v1414
    %1604 = vmatpush.bf16.msra.mxu0 %v1410
    %1605 = vmatpush.bf16.msra.mxu0 %v1406
    %1606 = vmatpush.bf16.msra.mxu0 %v1402
    %1607 = vmatpush.bf16.msra.mxu0 %v1398
    %1608 = vmatpush.bf16.msra.mxu0 %v1394
    %1609 = vmatpush.bf16.msra.mxu0 %v1390
    %1610 = vmatmul.bf16.gmra.mxu0 %v1575
    %v1611 = vpop.f32.mrf.mxu0
    %v1612 = vadd.f32 0.0, %v1611
    %v1613 = vpop.f32.mrf.mxu0
    %1614 = vdwg.mxu0
    %1615 = vmatpush.bf16.msra.mxu0 %v1419
    %1616 = vmatpush.bf16.msra.mxu0 %v1415
    %1617 = vmatpush.bf16.msra.mxu0 %v1411
    %1618 = vmatpush.bf16.msra.mxu0 %v1407
    %1619 = vmatpush.bf16.msra.mxu0 %v1403
    %1620 = vmatpush.bf16.msra.mxu0 %v1399
    %1621 = vmatpush.bf16.msra.mxu0 %v1395
    %1622 = vmatpush.bf16.msra.mxu0 %v1391
    %1623 = vmatmul.bf16.gmra.mxu0 %v1575
    %v1624 = vpop.f32.mrf.mxu0
    %v1625 = vadd.f32 0.0, %v1624
    %v1626 = vpop.f32.mrf.mxu0
    %1627 = vdwg.mxu0
    %v1628 = vadd.f32 %v1571, %v1586
    %v1629 = vadd.f32 %v1572, %v1599
    %v1630 = vadd.f32 %v1573, %v1612
    %v1631 = vadd.f32 %v1574, %v1625
    %v1632 = vxor.u32 %v1628, 2147483648
    %v1633 = vxor.u32 %v1629, 2147483648
    %v1634 = vxor.u32 %v1630, 2147483648
    %v1635 = vmul.f32 %v1632, 1.442695
    %v1636 = vpow.pop %v1635
    %v1637 = vmul.f32 %v1633, 1.442695
    %v1638 = vpow.pop %v1637
    %v1639 = vmul.f32 %v1634, 1.442695
    %v1640 = vpow.pop %v1639
    %v1641 = vadd.f32 %v1636, 1.0
    %v1642 = vadd.f32 %v1638, 1.0
    %v1643 = vadd.f32 %v1640, 1.0
    %v1644 = vrcp.pop %v1641
    %v1645 = vmul.f32 %v1641, %v1644
    %v1646 = vsub.f32 1.0, %v1645
    %v1647 = vmul.f32 %v1644, %v1646
    %v1648 = vadd.f32 %v1644, %v1647
    %vm1649 = vweird.f32 %v1641
    %vm1650 = vweird.f32 %v1644
    %vm1651 = vmor %vm1649, %vm1650
    %v1652 = vsel %vm1651, %v1644, %v1648
    %v1653 = vand.u32 2147483647, %v1641
    %vm1654 = vcmp.eq.f32.partialorder %v1653, 8.507059e+37
    %v1655 = vand.u32 %v1641, 2147483648
    %v1656 = vor.u32 1.1754944e-38, %v1655
    %v1657 = vsel %vm1654, %v1656, %v1652
    %v1658 = vmul.f32 1.0, %v1657
    %v1659 = vrcp.pop %v1642
    %v1660 = vmul.f32 %v1642, %v1659
    %v1661 = vsub.f32 1.0, %v1660
    %v1662 = vmul.f32 %v1659, %v1661
    %v1663 = vadd.f32 %v1659, %v1662
    %vm1664 = vweird.f32 %v1642
    %vm1665 = vweird.f32 %v1659
    %vm1666 = vmor %vm1664, %vm1665
    %v1667 = vsel %vm1666, %v1659, %v1663
    %v1668 = vand.u32 2147483647, %v1642
    %vm1669 = vcmp.eq.f32.partialorder %v1668, 8.507059e+37
    %v1670 = vand.u32 %v1642, 2147483648
    %v1671 = vor.u32 1.1754944e-38, %v1670
    %v1672 = vsel %vm1669, %v1671, %v1667
    %v1673 = vmul.f32 1.0, %v1672
    %v1674 = vrcp.pop %v1643
    %v1675 = vmul.f32 %v1643, %v1674
    %v1676 = vsub.f32 1.0, %v1675
    %v1677 = vmul.f32 %v1674, %v1676
    %v1678 = vadd.f32 %v1674, %v1677
    %vm1679 = vweird.f32 %v1643
    %vm1680 = vweird.f32 %v1674
    %vm1681 = vmor %vm1679, %vm1680
    %v1682 = vsel %vm1681, %v1674, %v1678
    %v1683 = vand.u32 2147483647, %v1643
    %vm1684 = vcmp.eq.f32.partialorder %v1683, 8.507059e+37
    %v1685 = vand.u32 %v1643, 2147483648
    %v1686 = vor.u32 1.1754944e-38, %v1685
    %v1687 = vsel %vm1684, %v1686, %v1682
    %v1688 = vmul.f32 1.0, %v1687
    %v1689 = vtanh.pop %v1631
    %v1690 = vmul.f32 %v1673, %v1568
    %v1691 = vmul.f32 %v1658, %v1689
    %v1692 = vadd.f32 %v1690, %v1691
    %v1693 = vtanh.pop %v1692
    %v1694 = vmul.f32 %v1688, %v1693
    %v1695 = vld [vmem:[#allocation3 + $0x40] sm:$0xff]
    %v1696 = vld [vmem:[#allocation3 + $0x48] sm:$0xff]
    %v1697 = vld [vmem:[#allocation3 + $0x50] sm:$0xff]
    %v1698 = vld [vmem:[#allocation3 + $0x58] sm:$0xff]
    %v1699 = vpack.c.bf16 %v1694, %v1694
    %1700 = vmatpush.bf16.msra.mxu0 %v1416
    %1701 = vmatpush.bf16.msra.mxu0 %v1412
    %1702 = vmatpush.bf16.msra.mxu0 %v1408
    %1703 = vmatpush.bf16.msra.mxu0 %v1404
    %1704 = vmatpush.bf16.msra.mxu0 %v1400
    %1705 = vmatpush.bf16.msra.mxu0 %v1396
    %1706 = vmatpush.bf16.msra.mxu0 %v1392
    %1707 = vmatpush.bf16.msra.mxu0 %v1388
    %1708 = vmatmul.bf16.gmra.mxu0 %v1699
    %v1709 = vpop.f32.mrf.mxu0
    %v1710 = vadd.f32 0.0, %v1709
    %v1711 = vpop.f32.mrf.mxu0
    %1712 = vdwg.mxu0
    %1713 = vmatpush.bf16.msra.mxu0 %v1417
    %1714 = vmatpush.bf16.msra.mxu0 %v1413
    %1715 = vmatpush.bf16.msra.mxu0 %v1409
    %1716 = vmatpush.bf16.msra.mxu0 %v1405
    %1717 = vmatpush.bf16.msra.mxu0 %v1401
    %1718 = vmatpush.bf16.msra.mxu0 %v1397
    %1719 = vmatpush.bf16.msra.mxu0 %v1393
    %1720 = vmatpush.bf16.msra.mxu0 %v1389
    %1721 = vmatmul.bf16.gmra.mxu0 %v1699
    %v1722 = vpop.f32.mrf.mxu0
    %v1723 = vadd.f32 0.0, %v1722
    %v1724 = vpop.f32.mrf.mxu0
    %1725 = vdwg.mxu0
    %1726 = vmatpush.bf16.msra.mxu0 %v1418
    %1727 = vmatpush.bf16.msra.mxu0 %v1414
    %1728 = vmatpush.bf16.msra.mxu0 %v1410
    %1729 = vmatpush.bf16.msra.mxu0 %v1406
    %1730 = vmatpush.bf16.msra.mxu0 %v1402
    %1731 = vmatpush.bf16.msra.mxu0 %v1398
    %1732 = vmatpush.bf16.msra.mxu0 %v1394
    %1733 = vmatpush.bf16.msra.mxu0 %v1390
    %1734 = vmatmul.bf16.gmra.mxu0 %v1699
    %v1735 = vpop.f32.mrf.mxu0
    %v1736 = vadd.f32 0.0, %v1735
    %v1737 = vpop.f32.mrf.mxu0
    %1738 = vdwg.mxu0
    %1739 = vmatpush.bf16.msra.mxu0 %v1419
    %1740 = vmatpush.bf16.msra.mxu0 %v1415
    %1741 = vmatpush.bf16.msra.mxu0 %v1411
    %1742 = vmatpush.bf16.msra.mxu0 %v1407
    %1743 = vmatpush.bf16.msra.mxu0 %v1403
    %1744 = vmatpush.bf16.msra.mxu0 %v1399
    %1745 = vmatpush.bf16.msra.mxu0 %v1395
    %1746 = vmatpush.bf16.msra.mxu0 %v1391
    %1747 = vmatmul.bf16.gmra.mxu0 %v1699
    %v1748 = vpop.f32.mrf.mxu0
    %v1749 = vadd.f32 0.0, %v1748
    %v1750 = vpop.f32.mrf.mxu0
    %1751 = vdwg.mxu0
    %v1752 = vadd.f32 %v1695, %v1710
    %v1753 = vadd.f32 %v1696, %v1723
    %v1754 = vadd.f32 %v1697, %v1736
    %v1755 = vadd.f32 %v1698, %v1749
    %v1756 = vxor.u32 %v1752, 2147483648
    %v1757 = vxor.u32 %v1753, 2147483648
    %v1758 = vxor.u32 %v1754, 2147483648
    %v1759 = vmul.f32 %v1756, 1.442695
    %v1760 = vpow.pop %v1759
    %v1761 = vmul.f32 %v1757, 1.442695
    %v1762 = vpow.pop %v1761
    %v1763 = vmul.f32 %v1758, 1.442695
    %v1764 = vpow.pop %v1763
    %v1765 = vadd.f32 %v1760, 1.0
    %v1766 = vadd.f32 %v1762, 1.0
    %v1767 = vadd.f32 %v1764, 1.0
    %v1768 = vrcp.pop %v1765
    %v1769 = vmul.f32 %v1765, %v1768
    %v1770 = vsub.f32 1.0, %v1769
    %v1771 = vmul.f32 %v1768, %v1770
    %v1772 = vadd.f32 %v1768, %v1771
    %vm1773 = vweird.f32 %v1765
    %vm1774 = vweird.f32 %v1768
    %vm1775 = vmor %vm1773, %vm1774
    %v1776 = vsel %vm1775, %v1768, %v1772
    %v1777 = vand.u32 2147483647, %v1765
    %vm1778 = vcmp.eq.f32.partialorder %v1777, 8.507059e+37
    %v1779 = vand.u32 %v1765, 2147483648
    %v1780 = vor.u32 1.1754944e-38, %v1779
    %v1781 = vsel %vm1778, %v1780, %v1776
    %v1782 = vmul.f32 1.0, %v1781
    %v1783 = vrcp.pop %v1766
    %v1784 = vmul.f32 %v1766, %v1783
    %v1785 = vsub.f32 1.0, %v1784
    %v1786 = vmul.f32 %v1783, %v1785
    %v1787 = vadd.f32 %v1783, %v1786
    %vm1788 = vweird.f32 %v1766
    %vm1789 = vweird.f32 %v1783
    %vm1790 = vmor %vm1788, %vm1789
    %v1791 = vsel %vm1790, %v1783, %v1787
    %v1792 = vand.u32 2147483647, %v1766
    %vm1793 = vcmp.eq.f32.partialorder %v1792, 8.507059e+37
    %v1794 = vand.u32 %v1766, 2147483648
    %v1795 = vor.u32 1.1754944e-38, %v1794
    %v1796 = vsel %vm1793, %v1795, %v1791
    %v1797 = vmul.f32 1.0, %v1796
    %v1798 = vrcp.pop %v1767
    %v1799 = vmul.f32 %v1767, %v1798
    %v1800 = vsub.f32 1.0, %v1799
    %v1801 = vmul.f32 %v1798, %v1800
    %v1802 = vadd.f32 %v1798, %v1801
    %vm1803 = vweird.f32 %v1767
    %vm1804 = vweird.f32 %v1798
    %vm1805 = vmor %vm1803, %vm1804
    %v1806 = vsel %vm1805, %v1798, %v1802
    %v1807 = vand.u32 2147483647, %v1767
    %vm1808 = vcmp.eq.f32.partialorder %v1807, 8.507059e+37
    %v1809 = vand.u32 %v1767, 2147483648
    %v1810 = vor.u32 1.1754944e-38, %v1809
    %v1811 = vsel %vm1808, %v1810, %v1806
    %v1812 = vmul.f32 1.0, %v1811
    %v1813 = vtanh.pop %v1755
    %v1814 = vmul.f32 %v1797, %v1692
    %v1815 = vmul.f32 %v1782, %v1813
    %v1816 = vadd.f32 %v1814, %v1815
    %v1817 = vtanh.pop %v1816
    %v1818 = vmul.f32 %v1812, %v1817
    %v1819 = vld [vmem:[#allocation3 + $0x60] sm:$0xff]
    %v1820 = vld [vmem:[#allocation3 + $0x68] sm:$0xff]
    %v1821 = vld [vmem:[#allocation3 + $0x70] sm:$0xff]
    %v1822 = vld [vmem:[#allocation3 + $0x78] sm:$0xff]
    %v1823 = vpack.c.bf16 %v1818, %v1818
    %1824 = vmatpush.bf16.msra.mxu0 %v1416
    %1825 = vmatpush.bf16.msra.mxu0 %v1412
    %1826 = vmatpush.bf16.msra.mxu0 %v1408
    %1827 = vmatpush.bf16.msra.mxu0 %v1404
    %1828 = vmatpush.bf16.msra.mxu0 %v1400
    %1829 = vmatpush.bf16.msra.mxu0 %v1396
    %1830 = vmatpush.bf16.msra.mxu0 %v1392
    %1831 = vmatpush.bf16.msra.mxu0 %v1388
    %1832 = vmatmul.bf16.gmra.mxu0 %v1823
    %v1833 = vpop.f32.mrf.mxu0
    %v1834 = vadd.f32 0.0, %v1833
    %v1835 = vpop.f32.mrf.mxu0
    %1836 = vdwg.mxu0
    %1837 = vmatpush.bf16.msra.mxu0 %v1417
    %1838 = vmatpush.bf16.msra.mxu0 %v1413
    %1839 = vmatpush.bf16.msra.mxu0 %v1409
    %1840 = vmatpush.bf16.msra.mxu0 %v1405
    %1841 = vmatpush.bf16.msra.mxu0 %v1401
    %1842 = vmatpush.bf16.msra.mxu0 %v1397
    %1843 = vmatpush.bf16.msra.mxu0 %v1393
    %1844 = vmatpush.bf16.msra.mxu0 %v1389
    %1845 = vmatmul.bf16.gmra.mxu0 %v1823
    %v1846 = vpop.f32.mrf.mxu0
    %v1847 = vadd.f32 0.0, %v1846
    %v1848 = vpop.f32.mrf.mxu0
    %1849 = vdwg.mxu0
    %1850 = vmatpush.bf16.msra.mxu0 %v1418
    %1851 = vmatpush.bf16.msra.mxu0 %v1414
    %1852 = vmatpush.bf16.msra.mxu0 %v1410
    %1853 = vmatpush.bf16.msra.mxu0 %v1406
    %1854 = vmatpush.bf16.msra.mxu0 %v1402
    %1855 = vmatpush.bf16.msra.mxu0 %v1398
    %1856 = vmatpush.bf16.msra.mxu0 %v1394
    %1857 = vmatpush.bf16.msra.mxu0 %v1390
    %1858 = vmatmul.bf16.gmra.mxu0 %v1823
    %v1859 = vpop.f32.mrf.mxu0
    %v1860 = vadd.f32 0.0, %v1859
    %v1861 = vpop.f32.mrf.mxu0
    %1862 = vdwg.mxu0
    %1863 = vmatpush.bf16.msra.mxu0 %v1419
    %1864 = vmatpush.bf16.msra.mxu0 %v1415
    %1865 = vmatpush.bf16.msra.mxu0 %v1411
    %1866 = vmatpush.bf16.msra.mxu0 %v1407
    %1867 = vmatpush.bf16.msra.mxu0 %v1403
    %1868 = vmatpush.bf16.msra.mxu0 %v1399
    %1869 = vmatpush.bf16.msra.mxu0 %v1395
    %1870 = vmatpush.bf16.msra.mxu0 %v1391
    %1871 = vmatmul.bf16.gmra.mxu0 %v1823
    %v1872 = vpop.f32.mrf.mxu0
    %v1873 = vadd.f32 0.0, %v1872
    %v1874 = vpop.f32.mrf.mxu0
    %1875 = vdwg.mxu0
    %v1876 = vadd.f32 %v1819, %v1834
    %v1877 = vadd.f32 %v1820, %v1847
    %v1878 = vadd.f32 %v1821, %v1860
    %v1879 = vadd.f32 %v1822, %v1873
    %v1880 = vxor.u32 %v1876, 2147483648
    %v1881 = vxor.u32 %v1877, 2147483648
    %v1882 = vxor.u32 %v1878, 2147483648
    %v1883 = vmul.f32 %v1880, 1.442695
    %v1884 = vpow.pop %v1883
    %v1885 = vmul.f32 %v1881, 1.442695
    %v1886 = vpow.pop %v1885
    %v1887 = vmul.f32 %v1882, 1.442695
    %v1888 = vpow.pop %v1887
    %v1889 = vadd.f32 %v1884, 1.0
    %v1890 = vadd.f32 %v1886, 1.0
    %v1891 = vadd.f32 %v1888, 1.0
    %v1892 = vrcp.pop %v1889
    %v1893 = vmul.f32 %v1889, %v1892
    %v1894 = vsub.f32 1.0, %v1893
    %v1895 = vmul.f32 %v1892, %v1894
    %v1896 = vadd.f32 %v1892, %v1895
    %vm1897 = vweird.f32 %v1889
    %vm1898 = vweird.f32 %v1892
    %vm1899 = vmor %vm1897, %vm1898
    %v1900 = vsel %vm1899, %v1892, %v1896
    %v1901 = vand.u32 2147483647, %v1889
    %vm1902 = vcmp.eq.f32.partialorder %v1901, 8.507059e+37
    %v1903 = vand.u32 %v1889, 2147483648
    %v1904 = vor.u32 1.1754944e-38, %v1903
    %v1905 = vsel %vm1902, %v1904, %v1900
    %v1906 = vmul.f32 1.0, %v1905
    %v1907 = vrcp.pop %v1890
    %v1908 = vmul.f32 %v1890, %v1907
    %v1909 = vsub.f32 1.0, %v1908
    %v1910 = vmul.f32 %v1907, %v1909
    %v1911 = vadd.f32 %v1907, %v1910
    %vm1912 = vweird.f32 %v1890
    %vm1913 = vweird.f32 %v1907
    %vm1914 = vmor %vm1912, %vm1913
    %v1915 = vsel %vm1914, %v1907, %v1911
    %v1916 = vand.u32 2147483647, %v1890
    %vm1917 = vcmp.eq.f32.partialorder %v1916, 8.507059e+37
    %v1918 = vand.u32 %v1890, 2147483648
    %v1919 = vor.u32 1.1754944e-38, %v1918
    %v1920 = vsel %vm1917, %v1919, %v1915
    %v1921 = vmul.f32 1.0, %v1920
    %v1922 = vrcp.pop %v1891
    %v1923 = vmul.f32 %v1891, %v1922
    %v1924 = vsub.f32 1.0, %v1923
    %v1925 = vmul.f32 %v1922, %v1924
    %v1926 = vadd.f32 %v1922, %v1925
    %vm1927 = vweird.f32 %v1891
    %vm1928 = vweird.f32 %v1922
    %vm1929 = vmor %vm1927, %vm1928
    %v1930 = vsel %vm1929, %v1922, %v1926
    %v1931 = vand.u32 2147483647, %v1891
    %vm1932 = vcmp.eq.f32.partialorder %v1931, 8.507059e+37
    %v1933 = vand.u32 %v1891, 2147483648
    %v1934 = vor.u32 1.1754944e-38, %v1933
    %v1935 = vsel %vm1932, %v1934, %v1930
    %v1936 = vmul.f32 1.0, %v1935
    %v1937 = vtanh.pop %v1879
    %v1938 = vmul.f32 %v1921, %v1816
    %v1939 = vmul.f32 %v1906, %v1937
    %v1940 = vadd.f32 %v1938, %v1939
    %v1941 = vtanh.pop %v1940
    %v1942 = vmul.f32 %v1936, %v1941
    %v1943 = vld [vmem:[#allocation3 + $0x80] sm:$0xff]
    %v1944 = vld [vmem:[#allocation3 + $0x88] sm:$0xff]
    %v1945 = vld [vmem:[#allocation3 + $0x90] sm:$0xff]
    %v1946 = vld [vmem:[#allocation3 + $0x98] sm:$0xff]
    %v1947 = vpack.c.bf16 %v1942, %v1942
    %1948 = vmatpush.bf16.msra.mxu0 %v1416
    %1949 = vmatpush.bf16.msra.mxu0 %v1412
    %1950 = vmatpush.bf16.msra.mxu0 %v1408
    %1951 = vmatpush.bf16.msra.mxu0 %v1404
    %1952 = vmatpush.bf16.msra.mxu0 %v1400
    %1953 = vmatpush.bf16.msra.mxu0 %v1396
    %1954 = vmatpush.bf16.msra.mxu0 %v1392
    %1955 = vmatpush.bf16.msra.mxu0 %v1388
    %1956 = vmatmul.bf16.gmra.mxu0 %v1947
    %v1957 = vpop.f32.mrf.mxu0
    %v1958 = vadd.f32 0.0, %v1957
    %v1959 = vpop.f32.mrf.mxu0
    %1960 = vdwg.mxu0
    %1961 = vmatpush.bf16.msra.mxu0 %v1417
    %1962 = vmatpush.bf16.msra.mxu0 %v1413
    %1963 = vmatpush.bf16.msra.mxu0 %v1409
    %1964 = vmatpush.bf16.msra.mxu0 %v1405
    %1965 = vmatpush.bf16.msra.mxu0 %v1401
    %1966 = vmatpush.bf16.msra.mxu0 %v1397
    %1967 = vmatpush.bf16.msra.mxu0 %v1393
    %1968 = vmatpush.bf16.msra.mxu0 %v1389
    %1969 = vmatmul.bf16.gmra.mxu0 %v1947
    %v1970 = vpop.f32.mrf.mxu0
    %v1971 = vadd.f32 0.0, %v1970
    %v1972 = vpop.f32.mrf.mxu0
    %1973 = vdwg.mxu0
    %1974 = vmatpush.bf16.msra.mxu0 %v1418
    %1975 = vmatpush.bf16.msra.mxu0 %v1414
    %1976 = vmatpush.bf16.msra.mxu0 %v1410
    %1977 = vmatpush.bf16.msra.mxu0 %v1406
    %1978 = vmatpush.bf16.msra.mxu0 %v1402
    %1979 = vmatpush.bf16.msra.mxu0 %v1398
    %1980 = vmatpush.bf16.msra.mxu0 %v1394
    %1981 = vmatpush.bf16.msra.mxu0 %v1390
    %1982 = vmatmul.bf16.gmra.mxu0 %v1947
    %v1983 = vpop.f32.mrf.mxu0
    %v1984 = vadd.f32 0.0, %v1983
    %v1985 = vpop.f32.mrf.mxu0
    %1986 = vdwg.mxu0
    %1987 = vmatpush.bf16.msra.mxu0 %v1419
    %1988 = vmatpush.bf16.msra.mxu0 %v1415
    %1989 = vmatpush.bf16.msra.mxu0 %v1411
    %1990 = vmatpush.bf16.msra.mxu0 %v1407
    %1991 = vmatpush.bf16.msra.mxu0 %v1403
    %1992 = vmatpush.bf16.msra.mxu0 %v1399
    %1993 = vmatpush.bf16.msra.mxu0 %v1395
    %1994 = vmatpush.bf16.msra.mxu0 %v1391
    %1995 = vmatmul.bf16.gmra.mxu0 %v1947
    %v1996 = vpop.f32.mrf.mxu0
    %v1997 = vadd.f32 0.0, %v1996
    %v1998 = vpop.f32.mrf.mxu0
    %1999 = vdwg.mxu0
    %v2000 = vadd.f32 %v1943, %v1958
    %v2001 = vadd.f32 %v1944, %v1971
    %v2002 = vadd.f32 %v1945, %v1984
    %v2003 = vadd.f32 %v1946, %v1997
    %v2004 = vxor.u32 %v2000, 2147483648
    %v2005 = vxor.u32 %v2001, 2147483648
    %v2006 = vxor.u32 %v2002, 2147483648
    %v2007 = vmul.f32 %v2004, 1.442695
    %v2008 = vpow.pop %v2007
    %v2009 = vmul.f32 %v2005, 1.442695
    %v2010 = vpow.pop %v2009
    %v2011 = vmul.f32 %v2006, 1.442695
    %v2012 = vpow.pop %v2011
    %v2013 = vadd.f32 %v2008, 1.0
    %v2014 = vadd.f32 %v2010, 1.0
    %v2015 = vadd.f32 %v2012, 1.0
    %v2016 = vrcp.pop %v2013
    %v2017 = vmul.f32 %v2013, %v2016
    %v2018 = vsub.f32 1.0, %v2017
    %v2019 = vmul.f32 %v2016, %v2018
    %v2020 = vadd.f32 %v2016, %v2019
    %vm2021 = vweird.f32 %v2013
    %vm2022 = vweird.f32 %v2016
    %vm2023 = vmor %vm2021, %vm2022
    %v2024 = vsel %vm2023, %v2016, %v2020
    %v2025 = vand.u32 2147483647, %v2013
    %vm2026 = vcmp.eq.f32.partialorder %v2025, 8.507059e+37
    %v2027 = vand.u32 %v2013, 2147483648
    %v2028 = vor.u32 1.1754944e-38, %v2027
    %v2029 = vsel %vm2026, %v2028, %v2024
    %v2030 = vmul.f32 1.0, %v2029
    %v2031 = vrcp.pop %v2014
    %v2032 = vmul.f32 %v2014, %v2031
    %v2033 = vsub.f32 1.0, %v2032
    %v2034 = vmul.f32 %v2031, %v2033
    %v2035 = vadd.f32 %v2031, %v2034
    %vm2036 = vweird.f32 %v2014
    %vm2037 = vweird.f32 %v2031
    %vm2038 = vmor %vm2036, %vm2037
    %v2039 = vsel %vm2038, %v2031, %v2035
    %v2040 = vand.u32 2147483647, %v2014
    %vm2041 = vcmp.eq.f32.partialorder %v2040, 8.507059e+37
    %v2042 = vand.u32 %v2014, 2147483648
    %v2043 = vor.u32 1.1754944e-38, %v2042
    %v2044 = vsel %vm2041, %v2043, %v2039
    %v2045 = vmul.f32 1.0, %v2044
    %v2046 = vrcp.pop %v2015
    %v2047 = vmul.f32 %v2015, %v2046
    %v2048 = vsub.f32 1.0, %v2047
    %v2049 = vmul.f32 %v2046, %v2048
    %v2050 = vadd.f32 %v2046, %v2049
    %vm2051 = vweird.f32 %v2015
    %vm2052 = vweird.f32 %v2046
    %vm2053 = vmor %vm2051, %vm2052
    %v2054 = vsel %vm2053, %v2046, %v2050
    %v2055 = vand.u32 2147483647, %v2015
    %vm2056 = vcmp.eq.f32.partialorder %v2055, 8.507059e+37
    %v2057 = vand.u32 %v2015, 2147483648
    %v2058 = vor.u32 1.1754944e-38, %v2057
    %v2059 = vsel %vm2056, %v2058, %v2054
    %v2060 = vmul.f32 1.0, %v2059
    %v2061 = vtanh.pop %v2003
    %v2062 = vmul.f32 %v2045, %v1940
    %v2063 = vmul.f32 %v2030, %v2061
    %v2064 = vadd.f32 %v2062, %v2063
    %v2065 = vtanh.pop %v2064
    %v2066 = vmul.f32 %v2060, %v2065
    %v2067 = vld [vmem:[#allocation3 + $0xa0] sm:$0xff]
    %v2068 = vld [vmem:[#allocation3 + $0xa8] sm:$0xff]
    %v2069 = vld [vmem:[#allocation3 + $0xb0] sm:$0xff]
    %v2070 = vld [vmem:[#allocation3 + $0xb8] sm:$0xff]
    %v2071 = vpack.c.bf16 %v2066, %v2066
    %2072 = vmatpush.bf16.msra.mxu0 %v1416
    %2073 = vmatpush.bf16.msra.mxu0 %v1412
    %2074 = vmatpush.bf16.msra.mxu0 %v1408
    %2075 = vmatpush.bf16.msra.mxu0 %v1404
    %2076 = vmatpush.bf16.msra.mxu0 %v1400
    %2077 = vmatpush.bf16.msra.mxu0 %v1396
    %2078 = vmatpush.bf16.msra.mxu0 %v1392
    %2079 = vmatpush.bf16.msra.mxu0 %v1388
    %2080 = vmatmul.bf16.gmra.mxu0 %v2071
    %v2081 = vpop.f32.mrf.mxu0
    %v2082 = vadd.f32 0.0, %v2081
    %v2083 = vpop.f32.mrf.mxu0
    %2084 = vdwg.mxu0
    %2085 = vmatpush.bf16.msra.mxu0 %v1417
    %2086 = vmatpush.bf16.msra.mxu0 %v1413
    %2087 = vmatpush.bf16.msra.mxu0 %v1409
    %2088 = vmatpush.bf16.msra.mxu0 %v1405
    %2089 = vmatpush.bf16.msra.mxu0 %v1401
    %2090 = vmatpush.bf16.msra.mxu0 %v1397
    %2091 = vmatpush.bf16.msra.mxu0 %v1393
    %2092 = vmatpush.bf16.msra.mxu0 %v1389
    %2093 = vmatmul.bf16.gmra.mxu0 %v2071
    %v2094 = vpop.f32.mrf.mxu0
    %v2095 = vadd.f32 0.0, %v2094
    %v2096 = vpop.f32.mrf.mxu0
    %2097 = vdwg.mxu0
    %2098 = vmatpush.bf16.msra.mxu0 %v1418
    %2099 = vmatpush.bf16.msra.mxu0 %v1414
    %2100 = vmatpush.bf16.msra.mxu0 %v1410
    %2101 = vmatpush.bf16.msra.mxu0 %v1406
    %2102 = vmatpush.bf16.msra.mxu0 %v1402
    %2103 = vmatpush.bf16.msra.mxu0 %v1398
    %2104 = vmatpush.bf16.msra.mxu0 %v1394
    %2105 = vmatpush.bf16.msra.mxu0 %v1390
    %2106 = vmatmul.bf16.gmra.mxu0 %v2071
    %v2107 = vpop.f32.mrf.mxu0
    %v2108 = vadd.f32 0.0, %v2107
    %v2109 = vpop.f32.mrf.mxu0
    %2110 = vdwg.mxu0
    %2111 = vmatpush.bf16.msra.mxu0 %v1419
    %2112 = vmatpush.bf16.msra.mxu0 %v1415
    %2113 = vmatpush.bf16.msra.mxu0 %v1411
    %2114 = vmatpush.bf16.msra.mxu0 %v1407
    %2115 = vmatpush.bf16.msra.mxu0 %v1403
    %2116 = vmatpush.bf16.msra.mxu0 %v1399
    %2117 = vmatpush.bf16.msra.mxu0 %v1395
    %2118 = vmatpush.bf16.msra.mxu0 %v1391
    %2119 = vmatmul.bf16.gmra.mxu0 %v2071
    %v2120 = vpop.f32.mrf.mxu0
    %v2121 = vadd.f32 0.0, %v2120
    %v2122 = vpop.f32.mrf.mxu0
    %2123 = vdwg.mxu0
    %v2124 = vadd.f32 %v2067, %v2082
    %v2125 = vadd.f32 %v2068, %v2095
    %v2126 = vadd.f32 %v2069, %v2108
    %v2127 = vadd.f32 %v2070, %v2121
    %v2128 = vxor.u32 %v2124, 2147483648
    %v2129 = vxor.u32 %v2125, 2147483648
    %v2130 = vxor.u32 %v2126, 2147483648
    %v2131 = vmul.f32 %v2128, 1.442695
    %v2132 = vpow.pop %v2131
    %v2133 = vmul.f32 %v2129, 1.442695
    %v2134 = vpow.pop %v2133
    %v2135 = vmul.f32 %v2130, 1.442695
    %v2136 = vpow.pop %v2135
    %v2137 = vadd.f32 %v2132, 1.0
    %v2138 = vadd.f32 %v2134, 1.0
    %v2139 = vadd.f32 %v2136, 1.0
    %v2140 = vrcp.pop %v2137
    %v2141 = vmul.f32 %v2137, %v2140
    %v2142 = vsub.f32 1.0, %v2141
    %v2143 = vmul.f32 %v2140, %v2142
    %v2144 = vadd.f32 %v2140, %v2143
    %vm2145 = vweird.f32 %v2137
    %vm2146 = vweird.f32 %v2140
    %vm2147 = vmor %vm2145, %vm2146
    %v2148 = vsel %vm2147, %v2140, %v2144
    %v2149 = vand.u32 2147483647, %v2137
    %vm2150 = vcmp.eq.f32.partialorder %v2149, 8.507059e+37
    %v2151 = vand.u32 %v2137, 2147483648
    %v2152 = vor.u32 1.1754944e-38, %v2151
    %v2153 = vsel %vm2150, %v2152, %v2148
    %v2154 = vmul.f32 1.0, %v2153
    %v2155 = vrcp.pop %v2138
    %v2156 = vmul.f32 %v2138, %v2155
    %v2157 = vsub.f32 1.0, %v2156
    %v2158 = vmul.f32 %v2155, %v2157
    %v2159 = vadd.f32 %v2155, %v2158
    %vm2160 = vweird.f32 %v2138
    %vm2161 = vweird.f32 %v2155
    %vm2162 = vmor %vm2160, %vm2161
    %v2163 = vsel %vm2162, %v2155, %v2159
    %v2164 = vand.u32 2147483647, %v2138
    %vm2165 = vcmp.eq.f32.partialorder %v2164, 8.507059e+37
    %v2166 = vand.u32 %v2138, 2147483648
    %v2167 = vor.u32 1.1754944e-38, %v2166
    %v2168 = vsel %vm2165, %v2167, %v2163
    %v2169 = vmul.f32 1.0, %v2168
    %v2170 = vrcp.pop %v2139
    %v2171 = vmul.f32 %v2139, %v2170
    %v2172 = vsub.f32 1.0, %v2171
    %v2173 = vmul.f32 %v2170, %v2172
    %v2174 = vadd.f32 %v2170, %v2173
    %vm2175 = vweird.f32 %v2139
    %vm2176 = vweird.f32 %v2170
    %vm2177 = vmor %vm2175, %vm2176
    %v2178 = vsel %vm2177, %v2170, %v2174
    %v2179 = vand.u32 2147483647, %v2139
    %vm2180 = vcmp.eq.f32.partialorder %v2179, 8.507059e+37
    %v2181 = vand.u32 %v2139, 2147483648
    %v2182 = vor.u32 1.1754944e-38, %v2181
    %v2183 = vsel %vm2180, %v2182, %v2178
    %v2184 = vmul.f32 1.0, %v2183
    %v2185 = vtanh.pop %v2127
    %v2186 = vmul.f32 %v2169, %v2064
    %v2187 = vmul.f32 %v2154, %v2185
    %v2188 = vadd.f32 %v2186, %v2187
    %v2189 = vtanh.pop %v2188
    %v2190 = vmul.f32 %v2184, %v2189
    %v2191 = vld [vmem:[#allocation3 + $0xc0] sm:$0xff]
    %v2192 = vld [vmem:[#allocation3 + $0xc8] sm:$0xff]
    %v2193 = vld [vmem:[#allocation3 + $0xd0] sm:$0xff]
    %v2194 = vld [vmem:[#allocation3 + $0xd8] sm:$0xff]
    %v2195 = vpack.c.bf16 %v2190, %v2190
    %2196 = vmatpush.bf16.msra.mxu0 %v1416
    %2197 = vmatpush.bf16.msra.mxu0 %v1412
    %2198 = vmatpush.bf16.msra.mxu0 %v1408
    %2199 = vmatpush.bf16.msra.mxu0 %v1404
    %2200 = vmatpush.bf16.msra.mxu0 %v1400
    %2201 = vmatpush.bf16.msra.mxu0 %v1396
    %2202 = vmatpush.bf16.msra.mxu0 %v1392
    %2203 = vmatpush.bf16.msra.mxu0 %v1388
    %2204 = vmatmul.bf16.gmra.mxu0 %v2195
    %v2205 = vpop.f32.mrf.mxu0
    %v2206 = vadd.f32 0.0, %v2205
    %v2207 = vpop.f32.mrf.mxu0
    %2208 = vdwg.mxu0
    %2209 = vmatpush.bf16.msra.mxu0 %v1417
    %2210 = vmatpush.bf16.msra.mxu0 %v1413
    %2211 = vmatpush.bf16.msra.mxu0 %v1409
    %2212 = vmatpush.bf16.msra.mxu0 %v1405
    %2213 = vmatpush.bf16.msra.mxu0 %v1401
    %2214 = vmatpush.bf16.msra.mxu0 %v1397
    %2215 = vmatpush.bf16.msra.mxu0 %v1393
    %2216 = vmatpush.bf16.msra.mxu0 %v1389
    %2217 = vmatmul.bf16.gmra.mxu0 %v2195
    %v2218 = vpop.f32.mrf.mxu0
    %v2219 = vadd.f32 0.0, %v2218
    %v2220 = vpop.f32.mrf.mxu0
    %2221 = vdwg.mxu0
    %2222 = vmatpush.bf16.msra.mxu0 %v1418
    %2223 = vmatpush.bf16.msra.mxu0 %v1414
    %2224 = vmatpush.bf16.msra.mxu0 %v1410
    %2225 = vmatpush.bf16.msra.mxu0 %v1406
    %2226 = vmatpush.bf16.msra.mxu0 %v1402
    %2227 = vmatpush.bf16.msra.mxu0 %v1398
    %2228 = vmatpush.bf16.msra.mxu0 %v1394
    %2229 = vmatpush.bf16.msra.mxu0 %v1390
    %2230 = vmatmul.bf16.gmra.mxu0 %v2195
    %v2231 = vpop.f32.mrf.mxu0
    %v2232 = vadd.f32 0.0, %v2231
    %v2233 = vpop.f32.mrf.mxu0
    %2234 = vdwg.mxu0
    %2235 = vmatpush.bf16.msra.mxu0 %v1419
    %2236 = vmatpush.bf16.msra.mxu0 %v1415
    %2237 = vmatpush.bf16.msra.mxu0 %v1411
    %2238 = vmatpush.bf16.msra.mxu0 %v1407
    %2239 = vmatpush.bf16.msra.mxu0 %v1403
    %2240 = vmatpush.bf16.msra.mxu0 %v1399
    %2241 = vmatpush.bf16.msra.mxu0 %v1395
    %2242 = vmatpush.bf16.msra.mxu0 %v1391
    %2243 = vmatmul.bf16.gmra.mxu0 %v2195
    %v2244 = vpop.f32.mrf.mxu0
    %v2245 = vadd.f32 0.0, %v2244
    %v2246 = vpop.f32.mrf.mxu0
    %2247 = vdwg.mxu0
    %v2248 = vadd.f32 %v2191, %v2206
    %v2249 = vadd.f32 %v2192, %v2219
    %v2250 = vadd.f32 %v2193, %v2232
    %v2251 = vadd.f32 %v2194, %v2245
    %v2252 = vxor.u32 %v2248, 2147483648
    %v2253 = vxor.u32 %v2249, 2147483648
    %v2254 = vxor.u32 %v2250, 2147483648
    %v2255 = vmul.f32 %v2252, 1.442695
    %v2256 = vpow.pop %v2255
    %v2257 = vmul.f32 %v2253, 1.442695
    %v2258 = vpow.pop %v2257
    %v2259 = vmul.f32 %v2254, 1.442695
    %v2260 = vpow.pop %v2259
    %v2261 = vadd.f32 %v2256, 1.0
    %v2262 = vadd.f32 %v2258, 1.0
    %v2263 = vadd.f32 %v2260, 1.0
    %v2264 = vrcp.pop %v2261
    %v2265 = vmul.f32 %v2261, %v2264
    %v2266 = vsub.f32 1.0, %v2265
    %v2267 = vmul.f32 %v2264, %v2266
    %v2268 = vadd.f32 %v2264, %v2267
    %vm2269 = vweird.f32 %v2261
    %vm2270 = vweird.f32 %v2264
    %vm2271 = vmor %vm2269, %vm2270
    %v2272 = vsel %vm2271, %v2264, %v2268
    %v2273 = vand.u32 2147483647, %v2261
    %vm2274 = vcmp.eq.f32.partialorder %v2273, 8.507059e+37
    %v2275 = vand.u32 %v2261, 2147483648
    %v2276 = vor.u32 1.1754944e-38, %v2275
    %v2277 = vsel %vm2274, %v2276, %v2272
    %v2278 = vmul.f32 1.0, %v2277
    %v2279 = vrcp.pop %v2262
    %v2280 = vmul.f32 %v2262, %v2279
    %v2281 = vsub.f32 1.0, %v2280
    %v2282 = vmul.f32 %v2279, %v2281
    %v2283 = vadd.f32 %v2279, %v2282
    %vm2284 = vweird.f32 %v2262
    %vm2285 = vweird.f32 %v2279
    %vm2286 = vmor %vm2284, %vm2285
    %v2287 = vsel %vm2286, %v2279, %v2283
    %v2288 = vand.u32 2147483647, %v2262
    %vm2289 = vcmp.eq.f32.partialorder %v2288, 8.507059e+37
    %v2290 = vand.u32 %v2262, 2147483648
    %v2291 = vor.u32 1.1754944e-38, %v2290
    %v2292 = vsel %vm2289, %v2291, %v2287
    %v2293 = vmul.f32 1.0, %v2292
    %v2294 = vrcp.pop %v2263
    %v2295 = vmul.f32 %v2263, %v2294
    %v2296 = vsub.f32 1.0, %v2295
    %v2297 = vmul.f32 %v2294, %v2296
    %v2298 = vadd.f32 %v2294, %v2297
    %vm2299 = vweird.f32 %v2263
    %vm2300 = vweird.f32 %v2294
    %vm2301 = vmor %vm2299, %vm2300
    %v2302 = vsel %vm2301, %v2294, %v2298
    %v2303 = vand.u32 2147483647, %v2263
    %vm2304 = vcmp.eq.f32.partialorder %v2303, 8.507059e+37
    %v2305 = vand.u32 %v2263, 2147483648
    %v2306 = vor.u32 1.1754944e-38, %v2305
    %v2307 = vsel %vm2304, %v2306, %v2302
    %v2308 = vmul.f32 1.0, %v2307
    %v2309 = vtanh.pop %v2251
    %v2310 = vmul.f32 %v2293, %v2188
    %v2311 = vmul.f32 %v2278, %v2309
    %v2312 = vadd.f32 %v2310, %v2311
    %v2313 = vtanh.pop %v2312
    %v2314 = vmul.f32 %v2308, %v2313
    %v2315 = vld [vmem:[#allocation3 + $0xe0] sm:$0xff]
    %v2316 = vld [vmem:[#allocation3 + $0xe8] sm:$0xff]
    %v2317 = vld [vmem:[#allocation3 + $0xf0] sm:$0xff]
    %v2318 = vld [vmem:[#allocation3 + $0xf8] sm:$0xff]
    %v2319 = vpack.c.bf16 %v2314, %v2314
    %2320 = vmatpush.bf16.msra.mxu0 %v1416
    %2321 = vmatpush.bf16.msra.mxu0 %v1412
    %2322 = vmatpush.bf16.msra.mxu0 %v1408
    %2323 = vmatpush.bf16.msra.mxu0 %v1404
    %2324 = vmatpush.bf16.msra.mxu0 %v1400
    %2325 = vmatpush.bf16.msra.mxu0 %v1396
    %2326 = vmatpush.bf16.msra.mxu0 %v1392
    %2327 = vmatpush.bf16.msra.mxu0 %v1388
    %2328 = vmatmul.bf16.gmra.mxu0 %v2319
    %v2329 = vpop.f32.mrf.mxu0
    %v2330 = vadd.f32 0.0, %v2329
    %v2331 = vpop.f32.mrf.mxu0
    %2332 = vdwg.mxu0
    %2333 = vmatpush.bf16.msra.mxu0 %v1417
    %2334 = vmatpush.bf16.msra.mxu0 %v1413
    %2335 = vmatpush.bf16.msra.mxu0 %v1409
    %2336 = vmatpush.bf16.msra.mxu0 %v1405
    %2337 = vmatpush.bf16.msra.mxu0 %v1401
    %2338 = vmatpush.bf16.msra.mxu0 %v1397
    %2339 = vmatpush.bf16.msra.mxu0 %v1393
    %2340 = vmatpush.bf16.msra.mxu0 %v1389
    %2341 = vmatmul.bf16.gmra.mxu0 %v2319
    %v2342 = vpop.f32.mrf.mxu0
    %v2343 = vadd.f32 0.0, %v2342
    %v2344 = vpop.f32.mrf.mxu0
    %2345 = vdwg.mxu0
    %2346 = vmatpush.bf16.msra.mxu0 %v1418
    %2347 = vmatpush.bf16.msra.mxu0 %v1414
    %2348 = vmatpush.bf16.msra.mxu0 %v1410
    %2349 = vmatpush.bf16.msra.mxu0 %v1406
    %2350 = vmatpush.bf16.msra.mxu0 %v1402
    %2351 = vmatpush.bf16.msra.mxu0 %v1398
    %2352 = vmatpush.bf16.msra.mxu0 %v1394
    %2353 = vmatpush.bf16.msra.mxu0 %v1390
    %2354 = vmatmul.bf16.gmra.mxu0 %v2319
    %v2355 = vpop.f32.mrf.mxu0
    %v2356 = vadd.f32 0.0, %v2355
    %v2357 = vpop.f32.mrf.mxu0
    %2358 = vdwg.mxu0
    %2359 = vmatpush.bf16.msra.mxu0 %v1419
    %2360 = vmatpush.bf16.msra.mxu0 %v1415
    %2361 = vmatpush.bf16.msra.mxu0 %v1411
    %2362 = vmatpush.bf16.msra.mxu0 %v1407
    %2363 = vmatpush.bf16.msra.mxu0 %v1403
    %2364 = vmatpush.bf16.msra.mxu0 %v1399
    %2365 = vmatpush.bf16.msra.mxu0 %v1395
    %2366 = vmatpush.bf16.msra.mxu0 %v1391
    %2367 = vmatmul.bf16.gmra.mxu0 %v2319
    %v2368 = vpop.f32.mrf.mxu0
    %v2369 = vadd.f32 0.0, %v2368
    %v2370 = vpop.f32.mrf.mxu0
    %2371 = vdwg.mxu0
    %v2372 = vadd.f32 %v2315, %v2330
    %v2373 = vadd.f32 %v2316, %v2343
    %v2374 = vadd.f32 %v2317, %v2356
    %v2375 = vadd.f32 %v2318, %v2369
    %v2376 = vxor.u32 %v2372, 2147483648
    %v2377 = vxor.u32 %v2373, 2147483648
    %v2378 = vxor.u32 %v2374, 2147483648
    %v2379 = vmul.f32 %v2376, 1.442695
    %v2380 = vpow.pop %v2379
    %v2381 = vmul.f32 %v2377, 1.442695
    %v2382 = vpow.pop %v2381
    %v2383 = vmul.f32 %v2378, 1.442695
    %v2384 = vpow.pop %v2383
    %v2385 = vadd.f32 %v2380, 1.0
    %v2386 = vadd.f32 %v2382, 1.0
    %v2387 = vadd.f32 %v2384, 1.0
    %v2388 = vrcp.pop %v2385
    %v2389 = vmul.f32 %v2385, %v2388
    %v2390 = vsub.f32 1.0, %v2389
    %v2391 = vmul.f32 %v2388, %v2390
    %v2392 = vadd.f32 %v2388, %v2391
    %vm2393 = vweird.f32 %v2385
    %vm2394 = vweird.f32 %v2388
    %vm2395 = vmor %vm2393, %vm2394
    %v2396 = vsel %vm2395, %v2388, %v2392
    %v2397 = vand.u32 2147483647, %v2385
    %vm2398 = vcmp.eq.f32.partialorder %v2397, 8.507059e+37
    %v2399 = vand.u32 %v2385, 2147483648
    %v2400 = vor.u32 1.1754944e-38, %v2399
    %v2401 = vsel %vm2398, %v2400, %v2396
    %v2402 = vmul.f32 1.0, %v2401
    %v2403 = vrcp.pop %v2386
    %v2404 = vmul.f32 %v2386, %v2403
    %v2405 = vsub.f32 1.0, %v2404
    %v2406 = vmul.f32 %v2403, %v2405
    %v2407 = vadd.f32 %v2403, %v2406
    %vm2408 = vweird.f32 %v2386
    %vm2409 = vweird.f32 %v2403
    %vm2410 = vmor %vm2408, %vm2409
    %v2411 = vsel %vm2410, %v2403, %v2407
    %v2412 = vand.u32 2147483647, %v2386
    %vm2413 = vcmp.eq.f32.partialorder %v2412, 8.507059e+37
    %v2414 = vand.u32 %v2386, 2147483648
    %v2415 = vor.u32 1.1754944e-38, %v2414
    %v2416 = vsel %vm2413, %v2415, %v2411
    %v2417 = vmul.f32 1.0, %v2416
    %v2418 = vrcp.pop %v2387
    %v2419 = vmul.f32 %v2387, %v2418
    %v2420 = vsub.f32 1.0, %v2419
    %v2421 = vmul.f32 %v2418, %v2420
    %v2422 = vadd.f32 %v2418, %v2421
    %vm2423 = vweird.f32 %v2387
    %vm2424 = vweird.f32 %v2418
    %vm2425 = vmor %vm2423, %vm2424
    %v2426 = vsel %vm2425, %v2418, %v2422
    %v2427 = vand.u32 2147483647, %v2387
    %vm2428 = vcmp.eq.f32.partialorder %v2427, 8.507059e+37
    %v2429 = vand.u32 %v2387, 2147483648
    %v2430 = vor.u32 1.1754944e-38, %v2429
    %v2431 = vsel %vm2428, %v2430, %v2426
    %v2432 = vmul.f32 1.0, %v2431
    %v2433 = vtanh.pop %v2375
    %v2434 = vmul.f32 %v2417, %v2312
    %v2435 = vmul.f32 %v2402, %v2433
    %v2436 = vadd.f32 %v2434, %v2435
    %v2437 = vtanh.pop %v2436
    %v2438 = vmul.f32 %v2432, %v2437
    %v2439 = vpack.c.bf16 %v2438, %v2438
    %v2440 = vld [vmem:[#allocation14] sm:$0xf]
    %v2441 = vld [vmem:[#allocation14 + $0x4] sm:$0xf]
    %v2442 = vld [vmem:[#allocation14 + $0x8] sm:$0xf]
    %v2443 = vld [vmem:[#allocation14 + $0xc] sm:$0xf]
    %v2444 = vld [vmem:[#allocation14 + $0x10] sm:$0xf]
    %v2445 = vld [vmem:[#allocation14 + $0x14] sm:$0xf]
    %v2446 = vld [vmem:[#allocation14 + $0x18] sm:$0xf]
    %v2447 = vld [vmem:[#allocation14 + $0x1c] sm:$0xf]
    %v2448 = vld [vmem:[#allocation14 + $0x20] sm:$0xf]
    %v2449 = vld [vmem:[#allocation14 + $0x24] sm:$0xf]
    %v2450 = vld [vmem:[#allocation14 + $0x28] sm:$0xf]
    %v2451 = vld [vmem:[#allocation14 + $0x2c] sm:$0xf]
    %v2452 = vld [vmem:[#allocation14 + $0x30] sm:$0xf]
    %v2453 = vld [vmem:[#allocation14 + $0x34] sm:$0xf]
    %v2454 = vld [vmem:[#allocation14 + $0x38] sm:$0xf]
    %v2455 = vld [vmem:[#allocation14 + $0x3c] sm:$0xf]
    %v2456 = vld [vmem:[%s6] sm:$0x1]
    %v2458 = vperm.slane %v2456, 0
    %v2476 = vunpack.c.l.b16 %v2440
    %v2477 = vunpack.c.l.b16 %v2441
    %v2478 = vunpack.c.l.b16 %v2442
    %v2479 = vunpack.c.l.b16 %v2443
    %v2480 = vunpack.c.l.b16 %v2444
    %v2481 = vunpack.c.l.b16 %v2445
    %v2482 = vunpack.c.l.b16 %v2446
    %v2483 = vunpack.c.l.b16 %v2447
    %v2484 = vunpack.c.l.b16 %v2448
    %v2485 = vunpack.c.l.b16 %v2449
    %v2486 = vunpack.c.l.b16 %v2450
    %v2487 = vunpack.c.l.b16 %v2451
    %v2488 = vunpack.c.l.b16 %v2452
    %v2489 = vunpack.c.l.b16 %v2453
    %v2490 = vunpack.c.l.b16 %v2454
    %v2491 = vunpack.c.l.b16 %v2455
    %v2492 = vpack.c.b16 %v2477, %v2476
    %v2493 = vpack.c.b16 %v2479, %v2478
    %v2494 = vpack.c.b16 %v2481, %v2480
    %v2495 = vpack.c.b16 %v2483, %v2482
    %v2496 = vpack.c.b16 %v2485, %v2484
    %v2497 = vpack.c.b16 %v2487, %v2486
    %v2498 = vpack.c.b16 %v2489, %v2488
    %v2499 = vpack.c.b16 %v2491, %v2490
    %2508 = vmatpush.bf16.msra.mxu0 %v2499
    %2509 = vmatpush.bf16.msra.mxu0 %v2498
    %2510 = vmatpush.bf16.msra.mxu0 %v2497
    %2511 = vmatpush.bf16.msra.mxu0 %v2496
    %2512 = vmatpush.bf16.msra.mxu0 %v2495
    %2513 = vmatpush.bf16.msra.mxu0 %v2494
    %2514 = vmatpush.bf16.msra.mxu0 %v2493
    %2515 = vmatpush.bf16.msra.mxu0 %v2492
    %2516 = vmatmul.bf16.gmra.mxu0 %v2439
    %v2517 = vpop.f32.mrf.mxu0
    %v2518 = vadd.f32 %v2458, %v2517
    %v2519 = vpop.f32.mrf.mxu0
    %2520 = vdwg.mxu0
    %2521 = vst [vmem:[#allocation15] sm:$0xff] %v2518
    // Predicated region
    $region46: #{tpu_custom_call.1} parent=1 // pred_check
      _
    $region47: #{tpu_custom_call.1} parent=1 // pred_check_branch
      %2523 = sbr.rel (0) target = $region49
    $region48: #{tpu_custom_call.1} parent=1 // pred_region
      %2525 = vsyncadd [#allocation8], 0
      %s2527 = sshll.u32 [#allocation15], 4
      %s2528 = int_to_ptr.vmem [resolvable:$true] %s2527
      %s2529 = sshll.u32 %s7, 4
      %s2530 = int_to_ptr.hbm [resolvable:$true] %s2529
      %2532 = dma.vmem_to_hbm [thread:$0]  %s2528, 128, %s2530, [#allocation8]
    $region49: #{tpu_custom_call.1} parent=1 // pred_fallthru
      _
    // Predicated region
    $region50: #{tpu_custom_call.1} parent=1 // pred_check
      _
    $region51: #{tpu_custom_call.1} parent=1 // pred_check_branch
      %2534 = sbr.rel (0) target = $region53
    $region52: #{tpu_custom_call.1} parent=1 // pred_region
      %2536 = dma.done [#allocation8], 128
    $region53: #{tpu_custom_call.1} parent=1 // pred_fallthru
      _
    %2537 = vsyncpa [#allocation7], 1
    %2538 = vsyncpa [#allocation10], 1
    %2539 = vsyncpa [#allocation13], 1
    %2540 = vsyncpa [#allocation8], 1

</llo_original>
